<compile_context>
chip_gen: v7x
topology: tpu7x:2x2x1
jax: 0.10.0
libtpu: 0.0.40
codegen_flags: <defaults>
</compile_context>

<pallas_src>
import math
import functools

import jax
import jax.numpy as jnp
from jax import lax
from jax.experimental import pallas as pl
from jax.experimental.pallas import tpu as pltpu


def attn_block_kernel(x_ref, gmask_ref, wqkv_ref, bqkv_ref, wproj_ref, bproj_ref,
                      o_ref,
                      qkv_s, h_all_s,
                      *, num_heads, eps, tq, compute_dtype, approx_recip, exp_bf16):
    c = x_ref.shape[1]
    t = x_ref.shape[2]
    ch = c // num_heads
    nq = t // tq
    exp_dtype = jnp.bfloat16 if exp_bf16 else jnp.float32

    x = x_ref[0].astype(jnp.float32)                                   # (C, T)

    # ---------------- GroupNorm: one reduction pass + ONE gmask matmul (affine folded into QKV) ----
    # NOTE: single-pass variance (E[x^2] - mean^2) in f32; for production inputs with |mean| >> std,
    #       subtract a per-group pivot first (two-pass / Welford) to avoid cancellation.
    stats = jnp.concatenate(
        [jnp.sum(x, axis=1, keepdims=True), jnp.sum(x * x, axis=1, keepdims=True)], axis=1)  # (C, 2)
    g = jnp.dot(gmask_ref[...], stats, preferred_element_type=jnp.float32)                   # (C, 2)
    mean = g[:, 0:1]
    var = g[:, 1:2] - mean * mean
    a = lax.rsqrt(var + eps)                                           # (C, 1)
    bb = -(mean * a)                                                   # (C, 1)
    xn = (x * a + bb).astype(compute_dtype)                            # single FMA per element

    # ---------------- QKV 1x1 conv: one full-depth matmul ----------------
    # w_qkv pre-permuted to [Q | K | V] slabs (heads contiguous), GN affine + attn scale folded in.
    qkv = jnp.dot(wqkv_ref[...], xn, preferred_element_type=jnp.float32) + bqkv_ref[...]
    qkv_s[...] = qkv.astype(compute_dtype)                             # (3C, T) VMEM scratch

    # ---------------- per-head attention, query-tiled, fully unrolled (static Python loops) -------
    # Logits held as K^T·Q (T_s, tq): softmax stats come out as (1, tq) rows, so the max-subtract,
    # the denominator, and the deferred normalization all broadcast in-lane (no transposes).
    for h in range(num_heads):
        off = h * ch
        k = qkv_s[pl.ds(c + off, ch), :]                               # (ch, T)  K slab rows
        v = qkv_s[pl.ds(2 * c + off, ch), :]                           # (ch, T)  V slab rows
        for qi in range(nq):
            q0 = qi * tq
            q = qkv_s[pl.ds(off, ch), pl.ds(q0, tq)]                   # (ch, tq) Q slab rows
            # s[kpos, qpos] = sum_c k[c, kpos] * q[c, qpos]   (scale already folded into weights)
            s = lax.dot_general(k, q, (((0,), (0,)), ((), ())),
                                preferred_element_type=jnp.float32)    # (T, tq) f32
            m = jnp.max(s, axis=0, keepdims=True)                      # (1, tq) f32
            p = jnp.exp((s - m).astype(exp_dtype))                     # bf16 exp on the fast path
            denom = jnp.sum(p, axis=0, keepdims=True, dtype=jnp.float32)   # (1, tq) f32 accumulation
            # un-normalized PV first; normalization deferred to the (ch, tq) output block
            o = lax.dot_general(v, p.astype(compute_dtype), (((1,), (0,)), ((), ())),
                                preferred_element_type=jnp.float32)    # (ch, tq)
            if approx_recip:
                o = o * pl.reciprocal(denom, approx=True)              # EUP slot, off the VALU
            else:
                o = o / denom                                          # exact path (strict f32 check)
            h_all_s[pl.ds(off, ch), pl.ds(q0, tq)] = o.astype(compute_dtype)

    # ---------------- output projection: ONE full-K matmul; residual re-loads x (short live range)
    proj = jnp.dot(wproj_ref[...], h_all_s[...],
                   preferred_element_type=jnp.float32) + bproj_ref[...]
    o_ref[0] = (x_ref[0].astype(jnp.float32) + proj).astype(o_ref.dtype)


def _prep_params(params, c, num_heads, compute_dtype):
    """Fold GN affine + attention scale into the QKV conv and permute rows to [Q|K|V] slabs.

    Assumed w_qkv row layout (PyTorch): rows [3*ch*h : 3*ch*(h+1)] are head h's [q; k; v],
    i.e. exactly what `qkv.reshape(b*num_heads, 3*ch, T)` implies.
    All folding is done in f32; the fast path casts the folded weights to bf16 afterwards.
    """
    ch = c // num_heads
    scale = 1.0 / math.sqrt(math.sqrt(ch))

    w_qkv = params["w_qkv"].astype(jnp.float32)            # (3C, C)
    b_qkv = params["b_qkv"].astype(jnp.float32)            # (3C,)
    gn_w = params["gn_w"].astype(jnp.float32)              # (C,)
    gn_b = params["gn_b"].astype(jnp.float32)              # (C,)

    # Fold GroupNorm affine:  W @ (xn*gn_w + gn_b) + b  ==  (W * gn_w) @ xn + (b + W @ gn_b)
    w_fold = w_qkv * gn_w[None, :]
    b_fold = b_qkv + w_qkv @ gn_b

    # Row permutation into contiguous [Q | K | V] slabs (heads contiguous within each slab).
    n = jnp.arange(3 * c)
    slab = n // c                                          # 0 = Q, 1 = K, 2 = V
    head = (n % c) // ch
    cc = n % ch
    perm = 3 * ch * head + slab * ch + cc                  # original (interleaved) row index
    row_scale = jnp.where(slab < 2, scale, 1.0).astype(jnp.float32)   # fold 1/sqrt(sqrt(ch)) into Q,K

    w_qkv_p = (w_fold[perm] * row_scale[:, None]).astype(compute_dtype)
    b_qkv_p = (b_fold[perm] * row_scale).reshape(3 * c, 1).astype(jnp.float32)
    w_proj = params["w_proj"].astype(compute_dtype)
    b_proj = params["b_proj"].reshape(c, 1).astype(jnp.float32)
    return w_qkv_p, b_qkv_p, w_proj, b_proj


def attention_block_pallas(x, params, *, num_heads, num_groups, eps=1e-5,
                           compute_dtype=jnp.bfloat16, approx_recip=None, tq=128):
    b, c, hh, ww = x.shape
    t = hh * ww
    assert c % num_heads == 0 and c % num_groups == 0
    cdt = jnp.dtype(compute_dtype)
    if tq > t or t % tq != 0:
        tq = t                                             # fall back to un-tiled query rows
    is_bf16 = (cdt == jnp.dtype(jnp.bfloat16))
    if approx_recip is None:
        # Default: EUP reciprocal on the bf16 fast path, exact divide for the strict f32 check.
        # v5e f32 production runs should pass approx_recip=True (the EUP slot is otherwise idle).
        approx_recip = is_bf16

    w_qkv, b_qkv, w_proj, b_proj = _prep_params(params, c, num_heads, compute_dtype)

    # block-diagonal group-membership mask with 1/(group_size*T) folded in (resident VMEM input)
    gs = c // num_groups
    gidx = jnp.arange(c) // gs
    gmask = (gidx[:, None] == gidx[None, :]).astype(jnp.float32) / float(gs * t)

    # ---- generation-aware scoped-VMEM budget from the honest resident set ----
    xb = jnp.dtype(x.dtype).itemsize
    blocks = 2 * (c * t * xb) * 2                              # x + out blocks, double-buffered
    weights = 2 * (c * c * 4                                   # gmask (f32)
                   + 3 * c * c * cdt.itemsize + 3 * c * 4      # w_qkv, b_qkv
                   + c * c * cdt.itemsize + c * 4)             # w_proj, b_proj (x2: buffer count)
    scratch = 4 * c * t * cdt.itemsize                         # qkv_s (3C,T) + h_all_s (C,T)
    logits = 2 * t * tq * 4                                    # s + p working tiles (f32 bound)
    resident = blocks + weights + scratch + logits
    try:
        vmem_cap = int(pltpu.get_tpu_info().vmem_capacity_bytes)   # 128 MiB v5e/v6e, 64 MiB v7x
    except Exception:
        vmem_cap = 64 << 20
    vmem_limit = int(min(max(resident * 3 // 2 + (4 << 20), 16 << 20), vmem_cap * 9 // 10))

    kernel = functools.partial(
        attn_block_kernel, num_heads=num_heads, eps=eps, tq=tq,
        compute_dtype=cdt, approx_recip=approx_recip, exp_bf16=is_bf16)

    # NOTE: gmask / w_qkv / b_qkv / w_proj / b_proj have constant index maps; if the toolchain
    # double-buffers them, pipeline_mode=pl.Buffered(1) would reclaim that VMEM (left at default
    # here for lowering safety — accounted for in the budget above).
    out = pl.pallas_call(
        kernel,
        out_shape=jax.ShapeDtypeStruct((b, c, t), x.dtype),
        grid_spec=pltpu.PrefetchScalarGridSpec(
            num_scalar_prefetch=0,
            grid=(b,),
            in_specs=[
                pl.BlockSpec((1, c, t), lambda i: (i, 0, 0)),     # x
                pl.BlockSpec((c, c), lambda i: (0, 0)),           # group mask (pre-scaled)
                pl.BlockSpec((3 * c, c), lambda i: (0, 0)),       # qkv weight (permuted, GN+scale folded)
                pl.BlockSpec((3 * c, 1), lambda i: (0, 0)),       # qkv bias   (permuted, GN+scale folded)
                pl.BlockSpec((c, c), lambda i: (0, 0)),           # proj weight
                pl.BlockSpec((c, 1), lambda i: (0, 0)),           # proj bias
            ],
            out_specs=pl.BlockSpec((1, c, t), lambda i: (i, 0, 0)),
            scratch_shapes=[
                pltpu.VMEM((3 * c, t), cdt),                      # qkv as [Q|K|V] slabs
                pltpu.VMEM((c, t), cdt),                          # concatenated head outputs
            ],
        ),
        compiler_params=pltpu.CompilerParams(
            dimension_semantics=("parallel",),
            vmem_limit_bytes=vmem_limit),
    )(x.reshape(b, c, t), gmask, w_qkv, b_qkv, w_proj, b_proj)

    return out.reshape(b, c, hh, ww)


def attention_block_ref(x, params, *, num_heads, num_groups, eps=1e-5):
    """Plain-JAX mirror of the PyTorch forward, used for correctness checking."""
    b, c, hh, ww = x.shape
    t = hh * ww
    xf = x.reshape(b, c, t)
    xg = xf.reshape(b, num_groups, (c // num_groups) * t)
    mean = xg.mean(axis=2, keepdims=True)
    var = ((xg - mean) ** 2).mean(axis=2, keepdims=True)
    xn = ((xg - mean) / jnp.sqrt(var + eps)).reshape(b, c, t)
    xn = xn * params["gn_w"][None, :, None] + params["gn_b"][None, :, None]
    qkv = jnp.einsum("oc,bct->bot", params["w_qkv"], xn) + params["b_qkv"][None, :, None]
    qkv = qkv.reshape(b * num_heads, 3 * (c // num_heads), t)
    ch = c // num_heads
    q, k, v = qkv[:, :ch], qkv[:, ch:2 * ch], qkv[:, 2 * ch:]
    scale = 1.0 / math.sqrt(math.sqrt(ch))
    w = jnp.einsum("bct,bcs->bts", q * scale, k * scale)
    w = jax.nn.softmax(w.astype(jnp.float32), axis=-1).astype(w.dtype)
    h = jnp.einsum("bts,bcs->bct", w, v)
    h = h.reshape(b, c, t)
    h = jnp.einsum("oc,bct->bot", params["w_proj"], h) + params["b_proj"][None, :, None]
    return (xf + h).reshape(b, c, hh, ww)


if __name__ == "__main__":
    B, C, H, W = 2, 32, 16, 16
    NUM_HEADS = 2         # ch = 16 -> per-head offsets land on sublane boundaries (f32 and bf16)
    NUM_GROUPS = 8        # groups must divide C

    key = jax.random.PRNGKey(0)
    kx, kq, kbq, kp, kbp = jax.random.split(key, 5)

    x = jax.random.normal(kx, (B, C, H, W), jnp.float32)

    params = {
        # GroupNorm default init: weight = 1, bias = 0
        "gn_w": jnp.ones((C,), jnp.float32),
        "gn_b": jnp.zeros((C,), jnp.float32),
        # qkv = conv_nd(1, C, 3C, 1)  -> weight (3C, C), bias (3C,)
        "w_qkv": 0.1 * jax.random.normal(kq, (3 * C, C), jnp.float32),
        "b_qkv": 0.05 * jax.random.normal(kbq, (3 * C,), jnp.float32),
        # proj_out = zero_module(conv_nd(1, C, C, 1)); zero_module() zeroes these at init
        # (output == input).  Non-zero values are used so the attention path is exercised.
        "w_proj": 0.1 * jax.random.normal(kp, (C, C), jnp.float32),
        "b_proj": 0.05 * jax.random.normal(kbp, (C,), jnp.float32),
    }

    out_ref = attention_block_ref(x, params, num_heads=NUM_HEADS, num_groups=NUM_GROUPS)

    # strict check: f32 compute path must match the PyTorch-equivalent reference tightly
    out_f32 = jax.block_until_ready(
        attention_block_pallas(x, params, num_heads=NUM_HEADS, num_groups=NUM_GROUPS,
                               compute_dtype=jnp.float32))
    assert out_f32.shape == (B, C, H, W)
    err32 = float(jnp.max(jnp.abs(out_f32 - out_ref)))
    assert jnp.allclose(out_f32, out_ref, atol=1e-4, rtol=1e-4), err32

    # fast path: bf16 MXU operands + bf16 exp (f32 accumulation; GN stats / softmax stats stay f32)
    out_bf16 = jax.block_until_ready(
        attention_block_pallas(x, params, num_heads=NUM_HEADS, num_groups=NUM_GROUPS,
                               compute_dtype=jnp.bfloat16))
    assert out_bf16.shape == (B, C, H, W)
    errbf = float(jnp.max(jnp.abs(out_bf16 - out_ref)))
    assert jnp.allclose(out_bf16, out_ref, atol=5e-2, rtol=5e-2), errbf

    print("KERNEL_OK")
</pallas_src>

<mosaic_0001>
module attributes {stable_mosaic.version = 11 : i64} {
  func.func @attn_block_kernel(%arg0: i32, %arg1: memref<1x32x256xf32, #tpu.memory_space<vmem>>, %arg2: memref<32x32xf32, #tpu.memory_space<vmem>>, %arg3: memref<96x32xf32, #tpu.memory_space<vmem>>, %arg4: memref<96x1xf32, #tpu.memory_space<vmem>>, %arg5: memref<32x32xf32, #tpu.memory_space<vmem>>, %arg6: memref<32x1xf32, #tpu.memory_space<vmem>>, %arg7: memref<1x32x256xf32, #tpu.memory_space<vmem>>, %arg8: memref<96x256xf32, #tpu.memory_space<vmem>>, %arg9: memref<32x256xf32, #tpu.memory_space<vmem>>) attributes {dimension_semantics = [#tpu.dimension_semantics<parallel>], iteration_bounds = array<i64: 2>, scalar_prefetch = 0 : i64, scratch_operands = 2 : i64, tpu.core_type = #tpu.core_type<tc>, window_params = [{transform_indices = @transform_0, window_bounds = array<i64: 1, 32, 256>}, {pipeline_mode = #tpu.pipeline_mode<synchronous>, transform_indices = @transform_1, window_bounds = array<i64: 32, 32>}, {pipeline_mode = #tpu.pipeline_mode<synchronous>, transform_indices = @transform_2, window_bounds = array<i64: 96, 32>}, {pipeline_mode = #tpu.pipeline_mode<synchronous>, transform_indices = @transform_3, window_bounds = array<i64: 96, 1>}, {pipeline_mode = #tpu.pipeline_mode<synchronous>, transform_indices = @transform_4, window_bounds = array<i64: 32, 32>}, {pipeline_mode = #tpu.pipeline_mode<synchronous>, transform_indices = @transform_5, window_bounds = array<i64: 32, 1>}, {transform_indices = @transform_6, window_bounds = array<i64: 1, 32, 256>}]} {
    %c0 = arith.constant 0 : index
    %c0_0 = arith.constant 0 : index
    %c0_1 = arith.constant 0 : index
    %0 = vector.load %arg1[%c0, %c0_0, %c0_1] : memref<1x32x256xf32, #tpu.memory_space<vmem>>, vector<1x32x256xf32>
    %1 = vector.shape_cast %0 : vector<1x32x256xf32> to vector<32x256xf32>
    %cst = arith.constant dense<0.000000e+00> : vector<32xf32>
    %2 = vector.multi_reduction <add>, %1, %cst [1] : vector<32x256xf32> to vector<32xf32>
    %3 = vector.shape_cast %2 : vector<32xf32> to vector<32x1xf32>
    %4 = arith.mulf %1, %1 : vector<32x256xf32>
    %cst_2 = arith.constant dense<0.000000e+00> : vector<32xf32>
    %5 = vector.multi_reduction <add>, %4, %cst_2 [1] : vector<32x256xf32> to vector<32xf32>
    %6 = vector.shape_cast %5 : vector<32xf32> to vector<32x1xf32>
    %7 = tpu.concatenate %3, %6 in 1 : vector<32x1xf32>, vector<32x1xf32> -> vector<32x2xf32>
    %c0_3 = arith.constant 0 : index
    %c0_4 = arith.constant 0 : index
    %8 = vector.load %arg2[%c0_3, %c0_4] : memref<32x32xf32, #tpu.memory_space<vmem>>, vector<32x32xf32>
    %cst_5 = arith.constant dense<0.000000e+00> : vector<32x2xf32>
    %9 = tpu.matmul %8, %7, %cst_5 {dimension_numbers = #tpu.dot_dimension_numbers<[1], [0], [0], [1], [0, 0, 1, 1], [], []>} : vector<32x32xf32>, vector<32x2xf32>, vector<32x2xf32> -> vector<32x2xf32>
    %10 = vector.extract_strided_slice %9 {offsets = [0, 0], sizes = [32, 1], strides = [1, 1]} : vector<32x2xf32> to vector<32x1xf32>
    %11 = vector.extract_strided_slice %9 {offsets = [0, 1], sizes = [32, 1], strides = [1, 1]} : vector<32x2xf32> to vector<32x1xf32>
    %12 = arith.mulf %10, %10 : vector<32x1xf32>
    %13 = arith.subf %11, %12 : vector<32x1xf32>
    %cst_6 = arith.constant 9.99999974E-6 : f32
    %14 = vector.broadcast %cst_6 : f32 to vector<32x1xf32>
    %15 = arith.addf %13, %14 : vector<32x1xf32>
    %16 = math.rsqrt %15 : vector<32x1xf32>
    %17 = arith.mulf %10, %16 : vector<32x1xf32>
    %cst_7 = arith.constant 0.000000e+00 : f32
    %18 = vector.broadcast %cst_7 : f32 to vector<32x1xf32>
    %19 = arith.subf %18, %17 : vector<32x1xf32>
    %20 = vector.broadcast %16 : vector<32x1xf32> to vector<32x256xf32>
    %21 = arith.mulf %1, %20 : vector<32x256xf32>
    %22 = vector.broadcast %19 : vector<32x1xf32> to vector<32x256xf32>
    %23 = arith.addf %21, %22 : vector<32x256xf32>
    %c0_8 = arith.constant 0 : index
    %c0_9 = arith.constant 0 : index
    %24 = vector.load %arg3[%c0_8, %c0_9] : memref<96x32xf32, #tpu.memory_space<vmem>>, vector<96x32xf32>
    %cst_10 = arith.constant dense<0.000000e+00> : vector<96x256xf32>
    %25 = tpu.matmul %24, %23, %cst_10 {dimension_numbers = #tpu.dot_dimension_numbers<[1], [0], [0], [1], [0, 0, 1, 1], [], []>} : vector<96x32xf32>, vector<32x256xf32>, vector<96x256xf32> -> vector<96x256xf32>
    %c0_11 = arith.constant 0 : index
    %c0_12 = arith.constant 0 : index
    %26 = vector.load %arg4[%c0_11, %c0_12] : memref<96x1xf32, #tpu.memory_space<vmem>>, vector<96x1xf32>
    %27 = vector.broadcast %26 : vector<96x1xf32> to vector<96x256xf32>
    %28 = arith.addf %25, %27 : vector<96x256xf32>
    %c0_13 = arith.constant 0 : index
    %c0_14 = arith.constant 0 : index
    %29 = vector.load %arg8[%c0_13, %c0_14] : memref<96x256xf32, #tpu.memory_space<vmem>>, vector<96x256xf32>
    tpu.vector_store %arg8[%c0_13, %c0_14], %28 {strides = array<i32>} : memref<96x256xf32, #tpu.memory_space<vmem>>, vector<96x256xf32>,
    %c32 = arith.constant 32 : index
    %c0_15 = arith.constant 0 : index
    %30 = vector.load %arg8[%c32, %c0_15] : memref<96x256xf32, #tpu.memory_space<vmem>>, vector<16x256xf32>
    %c64 = arith.constant 64 : index
    %c0_16 = arith.constant 0 : index
    %31 = vector.load %arg8[%c64, %c0_16] : memref<96x256xf32, #tpu.memory_space<vmem>>, vector<16x256xf32>
    %c0_17 = arith.constant 0 : index
    %c0_18 = arith.constant 0 : index
    %32 = vector.load %arg8[%c0_17, %c0_18] : memref<96x256xf32, #tpu.memory_space<vmem>>, vector<16x128xf32>
    %cst_19 = arith.constant dense<0.000000e+00> : vector<256x128xf32>
    %33 = tpu.matmul %30, %32, %cst_19 {dimension_numbers = #tpu.dot_dimension_numbers<[0], [0], [1], [1], [0, 1, 1, 1], [], []>} : vector<16x256xf32>, vector<16x128xf32>, vector<256x128xf32> -> vector<256x128xf32>
    %cst_20 = arith.constant dense<0xFF800000> : vector<128xf32>
    %34 = vector.multi_reduction <maximumf>, %33, %cst_20 [0] : vector<256x128xf32> to vector<128xf32>
    %35 = vector.shape_cast %34 : vector<128xf32> to vector<1x128xf32>
    %36 = vector.broadcast %35 : vector<1x128xf32> to vector<256x128xf32>
    %37 = arith.subf %33, %36 : vector<256x128xf32>
    %38 = math.exp %37 : vector<256x128xf32>
    %cst_21 = arith.constant dense<0.000000e+00> : vector<128xf32>
    %39 = vector.multi_reduction <add>, %38, %cst_21 [0] : vector<256x128xf32> to vector<128xf32>
    %40 = vector.shape_cast %39 : vector<128xf32> to vector<1x128xf32>
    %cst_22 = arith.constant dense<0.000000e+00> : vector<16x128xf32>
    %41 = tpu.matmul %31, %38, %cst_22 {dimension_numbers = #tpu.dot_dimension_numbers<[1], [0], [0], [1], [0, 0, 1, 1], [], []>} : vector<16x256xf32>, vector<256x128xf32>, vector<16x128xf32> -> vector<16x128xf32>
    %42 = vector.broadcast %40 : vector<1x128xf32> to vector<16x128xf32>
    %43 = arith.divf %41, %42 : vector<16x128xf32>
    %c0_23 = arith.constant 0 : index
    %c0_24 = arith.constant 0 : index
    %44 = vector.load %arg9[%c0_23, %c0_24] : memref<32x256xf32, #tpu.memory_space<vmem>>, vector<16x128xf32>
    tpu.vector_store %arg9[%c0_23, %c0_24], %43 {strides = array<i32>} : memref<32x256xf32, #tpu.memory_space<vmem>>, vector<16x128xf32>,
    %c0_25 = arith.constant 0 : index
    %c128 = arith.constant 128 : index
    %45 = vector.load %arg8[%c0_25, %c128] : memref<96x256xf32, #tpu.memory_space<vmem>>, vector<16x128xf32>
    %cst_26 = arith.constant dense<0.000000e+00> : vector<256x128xf32>
    %46 = tpu.matmul %30, %45, %cst_26 {dimension_numbers = #tpu.dot_dimension_numbers<[0], [0], [1], [1], [0, 1, 1, 1], [], []>} : vector<16x256xf32>, vector<16x128xf32>, vector<256x128xf32> -> vector<256x128xf32>
    %cst_27 = arith.constant dense<0xFF800000> : vector<128xf32>
    %47 = vector.multi_reduction <maximumf>, %46, %cst_27 [0] : vector<256x128xf32> to vector<128xf32>
    %48 = vector.shape_cast %47 : vector<128xf32> to vector<1x128xf32>
    %49 = vector.broadcast %48 : vector<1x128xf32> to vector<256x128xf32>
    %50 = arith.subf %46, %49 : vector<256x128xf32>
    %51 = math.exp %50 : vector<256x128xf32>
    %cst_28 = arith.constant dense<0.000000e+00> : vector<128xf32>
    %52 = vector.multi_reduction <add>, %51, %cst_28 [0] : vector<256x128xf32> to vector<128xf32>
    %53 = vector.shape_cast %52 : vector<128xf32> to vector<1x128xf32>
    %cst_29 = arith.constant dense<0.000000e+00> : vector<16x128xf32>
    %54 = tpu.matmul %31, %51, %cst_29 {dimension_numbers = #tpu.dot_dimension_numbers<[1], [0], [0], [1], [0, 0, 1, 1], [], []>} : vector<16x256xf32>, vector<256x128xf32>, vector<16x128xf32> -> vector<16x128xf32>
    %55 = vector.broadcast %53 : vector<1x128xf32> to vector<16x128xf32>
    %56 = arith.divf %54, %55 : vector<16x128xf32>
    %c0_30 = arith.constant 0 : index
    %c128_31 = arith.constant 128 : index
    %57 = vector.load %arg9[%c0_30, %c128_31] : memref<32x256xf32, #tpu.memory_space<vmem>>, vector<16x128xf32>
    tpu.vector_store %arg9[%c0_30, %c128_31], %56 {strides = array<i32>} : memref<32x256xf32, #tpu.memory_space<vmem>>, vector<16x128xf32>,
    %c48 = arith.constant 48 : index
    %c0_32 = arith.constant 0 : index
    %58 = vector.load %arg8[%c48, %c0_32] : memref<96x256xf32, #tpu.memory_space<vmem>>, vector<16x256xf32>
    %c80 = arith.constant 80 : index
    %c0_33 = arith.constant 0 : index
    %59 = vector.load %arg8[%c80, %c0_33] : memref<96x256xf32, #tpu.memory_space<vmem>>, vector<16x256xf32>
    %c16 = arith.constant 16 : index
    %c0_34 = arith.constant 0 : index
    %60 = vector.load %arg8[%c16, %c0_34] : memref<96x256xf32, #tpu.memory_space<vmem>>, vector<16x128xf32>
    %cst_35 = arith.constant dense<0.000000e+00> : vector<256x128xf32>
    %61 = tpu.matmul %58, %60, %cst_35 {dimension_numbers = #tpu.dot_dimension_numbers<[0], [0], [1], [1], [0, 1, 1, 1], [], []>} : vector<16x256xf32>, vector<16x128xf32>, vector<256x128xf32> -> vector<256x128xf32>
    %cst_36 = arith.constant dense<0xFF800000> : vector<128xf32>
    %62 = vector.multi_reduction <maximumf>, %61, %cst_36 [0] : vector<256x128xf32> to vector<128xf32>
    %63 = vector.shape_cast %62 : vector<128xf32> to vector<1x128xf32>
    %64 = vector.broadcast %63 : vector<1x128xf32> to vector<256x128xf32>
    %65 = arith.subf %61, %64 : vector<256x128xf32>
    %66 = math.exp %65 : vector<256x128xf32>
    %cst_37 = arith.constant dense<0.000000e+00> : vector<128xf32>
    %67 = vector.multi_reduction <add>, %66, %cst_37 [0] : vector<256x128xf32> to vector<128xf32>
    %68 = vector.shape_cast %67 : vector<128xf32> to vector<1x128xf32>
    %cst_38 = arith.constant dense<0.000000e+00> : vector<16x128xf32>
    %69 = tpu.matmul %59, %66, %cst_38 {dimension_numbers = #tpu.dot_dimension_numbers<[1], [0], [0], [1], [0, 0, 1, 1], [], []>} : vector<16x256xf32>, vector<256x128xf32>, vector<16x128xf32> -> vector<16x128xf32>
    %70 = vector.broadcast %68 : vector<1x128xf32> to vector<16x128xf32>
    %71 = arith.divf %69, %70 : vector<16x128xf32>
    %c16_39 = arith.constant 16 : index
    %c0_40 = arith.constant 0 : index
    %72 = vector.load %arg9[%c16_39, %c0_40] : memref<32x256xf32, #tpu.memory_space<vmem>>, vector<16x128xf32>
    tpu.vector_store %arg9[%c16_39, %c0_40], %71 {strides = array<i32>} : memref<32x256xf32, #tpu.memory_space<vmem>>, vector<16x128xf32>,
    %c16_41 = arith.constant 16 : index
    %c128_42 = arith.constant 128 : index
    %73 = vector.load %arg8[%c16_41, %c128_42] : memref<96x256xf32, #tpu.memory_space<vmem>>, vector<16x128xf32>
    %cst_43 = arith.constant dense<0.000000e+00> : vector<256x128xf32>
    %74 = tpu.matmul %58, %73, %cst_43 {dimension_numbers = #tpu.dot_dimension_numbers<[0], [0], [1], [1], [0, 1, 1, 1], [], []>} : vector<16x256xf32>, vector<16x128xf32>, vector<256x128xf32> -> vector<256x128xf32>
    %cst_44 = arith.constant dense<0xFF800000> : vector<128xf32>
    %75 = vector.multi_reduction <maximumf>, %74, %cst_44 [0] : vector<256x128xf32> to vector<128xf32>
    %76 = vector.shape_cast %75 : vector<128xf32> to vector<1x128xf32>
    %77 = vector.broadcast %76 : vector<1x128xf32> to vector<256x128xf32>
    %78 = arith.subf %74, %77 : vector<256x128xf32>
    %79 = math.exp %78 : vector<256x128xf32>
    %cst_45 = arith.constant dense<0.000000e+00> : vector<128xf32>
    %80 = vector.multi_reduction <add>, %79, %cst_45 [0] : vector<256x128xf32> to vector<128xf32>
    %81 = vector.shape_cast %80 : vector<128xf32> to vector<1x128xf32>
    %cst_46 = arith.constant dense<0.000000e+00> : vector<16x128xf32>
    %82 = tpu.matmul %59, %79, %cst_46 {dimension_numbers = #tpu.dot_dimension_numbers<[1], [0], [0], [1], [0, 0, 1, 1], [], []>} : vector<16x256xf32>, vector<256x128xf32>, vector<16x128xf32> -> vector<16x128xf32>
    %83 = vector.broadcast %81 : vector<1x128xf32> to vector<16x128xf32>
    %84 = arith.divf %82, %83 : vector<16x128xf32>
    %c16_47 = arith.constant 16 : index
    %c128_48 = arith.constant 128 : index
    %85 = vector.load %arg9[%c16_47, %c128_48] : memref<32x256xf32, #tpu.memory_space<vmem>>, vector<16x128xf32>
    tpu.vector_store %arg9[%c16_47, %c128_48], %84 {strides = array<i32>} : memref<32x256xf32, #tpu.memory_space<vmem>>, vector<16x128xf32>,
    %c0_49 = arith.constant 0 : index
    %c0_50 = arith.constant 0 : index
    %86 = vector.load %arg5[%c0_49, %c0_50] : memref<32x32xf32, #tpu.memory_space<vmem>>, vector<32x32xf32>
    %c0_51 = arith.constant 0 : index
    %c0_52 = arith.constant 0 : index
    %87 = vector.load %arg9[%c0_51, %c0_52] : memref<32x256xf32, #tpu.memory_space<vmem>>, vector<32x256xf32>
    %cst_53 = arith.constant dense<0.000000e+00> : vector<32x256xf32>
    %88 = tpu.matmul %86, %87, %cst_53 {dimension_numbers = #tpu.dot_dimension_numbers<[1], [0], [0], [1], [0, 0, 1, 1], [], []>} : vector<32x32xf32>, vector<32x256xf32>, vector<32x256xf32> -> vector<32x256xf32>
    %c0_54 = arith.constant 0 : index
    %c0_55 = arith.constant 0 : index
    %89 = vector.load %arg6[%c0_54, %c0_55] : memref<32x1xf32, #tpu.memory_space<vmem>>, vector<32x1xf32>
    %90 = vector.broadcast %89 : vector<32x1xf32> to vector<32x256xf32>
    %91 = arith.addf %88, %90 : vector<32x256xf32>
    %c0_56 = arith.constant 0 : index
    %c0_57 = arith.constant 0 : index
    %c0_58 = arith.constant 0 : index
    %92 = vector.load %arg1[%c0_56, %c0_57, %c0_58] : memref<1x32x256xf32, #tpu.memory_space<vmem>>, vector<1x32x256xf32>
    %93 = vector.shape_cast %92 : vector<1x32x256xf32> to vector<32x256xf32>
    %94 = arith.addf %93, %91 : vector<32x256xf32>
    %c0_59 = arith.constant 0 : index
    %c0_60 = arith.constant 0 : index
    %c0_61 = arith.constant 0 : index
    %95 = vector.load %arg7[%c0_59, %c0_60, %c0_61] : memref<1x32x256xf32, #tpu.memory_space<vmem>>, vector<1x32x256xf32>
    %96 = vector.shape_cast %95 : vector<1x32x256xf32> to vector<32x256xf32>
    %97 = vector.shape_cast %94 : vector<32x256xf32> to vector<1x32x256xf32>
    tpu.vector_store %arg7[%c0_59, %c0_60, %c0_61], %97 {strides = array<i32>} : memref<1x32x256xf32, #tpu.memory_space<vmem>>, vector<1x32x256xf32>,
    return
  }
  func.func @transform_0(%arg0: i32) -> (i32, i32, i32) {
    %c0_i32 = arith.constant 0 : i32
    %c0_i32_0 = arith.constant 0 : i32
    %c0_i32_1 = arith.constant 0 : i32
    return %arg0, %c0_i32, %c0_i32_0 : i32, i32, i32
  }
  func.func @transform_1(%arg0: i32) -> (i32, i32) {
    %c0_i32 = arith.constant 0 : i32
    %c0_i32_0 = arith.constant 0 : i32
    %c0_i32_1 = arith.constant 0 : i32
    return %c0_i32, %c0_i32_0 : i32, i32
  }
  func.func @transform_2(%arg0: i32) -> (i32, i32) {
    %c0_i32 = arith.constant 0 : i32
    %c0_i32_0 = arith.constant 0 : i32
    %c0_i32_1 = arith.constant 0 : i32
    return %c0_i32, %c0_i32_0 : i32, i32
  }
  func.func @transform_3(%arg0: i32) -> (i32, i32) {
    %c0_i32 = arith.constant 0 : i32
    %c0_i32_0 = arith.constant 0 : i32
    %c0_i32_1 = arith.constant 0 : i32
    return %c0_i32, %c0_i32_0 : i32, i32
  }
  func.func @transform_4(%arg0: i32) -> (i32, i32) {
    %c0_i32 = arith.constant 0 : i32
    %c0_i32_0 = arith.constant 0 : i32
    %c0_i32_1 = arith.constant 0 : i32
    return %c0_i32, %c0_i32_0 : i32, i32
  }
  func.func @transform_5(%arg0: i32) -> (i32, i32) {
    %c0_i32 = arith.constant 0 : i32
    %c0_i32_0 = arith.constant 0 : i32
    %c0_i32_1 = arith.constant 0 : i32
    return %c0_i32, %c0_i32_0 : i32, i32
  }
  func.func @transform_6(%arg0: i32) -> (i32, i32, i32) {
    %c0_i32 = arith.constant 0 : i32
    %c0_i32_0 = arith.constant 0 : i32
    %c0_i32_1 = arith.constant 0 : i32
    return %arg0, %c0_i32, %c0_i32_0 : i32, i32, i32
  }
}

</mosaic_0001>

<llo_original>
// kernel: tpu_custom_call.1
$region0: #{tpu_custom_call.1}
  #allocation0 [shape = 'u32[]', space=smem, size = 0x4, offset = 0x4, fixed_abs, tag = 'smem constant byte address 0x4 - core index']
  #allocation1 [shape = 'u32[144,128]{1,0:T(1,128)}', space=vmem, size = 0x12000, scoped, tag = 'internal scratch']
  #allocation2 [shape = 'f32[96,256]{1,0:T(8,128)}', space=vmem, size = 0x18000, scoped, tag = 'scratch operand']
  #allocation3 [shape = 'f32[32,256]{1,0:T(8,128)}', space=vmem, size = 0x8000, scoped, tag = 'scratch operand']
  %s0 = inlined_call_operand.vmem [shape: f32[2,32,256], index: 0, kind: input, shape index: {}]
  %s1 = inlined_call_operand.vmem [shape: f32[32,32], index: 1, kind: input, shape index: {}]
  %s2 = inlined_call_operand.vmem [shape: f32[96,32], index: 2, kind: input, shape index: {}]
  %s3 = inlined_call_operand.vmem [shape: f32[96,1], index: 3, kind: input, shape index: {}]
  %s4 = inlined_call_operand.vmem [shape: f32[32,32], index: 4, kind: input, shape index: {}]
  %s5 = inlined_call_operand.vmem [shape: f32[32,1], index: 5, kind: input, shape index: {}]
  %s6 = inlined_call_operand.hbm [shape: f32[2,32,256], index: 6, kind: output, shape index: {}]
  %s7 = sld [smem:[#allocation0]]
  $region57: #{tpu_custom_call.1} parent=0
    _
  %s9 = ssub.s32 1, %s7
  %s10 = scalar_select 0, %s9, %s7
  $region1: #{tpu_custom_call.1} parent=0
    #allocation4 [shape = 'u8[65536]{0}', space=vmem, size = 0x10000, scoped, tag = 'output window, operand 0']
    #allocation5 [shape = 's32[2]{0}', space=sflag, size = 0x8, scoped, tag = 'scoped memory for tpu_custom_call.1']
    %11 = vsyncpa [#allocation5], 0
    %s12 = scalar_lea.sflag [#allocation5], 1
    %13 = vsyncpa %s12, 0
    loop: start=0, step=1, limit=4
    $region2: #{tpu_custom_call.1} parent=1 // loop_pre_header
      _
    $region3: #{tpu_custom_call.1} parent=1 // loop_header
      %s15 = sphi 0, %s19
      %p16 = scmp.ge.s32.totalorder %s15, 4
      %s25 = sphi 0, %s27
      %s28 = sphi 0, %s25
      %s29 = sphi 0, %s28
      %s45 = sphi 0, %s29
      %s49 = sphi 0, %s49
      %s51 = sphi 0, %s49
      %s52 = sphi 0, %s51
      %s66 = sphi 0, %s52
      %s70 = sphi 0, %s70
      %s72 = sphi 0, %s70
      %s73 = sphi 0, %s72
      %s87 = sphi 0, %s73
      %s91 = sphi 0, %s91
      %s93 = sphi 0, %s91
      %s94 = sphi 0, %s93
      %s108 = sphi 0, %s94
      %s112 = sphi 0, %s112
      %s114 = sphi 0, %s112
      %s115 = sphi 0, %s114
      %s129 = sphi 0, %s115
      %s133 = sphi 0, %s133
      %s135 = sphi 0, %s133
      %s136 = sphi 0, %s135
      %s150 = sphi 0, %s136
      %s156 = sphi 0, %s158
      %s159 = sphi 0, %s156
      %s160 = sphi 0, %s159
      %s176 = sphi 0, %s160
    $region4: #{tpu_custom_call.1} parent=1 // loop_header_branch
      %18 = sbr.rel (%p16) target = $region8
    $region5: #{tpu_custom_call.1} parent=1 // loop_body
      %s20 = ssub.s32 %s15, 1
      %s21 = ssub.s32 %s15, 2
      %s22 = sadd.s32 %s15, 1
      %s23 = ssub.s32 %s15, %s22
      %p24 = scmp.eq.s32.totalorder %s23, 0
      %s26 = sadd.s32 %s25, 1
      %s27 = scalar_select %p24, %s25, %s26
      %p30 = pneg %p24
      %p31 = scmp.eq.s32.totalorder %s15, 1
      %p32 = por %p30, %p31
      %p33 = scmp.ne.s32.totalorder %s25, %s28
      %p34 = scmp.eq.s32.totalorder %s15, 0
      %p35 = por %p33, %p34
      %p36 = scmp.ne.s32.totalorder %s25, %s28
      %p37 = scmp.eq.s32.totalorder %s20, 1
      %p38 = por %p36, %p37
      %p39 = scmp.ne.s32.totalorder %s28, %s29
      %p40 = scmp.eq.s32.totalorder %s20, 0
      %p41 = por %p39, %p40
      %p42 = scmp.ne.s32.totalorder %s28, %s29
      %p43 = scmp.eq.s32.totalorder %s21, 1
      %p44 = por %p42, %p43
      %p46 = scmp.ne.s32.totalorder %s29, %s45
      %p47 = scmp.eq.s32.totalorder %s21, 0
      %p48 = por %p46, %p47
      %s50 = sadd.s32 %s49, 1
      %p53 = scmp.eq.s32.totalorder %s15, 1
      %p54 = scmp.ne.s32.totalorder %s49, %s51
      %p55 = scmp.eq.s32.totalorder %s15, 0
      %p56 = por %p54, %p55
      %p57 = scmp.ne.s32.totalorder %s49, %s51
      %p58 = scmp.eq.s32.totalorder %s20, 1
      %p59 = por %p57, %p58
      %p60 = scmp.ne.s32.totalorder %s51, %s52
      %p61 = scmp.eq.s32.totalorder %s20, 0
      %p62 = por %p60, %p61
      %p63 = scmp.ne.s32.totalorder %s51, %s52
      %p64 = scmp.eq.s32.totalorder %s21, 1
      %p65 = por %p63, %p64
      %p67 = scmp.ne.s32.totalorder %s52, %s66
      %p68 = scmp.eq.s32.totalorder %s21, 0
      %p69 = por %p67, %p68
      %s71 = sadd.s32 %s70, 1
      %p74 = scmp.eq.s32.totalorder %s15, 1
      %p75 = scmp.ne.s32.totalorder %s70, %s72
      %p76 = scmp.eq.s32.totalorder %s15, 0
      %p77 = por %p75, %p76
      %p78 = scmp.ne.s32.totalorder %s70, %s72
      %p79 = scmp.eq.s32.totalorder %s20, 1
      %p80 = por %p78, %p79
      %p81 = scmp.ne.s32.totalorder %s72, %s73
      %p82 = scmp.eq.s32.totalorder %s20, 0
      %p83 = por %p81, %p82
      %p84 = scmp.ne.s32.totalorder %s72, %s73
      %p85 = scmp.eq.s32.totalorder %s21, 1
      %p86 = por %p84, %p85
      %p88 = scmp.ne.s32.totalorder %s73, %s87
      %p89 = scmp.eq.s32.totalorder %s21, 0
      %p90 = por %p88, %p89
      %s92 = sadd.s32 %s91, 1
      %p95 = scmp.eq.s32.totalorder %s15, 1
      %p96 = scmp.ne.s32.totalorder %s91, %s93
      %p97 = scmp.eq.s32.totalorder %s15, 0
      %p98 = por %p96, %p97
      %p99 = scmp.ne.s32.totalorder %s91, %s93
      %p100 = scmp.eq.s32.totalorder %s20, 1
      %p101 = por %p99, %p100
      %p102 = scmp.ne.s32.totalorder %s93, %s94
      %p103 = scmp.eq.s32.totalorder %s20, 0
      %p104 = por %p102, %p103
      %p105 = scmp.ne.s32.totalorder %s93, %s94
      %p106 = scmp.eq.s32.totalorder %s21, 1
      %p107 = por %p105, %p106
      %p109 = scmp.ne.s32.totalorder %s94, %s108
      %p110 = scmp.eq.s32.totalorder %s21, 0
      %p111 = por %p109, %p110
      %s113 = sadd.s32 %s112, 1
      %p116 = scmp.eq.s32.totalorder %s15, 1
      %p117 = scmp.ne.s32.totalorder %s112, %s114
      %p118 = scmp.eq.s32.totalorder %s15, 0
      %p119 = por %p117, %p118
      %p120 = scmp.ne.s32.totalorder %s112, %s114
      %p121 = scmp.eq.s32.totalorder %s20, 1
      %p122 = por %p120, %p121
      %p123 = scmp.ne.s32.totalorder %s114, %s115
      %p124 = scmp.eq.s32.totalorder %s20, 0
      %p125 = por %p123, %p124
      %p126 = scmp.ne.s32.totalorder %s114, %s115
      %p127 = scmp.eq.s32.totalorder %s21, 1
      %p128 = por %p126, %p127
      %p130 = scmp.ne.s32.totalorder %s115, %s129
      %p131 = scmp.eq.s32.totalorder %s21, 0
      %p132 = por %p130, %p131
      %s134 = sadd.s32 %s133, 1
      %p137 = scmp.eq.s32.totalorder %s15, 1
      %p138 = scmp.ne.s32.totalorder %s133, %s135
      %p139 = scmp.eq.s32.totalorder %s15, 0
      %p140 = por %p138, %p139
      %p141 = scmp.ne.s32.totalorder %s133, %s135
      %p142 = scmp.eq.s32.totalorder %s20, 1
      %p143 = por %p141, %p142
      %p144 = scmp.ne.s32.totalorder %s135, %s136
      %p145 = scmp.eq.s32.totalorder %s20, 0
      %p146 = por %p144, %p145
      %p147 = scmp.ne.s32.totalorder %s135, %s136
      %p148 = scmp.eq.s32.totalorder %s21, 1
      %p149 = por %p147, %p148
      %p151 = scmp.ne.s32.totalorder %s136, %s150
      %p152 = scmp.eq.s32.totalorder %s21, 0
      %p153 = por %p151, %p152
      %s154 = ssub.s32 %s15, %s22
      %p155 = scmp.eq.s32.totalorder %s154, 0
      %s157 = sadd.s32 %s156, 1
      %s158 = scalar_select %p155, %s156, %s157
      %p161 = pneg %p155
      %p162 = scmp.eq.s32.totalorder %s15, 1
      %p163 = por %p161, %p162
      %p164 = scmp.ne.s32.totalorder %s156, %s159
      %p165 = scmp.eq.s32.totalorder %s15, 0
      %p166 = por %p164, %p165
      %p167 = scmp.ne.s32.totalorder %s156, %s159
      %p168 = scmp.eq.s32.totalorder %s20, 1
      %p169 = por %p167, %p168
      %p170 = scmp.ne.s32.totalorder %s159, %s160
      %p171 = scmp.eq.s32.totalorder %s20, 0
      %p172 = por %p170, %p171
      %p173 = scmp.ne.s32.totalorder %s159, %s160
      %p174 = scmp.eq.s32.totalorder %s21, 1
      %p175 = por %p173, %p174
      %p177 = scmp.ne.s32.totalorder %s160, %s176
      %p178 = scmp.eq.s32.totalorder %s21, 0
      %p179 = por %p177, %p178
      %p180 = scmp.le.s32.totalorder 1, %s15
      %p181 = scmp.lt.s32.totalorder %s15, 3
      %p182 = pnand %p180, %p181
      %p183 = pneg %p182
      // Predicated region
      $region9: #{tpu_custom_call.1} parent=5 // pred_check
        _
      $region10: #{tpu_custom_call.1} parent=5 // pred_check_branch
        %185 = sbr.rel (%p182) target = $region12
      $region11: #{tpu_custom_call.1} parent=5 // pred_region
        %s186 = ssub.s32 %s15, 1
        // Predicated region
        $region13: #{tpu_custom_call.1} parent=11 // pred_check
          %p187 = pneg %p62
        $region14: #{tpu_custom_call.1} parent=11 // pred_check_branch
          %189 = sbr.rel (%p187) target = $region16
        $region15: #{tpu_custom_call.1} parent=11 // pred_region
          _
        $region16: #{tpu_custom_call.1} parent=11 // pred_fallthru
          _
        // Predicated region
        $region17: #{tpu_custom_call.1} parent=11 // pred_check
          %p190 = pneg %p83
        $region18: #{tpu_custom_call.1} parent=11 // pred_check_branch
          %192 = sbr.rel (%p190) target = $region20
        $region19: #{tpu_custom_call.1} parent=11 // pred_region
          _
        $region20: #{tpu_custom_call.1} parent=11 // pred_fallthru
          _
        // Predicated region
        $region21: #{tpu_custom_call.1} parent=11 // pred_check
          %p193 = pneg %p104
        $region22: #{tpu_custom_call.1} parent=11 // pred_check_branch
          %195 = sbr.rel (%p193) target = $region24
        $region23: #{tpu_custom_call.1} parent=11 // pred_region
          _
        $region24: #{tpu_custom_call.1} parent=11 // pred_fallthru
          _
        // Predicated region
        $region25: #{tpu_custom_call.1} parent=11 // pred_check
          %p196 = pneg %p125
        $region26: #{tpu_custom_call.1} parent=11 // pred_check_branch
          %198 = sbr.rel (%p196) target = $region28
        $region27: #{tpu_custom_call.1} parent=11 // pred_region
          _
        $region28: #{tpu_custom_call.1} parent=11 // pred_fallthru
          _
        // Predicated region
        $region29: #{tpu_custom_call.1} parent=11 // pred_check
          %p199 = pneg %p146
        $region30: #{tpu_custom_call.1} parent=11 // pred_check_branch
          %201 = sbr.rel (%p199) target = $region32
        $region31: #{tpu_custom_call.1} parent=11 // pred_region
          _
        $region32: #{tpu_custom_call.1} parent=11 // pred_fallthru
          _
      $region12: #{tpu_custom_call.1} parent=5 // pred_fallthru
        _
      %p202 = scmp.lt.s32.totalorder %s15, 2
      // Predicated region
      $region33: #{tpu_custom_call.1} parent=5 // pred_check
        %p203 = pneg %p202
      $region34: #{tpu_custom_call.1} parent=5 // pred_check_branch
        %205 = sbr.rel (%p203) target = $region36
      $region35: #{tpu_custom_call.1} parent=5 // pred_region
        // Predicated region
        $region37: #{tpu_custom_call.1} parent=35 // pred_check
          %p206 = pneg %p35
        $region38: #{tpu_custom_call.1} parent=35 // pred_check_branch
          %208 = sbr.rel (%p206) target = $region40
        $region39: #{tpu_custom_call.1} parent=35 // pred_region
          %p209 = scmp.lt.s32.totalorder %s15, 1
          %s210 = scalar_select %p209, %s15, 1
          %s211 = smul.addr %s210, 8
          %s212 = smul.addr %s211, 8
          %s213 = scalar_lea.vmem %s0, %s212
        $region40: #{tpu_custom_call.1} parent=35 // pred_fallthru
          _
      $region36: #{tpu_custom_call.1} parent=5 // pred_fallthru
        _
      %p214 = scmp.le.s32.totalorder 1, %s15
      %p215 = scmp.lt.s32.totalorder %s15, 3
      %p216 = pnand %p214, %p215
      %p217 = pneg %p216
      // Predicated region
      $region41: #{tpu_custom_call.1} parent=5 // pred_check
        _
      $region42: #{tpu_custom_call.1} parent=5 // pred_check_branch
        %219 = sbr.rel (%p216) target = $region44
      $region43: #{tpu_custom_call.1} parent=5 // pred_region
        %s220 = ssub.s32 %s15, 1
        %p221 = scmp.lt.s32.totalorder %s20, 1
        %s222 = scalar_select %p221, %s20, 1
        %s223 = smul.addr %s222, 8
        %s224 = smul.addr %s223, 8
        %s225 = scalar_lea.vmem %s0, %s224
        %p226 = pneg %p41
        %p227 = pneg %p38
        %p228 = pneg %p62
        %p229 = pneg %p59
        %p230 = pneg %p83
        %p231 = pneg %p80
        %p232 = pneg %p104
        %p233 = pneg %p101
        %p234 = pneg %p125
        %p235 = pneg %p122
        %p236 = pneg %p146
        %p237 = pneg %p143
        %p238 = pneg %p172
        %p239 = pneg %p169
        %s240 = sand.u32 %s159, 1
        %s241 = scalar_lea.sflag [#allocation5], %s240
        %s242 = sand.u32 %s159, 1
        %s243 = smul.addr %s242, 64
        %s244 = scalar_lea.vmem [#allocation4], %s243
        %p245 = scmp.lt.s32.totalorder %s20, 1
        %s246 = scalar_select %p245, %s20, 1
        %s247 = smul.addr %s246, 8
        %s248 = smul.addr %s247, 8
        %s249 = scalar_lea.vmem %s0, %s248
        %v250 = vld [vmem:[%s249] sm:$0xff]
        %v251 = vld [vmem:[%s249 + $0x8] sm:$0xff]
        %v252 = vld [vmem:[%s249 + $0x10] sm:$0xff]
        %v253 = vld [vmem:[%s249 + $0x18] sm:$0xff]
        %v254 = vld [vmem:[%s249 + $0x20] sm:$0xff]
        %v255 = vld [vmem:[%s249 + $0x28] sm:$0xff]
        %v256 = vld [vmem:[%s249 + $0x30] sm:$0xff]
        %v257 = vld [vmem:[%s249 + $0x38] sm:$0xff]
        %v258 = vadd.f32 %v250, %v251
        %259 = vadd.xlane.f32.xlu0 %v258
        %v260 = vpop.xlane.xlu0 %259
        %v261 = vadd.f32 %v252, %v253
        %262 = vadd.xlane.f32.xlu0 %v261
        %v263 = vpop.xlane.xlu0 %262
        %v264 = vadd.f32 %v254, %v255
        %265 = vadd.xlane.f32.xlu0 %v264
        %v266 = vpop.xlane.xlu0 %265
        %v267 = vadd.f32 %v256, %v257
        %268 = vadd.xlane.f32.xlu0 %v267
        %v269 = vpop.xlane.xlu0 %268
        %v270 = vmul.f32 %v250, %v250
        %v271 = vmul.f32 %v251, %v251
        %v272 = vmul.f32 %v252, %v252
        %v273 = vmul.f32 %v253, %v253
        %v274 = vmul.f32 %v254, %v254
        %v275 = vmul.f32 %v255, %v255
        %v276 = vmul.f32 %v256, %v256
        %v277 = vmul.f32 %v257, %v257
        %v278 = vadd.f32 %v270, %v271
        %279 = vadd.xlane.f32.xlu0 %v278
        %v280 = vpop.xlane.xlu0 %279
        %v281 = vadd.f32 %v272, %v273
        %282 = vadd.xlane.f32.xlu0 %v281
        %v283 = vpop.xlane.xlu0 %282
        %v284 = vadd.f32 %v274, %v275
        %285 = vadd.xlane.f32.xlu0 %v284
        %v286 = vpop.xlane.xlu0 %285
        %v287 = vadd.f32 %v276, %v277
        %288 = vadd.xlane.f32.xlu0 %v287
        %v289 = vpop.xlane.xlu0 %288
        %vm290 = vcmask 7168
        %v291 = vsel %vm290, %v260, %v280
        %v292 = vsel %vm290, %v263, %v283
        %v293 = vsel %vm290, %v266, %v286
        %v294 = vsel %vm290, %v269, %v289
        %v295 = vld [vmem:[%s1] sm:$0xff]
        %v296 = vld [vmem:[%s1 + $0x8] sm:$0xff]
        %v297 = vld [vmem:[%s1 + $0x10] sm:$0xff]
        %v298 = vld [vmem:[%s1 + $0x18] sm:$0xff]
        %vm299 = vcmask 261120
        %v301 = vsel %vm299, %v295, 0
        %v304 = vsel %vm299, %v296, 0
        %v307 = vsel %vm299, %v297, 0
        %v310 = vsel %vm299, %v298, 0
        %312 = vmatprep.subr.mxu0 0.0
        %313 = vmatpush1.msra.mxu0 %v291
        %314 = vmatprep.subr.mxu0 0.0
        %315 = vmatpush1.msra.mxu0 %v292
        %316 = vmatprep.subr.mxu0 0.0
        %317 = vmatpush1.msra.mxu0 %v293
        %318 = vmatprep.subr.mxu0 0.0
        %319 = vmatpush1.msra.mxu0 %v294
        %320 = vmatprep.subr.mxu0 0.0
        %321 = vmatpush1.msra.mxu0 0.0
        %322 = vmatprep.subr.mxu0 0.0
        %323 = vmatpush1.msra.mxu0 0.0
        %324 = vmatprep.subr.mxu0 0.0
        %325 = vmatpush1.msra.mxu0 0.0
        %326 = vmatprep.subr.mxu0 0.0
        %327 = vmatpush1.msra.mxu0 0.0
        %328 = vmatprep.subr.mxu0 0.0
        %329 = vmatpush1.msra.mxu0 0.0
        %330 = vmatprep.subr.mxu0 0.0
        %331 = vmatpush1.msra.mxu0 0.0
        %332 = vmatprep.subr.mxu0 0.0
        %333 = vmatpush1.msra.mxu0 0.0
        %334 = vmatprep.subr.mxu0 0.0
        %335 = vmatpush1.msra.mxu0 0.0
        %336 = vmatprep.subr.mxu0 0.0
        %337 = vmatpush1.msra.mxu0 0.0
        %338 = vmatprep.subr.mxu0 0.0
        %339 = vmatpush1.msra.mxu0 0.0
        %340 = vmatprep.subr.mxu0 0.0
        %341 = vmatpush1.msra.mxu0 0.0
        %342 = vmatprep.subr.mxu0 0.0
        %343 = vmatpush1.msra.mxu0 0.0
        %344 = vmatprep.subr.mxu0 0.0
        %345 = vmatpush1.msra.mxu0 0.0
        %346 = vmatprep.subr.mxu0 0.0
        %347 = vmatpush1.msra.mxu0 0.0
        %348 = vmatprep.subr.mxu0 0.0
        %349 = vmatpush1.msra.mxu0 0.0
        %350 = vmatprep.subr.mxu0 0.0
        %351 = vmatpush1.msra.mxu0 0.0
        %352 = vmatprep.subr.mxu0 0.0
        %353 = vmatpush1.msra.mxu0 0.0
        %354 = vmatprep.subr.mxu0 0.0
        %355 = vmatpush1.msra.mxu0 0.0
        %356 = vmatprep.subr.mxu0 0.0
        %357 = vmatpush1.msra.mxu0 0.0
        %358 = vmatprep.subr.mxu0 0.0
        %359 = vmatpush1.msra.mxu0 0.0
        %360 = vmatprep.subr.mxu0 0.0
        %361 = vmatpush1.msra.mxu0 0.0
        %362 = vmatprep.subr.mxu0 0.0
        %363 = vmatpush1.msra.mxu0 0.0
        %364 = vmatprep.subr.mxu0 0.0
        %365 = vmatpush1.msra.mxu0 0.0
        %366 = vmatprep.subr.mxu0 0.0
        %367 = vmatpush1.msra.mxu0 0.0
        %368 = vmatprep.subr.mxu0 0.0
        %369 = vmatpush1.msra.mxu0 0.0
        %370 = vmatprep.subr.mxu0 0.0
        %371 = vmatpush1.msra.mxu0 0.0
        %372 = vmatprep.subr.mxu0 0.0
        %373 = vmatpush1.msra.mxu0 0.0
        %374 = vmatprep.subr.mxu0 0.0
        %375 = vmatpush1.msra.mxu0 0.0
        %376 = vmatprep.mubr.f32.mxu0 0.0
        %377 = vmatmul.mubr.f32.gmra.mrb[0].mxu0 %v301
        %v378 = vpop.f32.mrb[0].mxu0
        %v379 = vadd.f32 0.0, %v378
        %v380 = vpop.f32.mrb[0].mxu0
        %381 = vmatprep.mubr.f32.mxu0 0.0
        %382 = vmatmul.mubr.f32.gmra.mrb[0].mxu0 %v304
        %v383 = vpop.f32.mrb[0].mxu0
        %v384 = vadd.f32 0.0, %v383
        %v385 = vpop.f32.mrb[0].mxu0
        %386 = vmatprep.mubr.f32.mxu0 0.0
        %387 = vmatmul.mubr.f32.gmra.mrb[0].mxu0 %v307
        %v388 = vpop.f32.mrb[0].mxu0
        %v389 = vadd.f32 0.0, %v388
        %v390 = vpop.f32.mrb[0].mxu0
        %391 = vmatprep.mubr.f32.mxu0 0.0
        %392 = vmatmul.mubr.f32.gmra.mrb[0].mxu0 %v310
        %v393 = vpop.f32.mrb[0].mxu0
        %v394 = vadd.f32 0.0, %v393
        %v395 = vpop.f32.mrb[0].mxu0
        %396 = vdwg.mxu0
        %v397 = vmul.f32 %v379, %v379
        %v398 = vmul.f32 %v384, %v384
        %v399 = vmul.f32 %v389, %v389
        %v400 = vmul.f32 %v394, %v394
        %405 = vrot.lane.b32.xlu0 %v397, 1
        %v406 = vpop.permute.xlu0 %405
        %407 = vrot.lane.b32.xlu0 %v398, 1
        %v408 = vpop.permute.xlu0 %407
        %409 = vrot.lane.b32.xlu0 %v399, 1
        %v410 = vpop.permute.xlu0 %409
        %411 = vrot.lane.b32.xlu0 %v400, 1
        %v412 = vpop.permute.xlu0 %411
        %v417 = vsub.f32 %v379, %v406
        %v418 = vsub.f32 %v384, %v408
        %v419 = vsub.f32 %v389, %v410
        %v420 = vsub.f32 %v394, %v412
        %v421 = vadd.f32 %v417, 1e-05
        %v422 = vadd.f32 %v418, 1e-05
        %v423 = vadd.f32 %v419, 1e-05
        %v424 = vadd.f32 %v420, 1e-05
        %v425 = vrsqrt.pop %v421
        %v426 = vrsqrt.pop %v422
        %v427 = vrsqrt.pop %v423
        %v428 = vrsqrt.pop %v424
        %433 = vrot.lane.b32.xlu0 %v425, 127
        %v434 = vpop.permute.xlu0 %433
        %435 = vrot.lane.b32.xlu0 %v426, 127
        %v436 = vpop.permute.xlu0 %435
        %437 = vrot.lane.b32.xlu0 %v427, 127
        %v438 = vpop.permute.xlu0 %437
        %439 = vrot.lane.b32.xlu0 %v428, 127
        %v440 = vpop.permute.xlu0 %439
        %v445 = vmul.f32 %v379, %v434
        %v446 = vmul.f32 %v384, %v436
        %v447 = vmul.f32 %v389, %v438
        %v448 = vmul.f32 %v394, %v440
        %v449 = vsub.f32 0.0, %v445
        %v450 = vsub.f32 0.0, %v446
        %v451 = vsub.f32 0.0, %v447
        %v452 = vsub.f32 0.0, %v448
        %453 = vset.pattern.permute.xlu0 1
        %454 = vperm.xlu0 %453, %v425
        %v455 = vpop.permute.xlu0 %454
        %457 = vset.pattern.permute.xlu0 1
        %458 = vperm.xlu0 %457, %v426
        %v459 = vpop.permute.xlu0 %458
        %461 = vset.pattern.permute.xlu0 1
        %462 = vperm.xlu0 %461, %v427
        %v463 = vpop.permute.xlu0 %462
        %465 = vset.pattern.permute.xlu0 1
        %466 = vperm.xlu0 %465, %v428
        %v467 = vpop.permute.xlu0 %466
        %v469 = vmul.f32 %v250, %v455
        %v470 = vmul.f32 %v251, %v455
        %v471 = vmul.f32 %v252, %v459
        %v472 = vmul.f32 %v253, %v459
        %v473 = vmul.f32 %v254, %v463
        %v474 = vmul.f32 %v255, %v463
        %v475 = vmul.f32 %v256, %v467
        %v476 = vmul.f32 %v257, %v467
        %478 = vset.pattern.permute.xlu0 0
        %479 = vperm.xlu0 %478, %v449
        %v480 = vpop.permute.xlu0 %479
        %483 = vset.pattern.permute.xlu0 0
        %484 = vperm.xlu0 %483, %v450
        %v485 = vpop.permute.xlu0 %484
        %488 = vset.pattern.permute.xlu0 0
        %489 = vperm.xlu0 %488, %v451
        %v490 = vpop.permute.xlu0 %489
        %493 = vset.pattern.permute.xlu0 0
        %494 = vperm.xlu0 %493, %v452
        %v495 = vpop.permute.xlu0 %494
        %v497 = vadd.f32 %v469, %v480
        %v498 = vadd.f32 %v470, %v480
        %v499 = vadd.f32 %v471, %v485
        %v500 = vadd.f32 %v472, %v485
        %v501 = vadd.f32 %v473, %v490
        %v502 = vadd.f32 %v474, %v490
        %v503 = vadd.f32 %v475, %v495
        %v504 = vadd.f32 %v476, %v495
        %v505 = vld [vmem:[%s2] sm:$0xff]
        %v506 = vld [vmem:[%s2 + $0x8] sm:$0xff]
        %v507 = vld [vmem:[%s2 + $0x10] sm:$0xff]
        %v508 = vld [vmem:[%s2 + $0x18] sm:$0xff]
        %v509 = vld [vmem:[%s2 + $0x20] sm:$0xff]
        %v510 = vld [vmem:[%s2 + $0x28] sm:$0xff]
        %v511 = vld [vmem:[%s2 + $0x30] sm:$0xff]
        %v512 = vld [vmem:[%s2 + $0x38] sm:$0xff]
        %v513 = vld [vmem:[%s2 + $0x40] sm:$0xff]
        %v514 = vld [vmem:[%s2 + $0x48] sm:$0xff]
        %v515 = vld [vmem:[%s2 + $0x50] sm:$0xff]
        %v516 = vld [vmem:[%s2 + $0x58] sm:$0xff]
        %v517 = vld [vmem:[%s3] sm:$0xff]
        %v518 = vld [vmem:[%s3 + $0x8] sm:$0xff]
        %v519 = vld [vmem:[%s3 + $0x10] sm:$0xff]
        %v520 = vld [vmem:[%s3 + $0x18] sm:$0xff]
        %v521 = vld [vmem:[%s3 + $0x20] sm:$0xff]
        %v522 = vld [vmem:[%s3 + $0x28] sm:$0xff]
        %v523 = vld [vmem:[%s3 + $0x30] sm:$0xff]
        %v524 = vld [vmem:[%s3 + $0x38] sm:$0xff]
        %v525 = vld [vmem:[%s3 + $0x40] sm:$0xff]
        %v526 = vld [vmem:[%s3 + $0x48] sm:$0xff]
        %v527 = vld [vmem:[%s3 + $0x50] sm:$0xff]
        %v528 = vld [vmem:[%s3 + $0x58] sm:$0xff]
        %530 = vset.pattern.permute.xlu0 0
        %531 = vperm.xlu0 %530, %v517
        %v532 = vpop.permute.xlu0 %531
        %535 = vset.pattern.permute.xlu0 0
        %536 = vperm.xlu0 %535, %v518
        %v537 = vpop.permute.xlu0 %536
        %540 = vset.pattern.permute.xlu0 0
        %541 = vperm.xlu0 %540, %v519
        %v542 = vpop.permute.xlu0 %541
        %545 = vset.pattern.permute.xlu0 0
        %546 = vperm.xlu0 %545, %v520
        %v547 = vpop.permute.xlu0 %546
        %550 = vset.pattern.permute.xlu0 0
        %551 = vperm.xlu0 %550, %v521
        %v552 = vpop.permute.xlu0 %551
        %555 = vset.pattern.permute.xlu0 0
        %556 = vperm.xlu0 %555, %v522
        %v557 = vpop.permute.xlu0 %556
        %560 = vset.pattern.permute.xlu0 0
        %561 = vperm.xlu0 %560, %v523
        %v562 = vpop.permute.xlu0 %561
        %565 = vset.pattern.permute.xlu0 0
        %566 = vperm.xlu0 %565, %v524
        %v567 = vpop.permute.xlu0 %566
        %570 = vset.pattern.permute.xlu0 0
        %571 = vperm.xlu0 %570, %v525
        %v572 = vpop.permute.xlu0 %571
        %575 = vset.pattern.permute.xlu0 0
        %576 = vperm.xlu0 %575, %v526
        %v577 = vpop.permute.xlu0 %576
        %580 = vset.pattern.permute.xlu0 0
        %581 = vperm.xlu0 %580, %v527
        %v582 = vpop.permute.xlu0 %581
        %585 = vset.pattern.permute.xlu0 0
        %586 = vperm.xlu0 %585, %v528
        %v587 = vpop.permute.xlu0 %586
        %v590 = vsel %vm299, %v505, 0
        %v593 = vsel %vm299, %v506, 0
        %v596 = vsel %vm299, %v507, 0
        %v599 = vsel %vm299, %v508, 0
        %v602 = vsel %vm299, %v509, 0
        %v605 = vsel %vm299, %v510, 0
        %v608 = vsel %vm299, %v511, 0
        %v611 = vsel %vm299, %v512, 0
        %v614 = vsel %vm299, %v513, 0
        %v617 = vsel %vm299, %v514, 0
        %v620 = vsel %vm299, %v515, 0
        %v623 = vsel %vm299, %v516, 0
        %625 = vmatprep.subr.mxu0 %v498
        %626 = vmatpush1.msra.mxu0 %v497
        %627 = vmatprep.subr.mxu0 %v500
        %628 = vmatpush1.msra.mxu0 %v499
        %629 = vmatprep.subr.mxu0 %v502
        %630 = vmatpush1.msra.mxu0 %v501
        %631 = vmatprep.subr.mxu0 %v504
        %632 = vmatpush1.msra.mxu0 %v503
        %633 = vmatprep.subr.mxu0 0.0
        %634 = vmatpush1.msra.mxu0 0.0
        %635 = vmatprep.subr.mxu0 0.0
        %636 = vmatpush1.msra.mxu0 0.0
        %637 = vmatprep.subr.mxu0 0.0
        %638 = vmatpush1.msra.mxu0 0.0
        %639 = vmatprep.subr.mxu0 0.0
        %640 = vmatpush1.msra.mxu0 0.0
        %641 = vmatprep.subr.mxu0 0.0
        %642 = vmatpush1.msra.mxu0 0.0
        %643 = vmatprep.subr.mxu0 0.0
        %644 = vmatpush1.msra.mxu0 0.0
        %645 = vmatprep.subr.mxu0 0.0
        %646 = vmatpush1.msra.mxu0 0.0
        %647 = vmatprep.subr.mxu0 0.0
        %648 = vmatpush1.msra.mxu0 0.0
        %649 = vmatprep.subr.mxu0 0.0
        %650 = vmatpush1.msra.mxu0 0.0
        %651 = vmatprep.subr.mxu0 0.0
        %652 = vmatpush1.msra.mxu0 0.0
        %653 = vmatprep.subr.mxu0 0.0
        %654 = vmatpush1.msra.mxu0 0.0
        %655 = vmatprep.subr.mxu0 0.0
        %656 = vmatpush1.msra.mxu0 0.0
        %657 = vmatprep.subr.mxu0 0.0
        %658 = vmatpush1.msra.mxu0 0.0
        %659 = vmatprep.subr.mxu0 0.0
        %660 = vmatpush1.msra.mxu0 0.0
        %661 = vmatprep.subr.mxu0 0.0
        %662 = vmatpush1.msra.mxu0 0.0
        %663 = vmatprep.subr.mxu0 0.0
        %664 = vmatpush1.msra.mxu0 0.0
        %665 = vmatprep.subr.mxu0 0.0
        %666 = vmatpush1.msra.mxu0 0.0
        %667 = vmatprep.subr.mxu0 0.0
        %668 = vmatpush1.msra.mxu0 0.0
        %669 = vmatprep.subr.mxu0 0.0
        %670 = vmatpush1.msra.mxu0 0.0
        %671 = vmatprep.subr.mxu0 0.0
        %672 = vmatpush1.msra.mxu0 0.0
        %673 = vmatprep.subr.mxu0 0.0
        %674 = vmatpush1.msra.mxu0 0.0
        %675 = vmatprep.subr.mxu0 0.0
        %676 = vmatpush1.msra.mxu0 0.0
        %677 = vmatprep.subr.mxu0 0.0
        %678 = vmatpush1.msra.mxu0 0.0
        %679 = vmatprep.subr.mxu0 0.0
        %680 = vmatpush1.msra.mxu0 0.0
        %681 = vmatprep.subr.mxu0 0.0
        %682 = vmatpush1.msra.mxu0 0.0
        %683 = vmatprep.subr.mxu0 0.0
        %684 = vmatpush1.msra.mxu0 0.0
        %685 = vmatprep.subr.mxu0 0.0
        %686 = vmatpush1.msra.mxu0 0.0
        %687 = vmatprep.subr.mxu0 0.0
        %688 = vmatpush1.msra.mxu0 0.0
        %689 = vmatprep.mubr.f32.mxu0 0.0
        %690 = vmatmul.mubr.f32.gmra.mrb[0].mxu0 %v590
        %v691 = vpop.f32.mrb[0].mxu0
        %v692 = vadd.f32 %v532, %v691
        %v693 = vpop.f32.mrb[0].mxu0
        %v694 = vadd.f32 %v532, %v693
        %695 = vmatprep.mubr.f32.mxu0 0.0
        %696 = vmatmul.mubr.f32.gmra.mrb[0].mxu0 %v593
        %v697 = vpop.f32.mrb[0].mxu0
        %v698 = vadd.f32 %v537, %v697
        %v699 = vpop.f32.mrb[0].mxu0
        %v700 = vadd.f32 %v537, %v699
        %701 = vmatprep.mubr.f32.mxu0 0.0
        %702 = vmatmul.mubr.f32.gmra.mrb[0].mxu0 %v596
        %v703 = vpop.f32.mrb[0].mxu0
        %v704 = vadd.f32 %v542, %v703
        %v705 = vpop.f32.mrb[0].mxu0
        %v706 = vadd.f32 %v542, %v705
        %707 = vmatprep.mubr.f32.mxu0 0.0
        %708 = vmatmul.mubr.f32.gmra.mrb[0].mxu0 %v599
        %v709 = vpop.f32.mrb[0].mxu0
        %v710 = vadd.f32 %v547, %v709
        %v711 = vpop.f32.mrb[0].mxu0
        %v712 = vadd.f32 %v547, %v711
        %713 = vmatprep.mubr.f32.mxu0 0.0
        %714 = vmatmul.mubr.f32.gmra.mrb[0].mxu0 %v602
        %v715 = vpop.f32.mrb[0].mxu0
        %v716 = vadd.f32 %v552, %v715
        %v717 = vpop.f32.mrb[0].mxu0
        %v718 = vadd.f32 %v552, %v717
        %719 = vmatprep.mubr.f32.mxu0 0.0
        %720 = vmatmul.mubr.f32.gmra.mrb[0].mxu0 %v605
        %v721 = vpop.f32.mrb[0].mxu0
        %v722 = vadd.f32 %v557, %v721
        %v723 = vpop.f32.mrb[0].mxu0
        %v724 = vadd.f32 %v557, %v723
        %725 = vmatprep.mubr.f32.mxu0 0.0
        %726 = vmatmul.mubr.f32.gmra.mrb[0].mxu0 %v608
        %v727 = vpop.f32.mrb[0].mxu0
        %v728 = vadd.f32 %v562, %v727
        %v729 = vpop.f32.mrb[0].mxu0
        %v730 = vadd.f32 %v562, %v729
        %731 = vmatprep.mubr.f32.mxu0 0.0
        %732 = vmatmul.mubr.f32.gmra.mrb[0].mxu0 %v611
        %v733 = vpop.f32.mrb[0].mxu0
        %v734 = vadd.f32 %v567, %v733
        %v735 = vpop.f32.mrb[0].mxu0
        %v736 = vadd.f32 %v567, %v735
        %737 = vmatprep.mubr.f32.mxu0 0.0
        %738 = vmatmul.mubr.f32.gmra.mrb[0].mxu0 %v614
        %v739 = vpop.f32.mrb[0].mxu0
        %v740 = vadd.f32 %v572, %v739
        %v741 = vpop.f32.mrb[0].mxu0
        %v742 = vadd.f32 %v572, %v741
        %743 = vmatprep.mubr.f32.mxu0 0.0
        %744 = vmatmul.mubr.f32.gmra.mrb[0].mxu0 %v617
        %v745 = vpop.f32.mrb[0].mxu0
        %v746 = vadd.f32 %v577, %v745
        %v747 = vpop.f32.mrb[0].mxu0
        %v748 = vadd.f32 %v577, %v747
        %749 = vmatprep.mubr.f32.mxu0 0.0
        %750 = vmatmul.mubr.f32.gmra.mrb[0].mxu0 %v620
        %v751 = vpop.f32.mrb[0].mxu0
        %v752 = vadd.f32 %v582, %v751
        %v753 = vpop.f32.mrb[0].mxu0
        %v754 = vadd.f32 %v582, %v753
        %755 = vmatprep.mubr.f32.mxu0 0.0
        %756 = vmatmul.mubr.f32.gmra.mrb[0].mxu0 %v623
        %v757 = vpop.f32.mrb[0].mxu0
        %v758 = vadd.f32 %v587, %v757
        %v759 = vpop.f32.mrb[0].mxu0
        %v760 = vadd.f32 %v587, %v759
        %761 = vdwg.mxu0
        %762 = vst [vmem:[#allocation2] sm:$0xff] %v692
        %763 = vst [vmem:[#allocation2 + $0x8] sm:$0xff] %v694
        %764 = vst [vmem:[#allocation2 + $0x10] sm:$0xff] %v698
        %765 = vst [vmem:[#allocation2 + $0x18] sm:$0xff] %v700
        %766 = vst [vmem:[#allocation2 + $0x20] sm:$0xff] %v704
        %767 = vst [vmem:[#allocation2 + $0x28] sm:$0xff] %v706
        %768 = vst [vmem:[#allocation2 + $0x30] sm:$0xff] %v710
        %769 = vst [vmem:[#allocation2 + $0x38] sm:$0xff] %v712
        %770 = vst [vmem:[#allocation2 + $0x40] sm:$0xff] %v716
        %771 = vst [vmem:[#allocation2 + $0x48] sm:$0xff] %v718
        %772 = vst [vmem:[#allocation2 + $0x50] sm:$0xff] %v722
        %773 = vst [vmem:[#allocation2 + $0x58] sm:$0xff] %v724
        %774 = vst [vmem:[#allocation2 + $0x60] sm:$0xff] %v728
        %775 = vst [vmem:[#allocation2 + $0x68] sm:$0xff] %v730
        %776 = vst [vmem:[#allocation2 + $0x70] sm:$0xff] %v734
        %777 = vst [vmem:[#allocation2 + $0x78] sm:$0xff] %v736
        %778 = vst [vmem:[#allocation2 + $0x80] sm:$0xff] %v740
        %779 = vst [vmem:[#allocation2 + $0x88] sm:$0xff] %v742
        %780 = vst [vmem:[#allocation2 + $0x90] sm:$0xff] %v746
        %781 = vst [vmem:[#allocation2 + $0x98] sm:$0xff] %v748
        %782 = vst [vmem:[#allocation2 + $0xa0] sm:$0xff] %v752
        %783 = vst [vmem:[#allocation2 + $0xa8] sm:$0xff] %v754
        %784 = vst [vmem:[#allocation2 + $0xb0] sm:$0xff] %v758
        %785 = vst [vmem:[#allocation2 + $0xb8] sm:$0xff] %v760
        %v786 = vld [vmem:[#allocation2 + $0x40] sm:$0xff]
        %v787 = vld [vmem:[#allocation2 + $0x48] sm:$0xff]
        %v788 = vld [vmem:[#allocation2 + $0x50] sm:$0xff]
        %v789 = vld [vmem:[#allocation2 + $0x58] sm:$0xff]
        %v790 = vld [vmem:[#allocation2 + $0x80] sm:$0xff]
        %v791 = vld [vmem:[#allocation2 + $0x88] sm:$0xff]
        %v792 = vld [vmem:[#allocation2 + $0x90] sm:$0xff]
        %v793 = vld [vmem:[#allocation2 + $0x98] sm:$0xff]
        %v794 = vld [vmem:[#allocation2] sm:$0xff]
        %v795 = vld [vmem:[#allocation2 + $0x10] sm:$0xff]
        %796 = vxpose.xlu0.b32.start [1/16] %v786, 128
        %797 = vxpose.xlu0.b32.cont [2/16] %v788, 128
        %798 = vxpose.xlu0.b32.cont [3/16] 0.0, 128
        %799 = vxpose.xlu0.b32.cont [4/16] 0.0, 128
        %800 = vxpose.xlu0.b32.cont [5/16] 0.0, 128
        %801 = vxpose.xlu0.b32.cont [6/16] 0.0, 128
        %802 = vxpose.xlu0.b32.cont [7/16] 0.0, 128
        %803 = vxpose.xlu0.b32.cont [8/16] 0.0, 128
        %804 = vxpose.xlu0.b32.cont [9/16] 0.0, 128
        %805 = vxpose.xlu0.b32.cont [10/16] 0.0, 128
        %806 = vxpose.xlu0.b32.cont [11/16] 0.0, 128
        %807 = vxpose.xlu0.b32.cont [12/16] 0.0, 128
        %808 = vxpose.xlu0.b32.cont [13/16] 0.0, 128
        %809 = vxpose.xlu0.b32.cont [14/16] 0.0, 128
        %810 = vxpose.xlu0.b32.cont [15/16] 0.0, 128
        %811 = vxpose.xlu0.b32.end [16/16] 0.0, 128
        %v812 = vpop.trf.xlu0
        %v813 = vpop.trf.xlu0
        %v814 = vpop.trf.xlu0
        %v815 = vpop.trf.xlu0
        %v816 = vpop.trf.xlu0
        %v817 = vpop.trf.xlu0
        %v818 = vpop.trf.xlu0
        %v819 = vpop.trf.xlu0
        %v820 = vpop.trf.xlu0
        %v821 = vpop.trf.xlu0
        %v822 = vpop.trf.xlu0
        %v823 = vpop.trf.xlu0
        %v824 = vpop.trf.xlu0
        %v825 = vpop.trf.xlu0
        %v826 = vpop.trf.xlu0
        %v827 = vpop.trf.xlu0
        %828 = vxpose.xlu0.b32.start [1/16] %v787, 128
        %829 = vxpose.xlu0.b32.cont [2/16] %v789, 128
        %830 = vxpose.xlu0.b32.cont [3/16] 0.0, 128
        %831 = vxpose.xlu0.b32.cont [4/16] 0.0, 128
        %832 = vxpose.xlu0.b32.cont [5/16] 0.0, 128
        %833 = vxpose.xlu0.b32.cont [6/16] 0.0, 128
        %834 = vxpose.xlu0.b32.cont [7/16] 0.0, 128
        %835 = vxpose.xlu0.b32.cont [8/16] 0.0, 128
        %836 = vxpose.xlu0.b32.cont [9/16] 0.0, 128
        %837 = vxpose.xlu0.b32.cont [10/16] 0.0, 128
        %838 = vxpose.xlu0.b32.cont [11/16] 0.0, 128
        %839 = vxpose.xlu0.b32.cont [12/16] 0.0, 128
        %840 = vxpose.xlu0.b32.cont [13/16] 0.0, 128
        %841 = vxpose.xlu0.b32.cont [14/16] 0.0, 128
        %842 = vxpose.xlu0.b32.cont [15/16] 0.0, 128
        %843 = vxpose.xlu0.b32.end [16/16] 0.0, 128
        %v844 = vpop.trf.xlu0
        %v845 = vpop.trf.xlu0
        %v846 = vpop.trf.xlu0
        %v847 = vpop.trf.xlu0
        %v848 = vpop.trf.xlu0
        %v849 = vpop.trf.xlu0
        %v850 = vpop.trf.xlu0
        %v851 = vpop.trf.xlu0
        %v852 = vpop.trf.xlu0
        %v853 = vpop.trf.xlu0
        %v854 = vpop.trf.xlu0
        %v855 = vpop.trf.xlu0
        %v856 = vpop.trf.xlu0
        %v857 = vpop.trf.xlu0
        %v858 = vpop.trf.xlu0
        %v859 = vpop.trf.xlu0
        %vm860 = vcmask 130048
        %v862 = vsel %vm860, %v812, 0
        %v865 = vsel %vm860, %v813, 0
        %v868 = vsel %vm860, %v814, 0
        %v871 = vsel %vm860, %v815, 0
        %v874 = vsel %vm860, %v816, 0
        %v877 = vsel %vm860, %v817, 0
        %v880 = vsel %vm860, %v818, 0
        %v883 = vsel %vm860, %v819, 0
        %v886 = vsel %vm860, %v820, 0
        %v889 = vsel %vm860, %v821, 0
        %v892 = vsel %vm860, %v822, 0
        %v895 = vsel %vm860, %v823, 0
        %v898 = vsel %vm860, %v824, 0
        %v901 = vsel %vm860, %v825, 0
        %v904 = vsel %vm860, %v826, 0
        %v907 = vsel %vm860, %v827, 0
        %v910 = vsel %vm860, %v844, 0
        %v913 = vsel %vm860, %v845, 0
        %v916 = vsel %vm860, %v846, 0
        %v919 = vsel %vm860, %v847, 0
        %v922 = vsel %vm860, %v848, 0
        %v925 = vsel %vm860, %v849, 0
        %v928 = vsel %vm860, %v850, 0
        %v931 = vsel %vm860, %v851, 0
        %v934 = vsel %vm860, %v852, 0
        %v937 = vsel %vm860, %v853, 0
        %v940 = vsel %vm860, %v854, 0
        %v943 = vsel %vm860, %v855, 0
        %v946 = vsel %vm860, %v856, 0
        %v949 = vsel %vm860, %v857, 0
        %v952 = vsel %vm860, %v858, 0
        %v955 = vsel %vm860, %v859, 0
        %957 = vmatprep.subr.mxu0 0.0
        %958 = vmatpush1.msra.mxu0 %v794
        %959 = vmatprep.subr.mxu0 0.0
        %960 = vmatpush1.msra.mxu0 %v795
        %961 = vmatprep.subr.mxu0 0.0
        %962 = vmatpush1.msra.mxu0 0.0
        %963 = vmatprep.subr.mxu0 0.0
        %964 = vmatpush1.msra.mxu0 0.0
        %965 = vmatprep.subr.mxu0 0.0
        %966 = vmatpush1.msra.mxu0 0.0
        %967 = vmatprep.subr.mxu0 0.0
        %968 = vmatpush1.msra.mxu0 0.0
        %969 = vmatprep.subr.mxu0 0.0
        %970 = vmatpush1.msra.mxu0 0.0
        %971 = vmatprep.subr.mxu0 0.0
        %972 = vmatpush1.msra.mxu0 0.0
        %973 = vmatprep.subr.mxu0 0.0
        %974 = vmatpush1.msra.mxu0 0.0
        %975 = vmatprep.subr.mxu0 0.0
        %976 = vmatpush1.msra.mxu0 0.0
        %977 = vmatprep.subr.mxu0 0.0
        %978 = vmatpush1.msra.mxu0 0.0
        %979 = vmatprep.subr.mxu0 0.0
        %980 = vmatpush1.msra.mxu0 0.0
        %981 = vmatprep.subr.mxu0 0.0
        %982 = vmatpush1.msra.mxu0 0.0
        %983 = vmatprep.subr.mxu0 0.0
        %984 = vmatpush1.msra.mxu0 0.0
        %985 = vmatprep.subr.mxu0 0.0
        %986 = vmatpush1.msra.mxu0 0.0
        %987 = vmatprep.subr.mxu0 0.0
        %988 = vmatpush1.msra.mxu0 0.0
        %989 = vmatprep.subr.mxu0 0.0
        %990 = vmatpush1.msra.mxu0 0.0
        %991 = vmatprep.subr.mxu0 0.0
        %992 = vmatpush1.msra.mxu0 0.0
        %993 = vmatprep.subr.mxu0 0.0
        %994 = vmatpush1.msra.mxu0 0.0
        %995 = vmatprep.subr.mxu0 0.0
        %996 = vmatpush1.msra.mxu0 0.0
        %997 = vmatprep.subr.mxu0 0.0
        %998 = vmatpush1.msra.mxu0 0.0
        %999 = vmatprep.subr.mxu0 0.0
        %1000 = vmatpush1.msra.mxu0 0.0
        %1001 = vmatprep.subr.mxu0 0.0
        %1002 = vmatpush1.msra.mxu0 0.0
        %1003 = vmatprep.subr.mxu0 0.0
        %1004 = vmatpush1.msra.mxu0 0.0
        %1005 = vmatprep.subr.mxu0 0.0
        %1006 = vmatpush1.msra.mxu0 0.0
        %1007 = vmatprep.subr.mxu0 0.0
        %1008 = vmatpush1.msra.mxu0 0.0
        %1009 = vmatprep.subr.mxu0 0.0
        %1010 = vmatpush1.msra.mxu0 0.0
        %1011 = vmatprep.subr.mxu0 0.0
        %1012 = vmatpush1.msra.mxu0 0.0
        %1013 = vmatprep.subr.mxu0 0.0
        %1014 = vmatpush1.msra.mxu0 0.0
        %1015 = vmatprep.subr.mxu0 0.0
        %1016 = vmatpush1.msra.mxu0 0.0
        %1017 = vmatprep.subr.mxu0 0.0
        %1018 = vmatpush1.msra.mxu0 0.0
        %1019 = vmatprep.subr.mxu0 0.0
        %1020 = vmatpush1.msra.mxu0 0.0
        %1021 = vmatprep.mubr.f32.mxu0 0.0
        %1022 = vmatmul.mubr.f32.gmra.mrb[0].mxu0 %v862
        %v1023 = vpop.f32.mrb[0].mxu0
        %v1024 = vadd.f32 0.0, %v1023
        %v1025 = vpop.f32.mrb[0].mxu0
        %1026 = vmatprep.mubr.f32.mxu0 0.0
        %1027 = vmatmul.mubr.f32.gmra.mrb[0].mxu0 %v865
        %v1028 = vpop.f32.mrb[0].mxu0
        %v1029 = vadd.f32 0.0, %v1028
        %v1030 = vpop.f32.mrb[0].mxu0
        %1031 = vmatprep.mubr.f32.mxu0 0.0
        %1032 = vmatmul.mubr.f32.gmra.mrb[0].mxu0 %v868
        %v1033 = vpop.f32.mrb[0].mxu0
        %v1034 = vadd.f32 0.0, %v1033
        %v1035 = vpop.f32.mrb[0].mxu0
        %1036 = vmatprep.mubr.f32.mxu0 0.0
        %1037 = vmatmul.mubr.f32.gmra.mrb[0].mxu0 %v871
        %v1038 = vpop.f32.mrb[0].mxu0
        %v1039 = vadd.f32 0.0, %v1038
        %v1040 = vpop.f32.mrb[0].mxu0
        %1041 = vmatprep.mubr.f32.mxu0 0.0
        %1042 = vmatmul.mubr.f32.gmra.mrb[0].mxu0 %v874
        %v1043 = vpop.f32.mrb[0].mxu0
        %v1044 = vadd.f32 0.0, %v1043
        %v1045 = vpop.f32.mrb[0].mxu0
        %1046 = vmatprep.mubr.f32.mxu0 0.0
        %1047 = vmatmul.mubr.f32.gmra.mrb[0].mxu0 %v877
        %v1048 = vpop.f32.mrb[0].mxu0
        %v1049 = vadd.f32 0.0, %v1048
        %v1050 = vpop.f32.mrb[0].mxu0
        %1051 = vmatprep.mubr.f32.mxu0 0.0
        %1052 = vmatmul.mubr.f32.gmra.mrb[0].mxu0 %v880
        %v1053 = vpop.f32.mrb[0].mxu0
        %v1054 = vadd.f32 0.0, %v1053
        %v1055 = vpop.f32.mrb[0].mxu0
        %1056 = vmatprep.mubr.f32.mxu0 0.0
        %1057 = vmatmul.mubr.f32.gmra.mrb[0].mxu0 %v883
        %v1058 = vpop.f32.mrb[0].mxu0
        %v1059 = vadd.f32 0.0, %v1058
        %v1060 = vpop.f32.mrb[0].mxu0
        %1061 = vmatprep.mubr.f32.mxu0 0.0
        %1062 = vmatmul.mubr.f32.gmra.mrb[0].mxu0 %v886
        %v1063 = vpop.f32.mrb[0].mxu0
        %v1064 = vadd.f32 0.0, %v1063
        %v1065 = vpop.f32.mrb[0].mxu0
        %1066 = vmatprep.mubr.f32.mxu0 0.0
        %1067 = vmatmul.mubr.f32.gmra.mrb[0].mxu0 %v889
        %v1068 = vpop.f32.mrb[0].mxu0
        %v1069 = vadd.f32 0.0, %v1068
        %v1070 = vpop.f32.mrb[0].mxu0
        %1071 = vmatprep.mubr.f32.mxu0 0.0
        %1072 = vmatmul.mubr.f32.gmra.mrb[0].mxu0 %v892
        %v1073 = vpop.f32.mrb[0].mxu0
        %v1074 = vadd.f32 0.0, %v1073
        %v1075 = vpop.f32.mrb[0].mxu0
        %1076 = vmatprep.mubr.f32.mxu0 0.0
        %1077 = vmatmul.mubr.f32.gmra.mrb[0].mxu0 %v895
        %v1078 = vpop.f32.mrb[0].mxu0
        %v1079 = vadd.f32 0.0, %v1078
        %v1080 = vpop.f32.mrb[0].mxu0
        %1081 = vmatprep.mubr.f32.mxu0 0.0
        %1082 = vmatmul.mubr.f32.gmra.mrb[0].mxu0 %v898
        %v1083 = vpop.f32.mrb[0].mxu0
        %v1084 = vadd.f32 0.0, %v1083
        %v1085 = vpop.f32.mrb[0].mxu0
        %1086 = vmatprep.mubr.f32.mxu0 0.0
        %1087 = vmatmul.mubr.f32.gmra.mrb[0].mxu0 %v901
        %v1088 = vpop.f32.mrb[0].mxu0
        %v1089 = vadd.f32 0.0, %v1088
        %v1090 = vpop.f32.mrb[0].mxu0
        %1091 = vmatprep.mubr.f32.mxu0 0.0
        %1092 = vmatmul.mubr.f32.gmra.mrb[0].mxu0 %v904
        %v1093 = vpop.f32.mrb[0].mxu0
        %v1094 = vadd.f32 0.0, %v1093
        %v1095 = vpop.f32.mrb[0].mxu0
        %1096 = vmatprep.mubr.f32.mxu0 0.0
        %1097 = vmatmul.mubr.f32.gmra.mrb[0].mxu0 %v907
        %v1098 = vpop.f32.mrb[0].mxu0
        %v1099 = vadd.f32 0.0, %v1098
        %v1100 = vpop.f32.mrb[0].mxu0
        %1101 = vmatprep.mubr.f32.mxu0 0.0
        %1102 = vmatmul.mubr.f32.gmra.mrb[0].mxu0 %v910
        %v1103 = vpop.f32.mrb[0].mxu0
        %v1104 = vadd.f32 0.0, %v1103
        %v1105 = vpop.f32.mrb[0].mxu0
        %1106 = vmatprep.mubr.f32.mxu0 0.0
        %1107 = vmatmul.mubr.f32.gmra.mrb[0].mxu0 %v913
        %v1108 = vpop.f32.mrb[0].mxu0
        %v1109 = vadd.f32 0.0, %v1108
        %v1110 = vpop.f32.mrb[0].mxu0
        %1111 = vmatprep.mubr.f32.mxu0 0.0
        %1112 = vmatmul.mubr.f32.gmra.mrb[0].mxu0 %v916
        %v1113 = vpop.f32.mrb[0].mxu0
        %v1114 = vadd.f32 0.0, %v1113
        %v1115 = vpop.f32.mrb[0].mxu0
        %1116 = vmatprep.mubr.f32.mxu0 0.0
        %1117 = vmatmul.mubr.f32.gmra.mrb[0].mxu0 %v919
        %v1118 = vpop.f32.mrb[0].mxu0
        %v1119 = vadd.f32 0.0, %v1118
        %v1120 = vpop.f32.mrb[0].mxu0
        %1121 = vmatprep.mubr.f32.mxu0 0.0
        %1122 = vmatmul.mubr.f32.gmra.mrb[0].mxu0 %v922
        %v1123 = vpop.f32.mrb[0].mxu0
        %v1124 = vadd.f32 0.0, %v1123
        %v1125 = vpop.f32.mrb[0].mxu0
        %1126 = vmatprep.mubr.f32.mxu0 0.0
        %1127 = vmatmul.mubr.f32.gmra.mrb[0].mxu0 %v925
        %v1128 = vpop.f32.mrb[0].mxu0
        %v1129 = vadd.f32 0.0, %v1128
        %v1130 = vpop.f32.mrb[0].mxu0
        %1131 = vmatprep.mubr.f32.mxu0 0.0
        %1132 = vmatmul.mubr.f32.gmra.mrb[0].mxu0 %v928
        %v1133 = vpop.f32.mrb[0].mxu0
        %v1134 = vadd.f32 0.0, %v1133
        %v1135 = vpop.f32.mrb[0].mxu0
        %1136 = vmatprep.mubr.f32.mxu0 0.0
        %1137 = vmatmul.mubr.f32.gmra.mrb[0].mxu0 %v931
        %v1138 = vpop.f32.mrb[0].mxu0
        %v1139 = vadd.f32 0.0, %v1138
        %v1140 = vpop.f32.mrb[0].mxu0
        %1141 = vmatprep.mubr.f32.mxu0 0.0
        %1142 = vmatmul.mubr.f32.gmra.mrb[0].mxu0 %v934
        %v1143 = vpop.f32.mrb[0].mxu0
        %v1144 = vadd.f32 0.0, %v1143
        %v1145 = vpop.f32.mrb[0].mxu0
        %1146 = vmatprep.mubr.f32.mxu0 0.0
        %1147 = vmatmul.mubr.f32.gmra.mrb[0].mxu0 %v937
        %v1148 = vpop.f32.mrb[0].mxu0
        %v1149 = vadd.f32 0.0, %v1148
        %v1150 = vpop.f32.mrb[0].mxu0
        %1151 = vmatprep.mubr.f32.mxu0 0.0
        %1152 = vmatmul.mubr.f32.gmra.mrb[0].mxu0 %v940
        %v1153 = vpop.f32.mrb[0].mxu0
        %v1154 = vadd.f32 0.0, %v1153
        %v1155 = vpop.f32.mrb[0].mxu0
        %1156 = vmatprep.mubr.f32.mxu0 0.0
        %1157 = vmatmul.mubr.f32.gmra.mrb[0].mxu0 %v943
        %v1158 = vpop.f32.mrb[0].mxu0
        %v1159 = vadd.f32 0.0, %v1158
        %v1160 = vpop.f32.mrb[0].mxu0
        %1161 = vmatprep.mubr.f32.mxu0 0.0
        %1162 = vmatmul.mubr.f32.gmra.mrb[0].mxu0 %v946
        %v1163 = vpop.f32.mrb[0].mxu0
        %v1164 = vadd.f32 0.0, %v1163
        %v1165 = vpop.f32.mrb[0].mxu0
        %1166 = vmatprep.mubr.f32.mxu0 0.0
        %1167 = vmatmul.mubr.f32.gmra.mrb[0].mxu0 %v949
        %v1168 = vpop.f32.mrb[0].mxu0
        %v1169 = vadd.f32 0.0, %v1168
        %v1170 = vpop.f32.mrb[0].mxu0
        %1171 = vmatprep.mubr.f32.mxu0 0.0
        %1172 = vmatmul.mubr.f32.gmra.mrb[0].mxu0 %v952
        %v1173 = vpop.f32.mrb[0].mxu0
        %v1174 = vadd.f32 0.0, %v1173
        %v1175 = vpop.f32.mrb[0].mxu0
        %1176 = vmatprep.mubr.f32.mxu0 0.0
        %1177 = vmatmul.mubr.f32.gmra.mrb[0].mxu0 %v955
        %v1178 = vpop.f32.mrb[0].mxu0
        %v1179 = vadd.f32 0.0, %v1178
        %v1180 = vpop.f32.mrb[0].mxu0
        %1181 = vdwg.mxu0
        %v1182 = vmax.f32 %v1024, %v1044
        %v1183 = vmax.f32 %v1029, %v1049
        %v1184 = vmax.f32 %v1034, %v1054
        %v1185 = vmax.f32 %v1039, %v1059
        %v1186 = vmax.f32 %v1182, %v1064
        %v1187 = vmax.f32 %v1183, %v1069
        %v1188 = vmax.f32 %v1184, %v1074
        %v1189 = vmax.f32 %v1185, %v1079
        %v1190 = vmax.f32 %v1186, %v1084
        %v1191 = vmax.f32 %v1187, %v1089
        %v1192 = vmax.f32 %v1188, %v1094
        %v1193 = vmax.f32 %v1189, %v1099
        %v1194 = vmax.f32 %v1190, %v1104
        %v1195 = vmax.f32 %v1191, %v1109
        %v1196 = vmax.f32 %v1192, %v1114
        %v1197 = vmax.f32 %v1193, %v1119
        %v1198 = vmax.f32 %v1194, %v1124
        %v1199 = vmax.f32 %v1195, %v1129
        %v1200 = vmax.f32 %v1196, %v1134
        %v1201 = vmax.f32 %v1197, %v1139
        %v1202 = vmax.f32 %v1198, %v1144
        %v1203 = vmax.f32 %v1199, %v1149
        %v1204 = vmax.f32 %v1200, %v1154
        %v1205 = vmax.f32 %v1201, %v1159
        %v1206 = vmax.f32 %v1202, %v1164
        %v1207 = vmax.f32 %v1203, %v1169
        %v1208 = vmax.f32 %v1204, %v1174
        %v1209 = vmax.f32 %v1205, %v1179
        %v1210 = vmax.f32 %v1206, %v1207
        %v1211 = vmax.f32 %v1208, %v1209
        %v1212 = vmax.f32 %v1210, %v1211
        %v1213 = vrot.slane %v1212, 4
        %v1214 = vmax.f32 %v1212, %v1213
        %v1215 = vrot.slane %v1214, 2
        %v1216 = vmax.f32 %v1214, %v1215
        %v1217 = vrot.slane %v1216, 1
        %v1218 = vmax.f32 %v1216, %v1217
        %v1219 = vsub.f32 %v1024, %v1218
        %v1220 = vsub.f32 %v1029, %v1218
        %v1221 = vsub.f32 %v1034, %v1218
        %v1222 = vsub.f32 %v1039, %v1218
        %v1223 = vsub.f32 %v1044, %v1218
        %v1224 = vsub.f32 %v1049, %v1218
        %v1225 = vsub.f32 %v1054, %v1218
        %v1226 = vsub.f32 %v1059, %v1218
        %v1227 = vsub.f32 %v1064, %v1218
        %v1228 = vsub.f32 %v1069, %v1218
        %v1229 = vsub.f32 %v1074, %v1218
        %v1230 = vsub.f32 %v1079, %v1218
        %v1231 = vsub.f32 %v1084, %v1218
        %v1232 = vsub.f32 %v1089, %v1218
        %v1233 = vsub.f32 %v1094, %v1218
        %v1234 = vsub.f32 %v1099, %v1218
        %v1235 = vsub.f32 %v1104, %v1218
        %v1236 = vsub.f32 %v1109, %v1218
        %v1237 = vsub.f32 %v1114, %v1218
        %v1238 = vsub.f32 %v1119, %v1218
        %v1239 = vsub.f32 %v1124, %v1218
        %v1240 = vsub.f32 %v1129, %v1218
        %v1241 = vsub.f32 %v1134, %v1218
        %v1242 = vsub.f32 %v1139, %v1218
        %v1243 = vsub.f32 %v1144, %v1218
        %v1244 = vsub.f32 %v1149, %v1218
        %v1245 = vsub.f32 %v1154, %v1218
        %v1246 = vsub.f32 %v1159, %v1218
        %v1247 = vsub.f32 %v1164, %v1218
        %v1248 = vsub.f32 %v1169, %v1218
        %v1249 = vsub.f32 %v1174, %v1218
        %v1250 = vsub.f32 %v1179, %v1218
        %v1251 = vmul.f32 %v1219, 1.442695
        %v1252 = vpow.pop %v1251
        %v1253 = vmul.f32 %v1220, 1.442695
        %v1254 = vpow.pop %v1253
        %v1255 = vmul.f32 %v1221, 1.442695
        %v1256 = vpow.pop %v1255
        %v1257 = vmul.f32 %v1222, 1.442695
        %v1258 = vpow.pop %v1257
        %v1259 = vmul.f32 %v1223, 1.442695
        %v1260 = vpow.pop %v1259
        %v1261 = vmul.f32 %v1224, 1.442695
        %v1262 = vpow.pop %v1261
        %v1263 = vmul.f32 %v1225, 1.442695
        %v1264 = vpow.pop %v1263
        %v1265 = vmul.f32 %v1226, 1.442695
        %v1266 = vpow.pop %v1265
        %v1267 = vmul.f32 %v1227, 1.442695
        %v1268 = vpow.pop %v1267
        %v1269 = vmul.f32 %v1228, 1.442695
        %v1270 = vpow.pop %v1269
        %v1271 = vmul.f32 %v1229, 1.442695
        %v1272 = vpow.pop %v1271
        %v1273 = vmul.f32 %v1230, 1.442695
        %v1274 = vpow.pop %v1273
        %v1275 = vmul.f32 %v1231, 1.442695
        %v1276 = vpow.pop %v1275
        %v1277 = vmul.f32 %v1232, 1.442695
        %v1278 = vpow.pop %v1277
        %v1279 = vmul.f32 %v1233, 1.442695
        %v1280 = vpow.pop %v1279
        %v1281 = vmul.f32 %v1234, 1.442695
        %v1282 = vpow.pop %v1281
        %v1283 = vmul.f32 %v1235, 1.442695
        %v1284 = vpow.pop %v1283
        %v1285 = vmul.f32 %v1236, 1.442695
        %v1286 = vpow.pop %v1285
        %v1287 = vmul.f32 %v1237, 1.442695
        %v1288 = vpow.pop %v1287
        %v1289 = vmul.f32 %v1238, 1.442695
        %v1290 = vpow.pop %v1289
        %v1291 = vmul.f32 %v1239, 1.442695
        %v1292 = vpow.pop %v1291
        %v1293 = vmul.f32 %v1240, 1.442695
        %v1294 = vpow.pop %v1293
        %v1295 = vmul.f32 %v1241, 1.442695
        %v1296 = vpow.pop %v1295
        %v1297 = vmul.f32 %v1242, 1.442695
        %v1298 = vpow.pop %v1297
        %v1299 = vmul.f32 %v1243, 1.442695
        %v1300 = vpow.pop %v1299
        %v1301 = vmul.f32 %v1244, 1.442695
        %v1302 = vpow.pop %v1301
        %v1303 = vmul.f32 %v1245, 1.442695
        %v1304 = vpow.pop %v1303
        %v1305 = vmul.f32 %v1246, 1.442695
        %v1306 = vpow.pop %v1305
        %v1307 = vmul.f32 %v1247, 1.442695
        %v1308 = vpow.pop %v1307
        %v1309 = vmul.f32 %v1248, 1.442695
        %v1310 = vpow.pop %v1309
        %v1311 = vmul.f32 %v1249, 1.442695
        %v1312 = vpow.pop %v1311
        %v1313 = vmul.f32 %v1250, 1.442695
        %v1314 = vpow.pop %v1313
        %v1315 = vadd.f32 %v1252, %v1254
        %v1316 = vadd.f32 %v1315, %v1256
        %v1317 = vadd.f32 %v1316, %v1258
        %v1318 = vadd.f32 %v1317, %v1260
        %v1319 = vadd.f32 %v1318, %v1262
        %v1320 = vadd.f32 %v1319, %v1264
        %v1321 = vadd.f32 %v1320, %v1266
        %v1322 = vadd.f32 %v1321, %v1268
        %v1323 = vadd.f32 %v1322, %v1270
        %v1324 = vadd.f32 %v1323, %v1272
        %v1325 = vadd.f32 %v1324, %v1274
        %v1326 = vadd.f32 %v1325, %v1276
        %v1327 = vadd.f32 %v1326, %v1278
        %v1328 = vadd.f32 %v1327, %v1280
        %v1329 = vadd.f32 %v1328, %v1282
        %v1330 = vadd.f32 %v1329, %v1284
        %v1331 = vadd.f32 %v1330, %v1286
        %v1332 = vadd.f32 %v1331, %v1288
        %v1333 = vadd.f32 %v1332, %v1290
        %v1334 = vadd.f32 %v1333, %v1292
        %v1335 = vadd.f32 %v1334, %v1294
        %v1336 = vadd.f32 %v1335, %v1296
        %v1337 = vadd.f32 %v1336, %v1298
        %v1338 = vadd.f32 %v1337, %v1300
        %v1339 = vadd.f32 %v1338, %v1302
        %v1340 = vadd.f32 %v1339, %v1304
        %v1341 = vadd.f32 %v1340, %v1306
        %v1342 = vadd.f32 %v1341, %v1308
        %v1343 = vadd.f32 %v1342, %v1310
        %v1344 = vadd.f32 %v1343, %v1312
        %v1345 = vadd.f32 %v1344, %v1314
        %v1346 = vrot.slane %v1345, 4
        %v1347 = vadd.f32 %v1345, %v1346
        %v1348 = vrot.slane %v1347, 2
        %v1349 = vadd.f32 %v1347, %v1348
        %v1350 = vrot.slane %v1349, 1
        %v1351 = vadd.f32 %v1349, %v1350
        %1352 = vmatprep.subr.mxu0 0.0
        %1353 = vmatpush1.msra.mxu0 %v1252
        %1354 = vmatprep.subr.mxu0 0.0
        %1355 = vmatpush1.msra.mxu0 %v1254
        %1356 = vmatprep.subr.mxu0 0.0
        %1357 = vmatpush1.msra.mxu0 %v1256
        %1358 = vmatprep.subr.mxu0 0.0
        %1359 = vmatpush1.msra.mxu0 %v1258
        %1360 = vmatprep.subr.mxu0 0.0
        %1361 = vmatpush1.msra.mxu0 %v1260
        %1362 = vmatprep.subr.mxu0 0.0
        %1363 = vmatpush1.msra.mxu0 %v1262
        %1364 = vmatprep.subr.mxu0 0.0
        %1365 = vmatpush1.msra.mxu0 %v1264
        %1366 = vmatprep.subr.mxu0 0.0
        %1367 = vmatpush1.msra.mxu0 %v1266
        %1368 = vmatprep.subr.mxu0 0.0
        %1369 = vmatpush1.msra.mxu0 %v1268
        %1370 = vmatprep.subr.mxu0 0.0
        %1371 = vmatpush1.msra.mxu0 %v1270
        %1372 = vmatprep.subr.mxu0 0.0
        %1373 = vmatpush1.msra.mxu0 %v1272
        %1374 = vmatprep.subr.mxu0 0.0
        %1375 = vmatpush1.msra.mxu0 %v1274
        %1376 = vmatprep.subr.mxu0 0.0
        %1377 = vmatpush1.msra.mxu0 %v1276
        %1378 = vmatprep.subr.mxu0 0.0
        %1379 = vmatpush1.msra.mxu0 %v1278
        %1380 = vmatprep.subr.mxu0 0.0
        %1381 = vmatpush1.msra.mxu0 %v1280
        %1382 = vmatprep.subr.mxu0 0.0
        %1383 = vmatpush1.msra.mxu0 %v1282
        %1384 = vmatprep.subr.mxu0 0.0
        %1385 = vmatpush1.msra.mxu0 %v1284
        %1386 = vmatprep.subr.mxu0 0.0
        %1387 = vmatpush1.msra.mxu0 %v1286
        %1388 = vmatprep.subr.mxu0 0.0
        %1389 = vmatpush1.msra.mxu0 %v1288
        %1390 = vmatprep.subr.mxu0 0.0
        %1391 = vmatpush1.msra.mxu0 %v1290
        %1392 = vmatprep.subr.mxu0 0.0
        %1393 = vmatpush1.msra.mxu0 %v1292
        %1394 = vmatprep.subr.mxu0 0.0
        %1395 = vmatpush1.msra.mxu0 %v1294
        %1396 = vmatprep.subr.mxu0 0.0
        %1397 = vmatpush1.msra.mxu0 %v1296
        %1398 = vmatprep.subr.mxu0 0.0
        %1399 = vmatpush1.msra.mxu0 %v1298
        %1400 = vmatprep.subr.mxu0 0.0
        %1401 = vmatpush1.msra.mxu0 %v1300
        %1402 = vmatprep.subr.mxu0 0.0
        %1403 = vmatpush1.msra.mxu0 %v1302
        %1404 = vmatprep.subr.mxu0 0.0
        %1405 = vmatpush1.msra.mxu0 %v1304
        %1406 = vmatprep.subr.mxu0 0.0
        %1407 = vmatpush1.msra.mxu0 %v1306
        %1408 = vmatprep.subr.mxu0 0.0
        %1409 = vmatpush1.msra.mxu0 %v1308
        %1410 = vmatprep.subr.mxu0 0.0
        %1411 = vmatpush1.msra.mxu0 %v1310
        %1412 = vmatprep.subr.mxu0 0.0
        %1413 = vmatpush1.msra.mxu0 %v1312
        %1414 = vmatprep.subr.mxu0 0.0
        %1415 = vmatpush1.msra.mxu0 %v1314
        %1416 = vmatprep.mubr.f32.mxu0 %v791
        %1417 = vmatmul.mubr.f32.gmra.mrb[0].mxu0 %v790
        %v1418 = vpop.f32.mrb[0].mxu0
        %v1419 = vadd.f32 0.0, %v1418
        %v1420 = vpop.f32.mrb[0].mxu0
        %1421 = vmatprep.mubr.f32.mxu0 %v793
        %1422 = vmatmul.mubr.f32.gmra.mrb[0].mxu0 %v792
        %v1423 = vpop.f32.mrb[0].mxu0
        %v1424 = vadd.f32 0.0, %v1423
        %v1425 = vpop.f32.mrb[0].mxu0
        %1426 = vdwg.mxu0
        %v1427 = vrcp.pop %v1351
        %v1428 = vmul.f32 %v1419, %v1427
        %v1429 = vmul.f32 %v1424, %v1427
        %1430 = vst [vmem:[#allocation3] sm:$0xff] %v1428
        %1431 = vst [vmem:[#allocation3 + $0x10] sm:$0xff] %v1429
        %v1432 = vld [vmem:[#allocation2 + $0x8] sm:$0xff]
        %v1433 = vld [vmem:[#allocation2 + $0x18] sm:$0xff]
        %1434 = vmatprep.subr.mxu0 0.0
        %1435 = vmatpush1.msra.mxu0 %v1432
        %1436 = vmatprep.subr.mxu0 0.0
        %1437 = vmatpush1.msra.mxu0 %v1433
        %1438 = vmatprep.subr.mxu0 0.0
        %1439 = vmatpush1.msra.mxu0 0.0
        %1440 = vmatprep.subr.mxu0 0.0
        %1441 = vmatpush1.msra.mxu0 0.0
        %1442 = vmatprep.subr.mxu0 0.0
        %1443 = vmatpush1.msra.mxu0 0.0
        %1444 = vmatprep.subr.mxu0 0.0
        %1445 = vmatpush1.msra.mxu0 0.0
        %1446 = vmatprep.subr.mxu0 0.0
        %1447 = vmatpush1.msra.mxu0 0.0
        %1448 = vmatprep.subr.mxu0 0.0
        %1449 = vmatpush1.msra.mxu0 0.0
        %1450 = vmatprep.subr.mxu0 0.0
        %1451 = vmatpush1.msra.mxu0 0.0
        %1452 = vmatprep.subr.mxu0 0.0
        %1453 = vmatpush1.msra.mxu0 0.0
        %1454 = vmatprep.subr.mxu0 0.0
        %1455 = vmatpush1.msra.mxu0 0.0
        %1456 = vmatprep.subr.mxu0 0.0
        %1457 = vmatpush1.msra.mxu0 0.0
        %1458 = vmatprep.subr.mxu0 0.0
        %1459 = vmatpush1.msra.mxu0 0.0
        %1460 = vmatprep.subr.mxu0 0.0
        %1461 = vmatpush1.msra.mxu0 0.0
        %1462 = vmatprep.subr.mxu0 0.0
        %1463 = vmatpush1.msra.mxu0 0.0
        %1464 = vmatprep.subr.mxu0 0.0
        %1465 = vmatpush1.msra.mxu0 0.0
        %1466 = vmatprep.subr.mxu0 0.0
        %1467 = vmatpush1.msra.mxu0 0.0
        %1468 = vmatprep.subr.mxu0 0.0
        %1469 = vmatpush1.msra.mxu0 0.0
        %1470 = vmatprep.subr.mxu0 0.0
        %1471 = vmatpush1.msra.mxu0 0.0
        %1472 = vmatprep.subr.mxu0 0.0
        %1473 = vmatpush1.msra.mxu0 0.0
        %1474 = vmatprep.subr.mxu0 0.0
        %1475 = vmatpush1.msra.mxu0 0.0
        %1476 = vmatprep.subr.mxu0 0.0
        %1477 = vmatpush1.msra.mxu0 0.0
        %1478 = vmatprep.subr.mxu0 0.0
        %1479 = vmatpush1.msra.mxu0 0.0
        %1480 = vmatprep.subr.mxu0 0.0
        %1481 = vmatpush1.msra.mxu0 0.0
        %1482 = vmatprep.subr.mxu0 0.0
        %1483 = vmatpush1.msra.mxu0 0.0
        %1484 = vmatprep.subr.mxu0 0.0
        %1485 = vmatpush1.msra.mxu0 0.0
        %1486 = vmatprep.subr.mxu0 0.0
        %1487 = vmatpush1.msra.mxu0 0.0
        %1488 = vmatprep.subr.mxu0 0.0
        %1489 = vmatpush1.msra.mxu0 0.0
        %1490 = vmatprep.subr.mxu0 0.0
        %1491 = vmatpush1.msra.mxu0 0.0
        %1492 = vmatprep.subr.mxu0 0.0
        %1493 = vmatpush1.msra.mxu0 0.0
        %1494 = vmatprep.subr.mxu0 0.0
        %1495 = vmatpush1.msra.mxu0 0.0
        %1496 = vmatprep.subr.mxu0 0.0
        %1497 = vmatpush1.msra.mxu0 0.0
        %1498 = vmatprep.mubr.f32.mxu0 0.0
        %1499 = vmatmul.mubr.f32.gmra.mrb[0].mxu0 %v862
        %v1500 = vpop.f32.mrb[0].mxu0
        %v1501 = vadd.f32 0.0, %v1500
        %v1502 = vpop.f32.mrb[0].mxu0
        %1503 = vmatprep.mubr.f32.mxu0 0.0
        %1504 = vmatmul.mubr.f32.gmra.mrb[0].mxu0 %v865
        %v1505 = vpop.f32.mrb[0].mxu0
        %v1506 = vadd.f32 0.0, %v1505
        %v1507 = vpop.f32.mrb[0].mxu0
        %1508 = vmatprep.mubr.f32.mxu0 0.0
        %1509 = vmatmul.mubr.f32.gmra.mrb[0].mxu0 %v868
        %v1510 = vpop.f32.mrb[0].mxu0
        %v1511 = vadd.f32 0.0, %v1510
        %v1512 = vpop.f32.mrb[0].mxu0
        %1513 = vmatprep.mubr.f32.mxu0 0.0
        %1514 = vmatmul.mubr.f32.gmra.mrb[0].mxu0 %v871
        %v1515 = vpop.f32.mrb[0].mxu0
        %v1516 = vadd.f32 0.0, %v1515
        %v1517 = vpop.f32.mrb[0].mxu0
        %1518 = vmatprep.mubr.f32.mxu0 0.0
        %1519 = vmatmul.mubr.f32.gmra.mrb[0].mxu0 %v874
        %v1520 = vpop.f32.mrb[0].mxu0
        %v1521 = vadd.f32 0.0, %v1520
        %v1522 = vpop.f32.mrb[0].mxu0
        %1523 = vmatprep.mubr.f32.mxu0 0.0
        %1524 = vmatmul.mubr.f32.gmra.mrb[0].mxu0 %v877
        %v1525 = vpop.f32.mrb[0].mxu0
        %v1526 = vadd.f32 0.0, %v1525
        %v1527 = vpop.f32.mrb[0].mxu0
        %1528 = vmatprep.mubr.f32.mxu0 0.0
        %1529 = vmatmul.mubr.f32.gmra.mrb[0].mxu0 %v880
        %v1530 = vpop.f32.mrb[0].mxu0
        %v1531 = vadd.f32 0.0, %v1530
        %v1532 = vpop.f32.mrb[0].mxu0
        %1533 = vmatprep.mubr.f32.mxu0 0.0
        %1534 = vmatmul.mubr.f32.gmra.mrb[0].mxu0 %v883
        %v1535 = vpop.f32.mrb[0].mxu0
        %v1536 = vadd.f32 0.0, %v1535
        %v1537 = vpop.f32.mrb[0].mxu0
        %1538 = vmatprep.mubr.f32.mxu0 0.0
        %1539 = vmatmul.mubr.f32.gmra.mrb[0].mxu0 %v886
        %v1540 = vpop.f32.mrb[0].mxu0
        %v1541 = vadd.f32 0.0, %v1540
        %v1542 = vpop.f32.mrb[0].mxu0
        %1543 = vmatprep.mubr.f32.mxu0 0.0
        %1544 = vmatmul.mubr.f32.gmra.mrb[0].mxu0 %v889
        %v1545 = vpop.f32.mrb[0].mxu0
        %v1546 = vadd.f32 0.0, %v1545
        %v1547 = vpop.f32.mrb[0].mxu0
        %1548 = vmatprep.mubr.f32.mxu0 0.0
        %1549 = vmatmul.mubr.f32.gmra.mrb[0].mxu0 %v892
        %v1550 = vpop.f32.mrb[0].mxu0
        %v1551 = vadd.f32 0.0, %v1550
        %v1552 = vpop.f32.mrb[0].mxu0
        %1553 = vmatprep.mubr.f32.mxu0 0.0
        %1554 = vmatmul.mubr.f32.gmra.mrb[0].mxu0 %v895
        %v1555 = vpop.f32.mrb[0].mxu0
        %v1556 = vadd.f32 0.0, %v1555
        %v1557 = vpop.f32.mrb[0].mxu0
        %1558 = vmatprep.mubr.f32.mxu0 0.0
        %1559 = vmatmul.mubr.f32.gmra.mrb[0].mxu0 %v898
        %v1560 = vpop.f32.mrb[0].mxu0
        %v1561 = vadd.f32 0.0, %v1560
        %v1562 = vpop.f32.mrb[0].mxu0
        %1563 = vmatprep.mubr.f32.mxu0 0.0
        %1564 = vmatmul.mubr.f32.gmra.mrb[0].mxu0 %v901
        %v1565 = vpop.f32.mrb[0].mxu0
        %v1566 = vadd.f32 0.0, %v1565
        %v1567 = vpop.f32.mrb[0].mxu0
        %1568 = vmatprep.mubr.f32.mxu0 0.0
        %1569 = vmatmul.mubr.f32.gmra.mrb[0].mxu0 %v904
        %v1570 = vpop.f32.mrb[0].mxu0
        %v1571 = vadd.f32 0.0, %v1570
        %v1572 = vpop.f32.mrb[0].mxu0
        %1573 = vmatprep.mubr.f32.mxu0 0.0
        %1574 = vmatmul.mubr.f32.gmra.mrb[0].mxu0 %v907
        %v1575 = vpop.f32.mrb[0].mxu0
        %v1576 = vadd.f32 0.0, %v1575
        %v1577 = vpop.f32.mrb[0].mxu0
        %1578 = vmatprep.mubr.f32.mxu0 0.0
        %1579 = vmatmul.mubr.f32.gmra.mrb[0].mxu0 %v910
        %v1580 = vpop.f32.mrb[0].mxu0
        %v1581 = vadd.f32 0.0, %v1580
        %v1582 = vpop.f32.mrb[0].mxu0
        %1583 = vmatprep.mubr.f32.mxu0 0.0
        %1584 = vmatmul.mubr.f32.gmra.mrb[0].mxu0 %v913
        %v1585 = vpop.f32.mrb[0].mxu0
        %v1586 = vadd.f32 0.0, %v1585
        %v1587 = vpop.f32.mrb[0].mxu0
        %1588 = vmatprep.mubr.f32.mxu0 0.0
        %1589 = vmatmul.mubr.f32.gmra.mrb[0].mxu0 %v916
        %v1590 = vpop.f32.mrb[0].mxu0
        %v1591 = vadd.f32 0.0, %v1590
        %v1592 = vpop.f32.mrb[0].mxu0
        %1593 = vmatprep.mubr.f32.mxu0 0.0
        %1594 = vmatmul.mubr.f32.gmra.mrb[0].mxu0 %v919
        %v1595 = vpop.f32.mrb[0].mxu0
        %v1596 = vadd.f32 0.0, %v1595
        %v1597 = vpop.f32.mrb[0].mxu0
        %1598 = vmatprep.mubr.f32.mxu0 0.0
        %1599 = vmatmul.mubr.f32.gmra.mrb[0].mxu0 %v922
        %v1600 = vpop.f32.mrb[0].mxu0
        %v1601 = vadd.f32 0.0, %v1600
        %v1602 = vpop.f32.mrb[0].mxu0
        %1603 = vmatprep.mubr.f32.mxu0 0.0
        %1604 = vmatmul.mubr.f32.gmra.mrb[0].mxu0 %v925
        %v1605 = vpop.f32.mrb[0].mxu0
        %v1606 = vadd.f32 0.0, %v1605
        %v1607 = vpop.f32.mrb[0].mxu0
        %1608 = vmatprep.mubr.f32.mxu0 0.0
        %1609 = vmatmul.mubr.f32.gmra.mrb[0].mxu0 %v928
        %v1610 = vpop.f32.mrb[0].mxu0
        %v1611 = vadd.f32 0.0, %v1610
        %v1612 = vpop.f32.mrb[0].mxu0
        %1613 = vmatprep.mubr.f32.mxu0 0.0
        %1614 = vmatmul.mubr.f32.gmra.mrb[0].mxu0 %v931
        %v1615 = vpop.f32.mrb[0].mxu0
        %v1616 = vadd.f32 0.0, %v1615
        %v1617 = vpop.f32.mrb[0].mxu0
        %1618 = vmatprep.mubr.f32.mxu0 0.0
        %1619 = vmatmul.mubr.f32.gmra.mrb[0].mxu0 %v934
        %v1620 = vpop.f32.mrb[0].mxu0
        %v1621 = vadd.f32 0.0, %v1620
        %v1622 = vpop.f32.mrb[0].mxu0
        %1623 = vmatprep.mubr.f32.mxu0 0.0
        %1624 = vmatmul.mubr.f32.gmra.mrb[0].mxu0 %v937
        %v1625 = vpop.f32.mrb[0].mxu0
        %v1626 = vadd.f32 0.0, %v1625
        %v1627 = vpop.f32.mrb[0].mxu0
        %1628 = vmatprep.mubr.f32.mxu0 0.0
        %1629 = vmatmul.mubr.f32.gmra.mrb[0].mxu0 %v940
        %v1630 = vpop.f32.mrb[0].mxu0
        %v1631 = vadd.f32 0.0, %v1630
        %v1632 = vpop.f32.mrb[0].mxu0
        %1633 = vmatprep.mubr.f32.mxu0 0.0
        %1634 = vmatmul.mubr.f32.gmra.mrb[0].mxu0 %v943
        %v1635 = vpop.f32.mrb[0].mxu0
        %v1636 = vadd.f32 0.0, %v1635
        %v1637 = vpop.f32.mrb[0].mxu0
        %1638 = vmatprep.mubr.f32.mxu0 0.0
        %1639 = vmatmul.mubr.f32.gmra.mrb[0].mxu0 %v946
        %v1640 = vpop.f32.mrb[0].mxu0
        %v1641 = vadd.f32 0.0, %v1640
        %v1642 = vpop.f32.mrb[0].mxu0
        %1643 = vmatprep.mubr.f32.mxu0 0.0
        %1644 = vmatmul.mubr.f32.gmra.mrb[0].mxu0 %v949
        %v1645 = vpop.f32.mrb[0].mxu0
        %v1646 = vadd.f32 0.0, %v1645
        %v1647 = vpop.f32.mrb[0].mxu0
        %1648 = vmatprep.mubr.f32.mxu0 0.0
        %1649 = vmatmul.mubr.f32.gmra.mrb[0].mxu0 %v952
        %v1650 = vpop.f32.mrb[0].mxu0
        %v1651 = vadd.f32 0.0, %v1650
        %v1652 = vpop.f32.mrb[0].mxu0
        %1653 = vmatprep.mubr.f32.mxu0 0.0
        %1654 = vmatmul.mubr.f32.gmra.mrb[0].mxu0 %v955
        %v1655 = vpop.f32.mrb[0].mxu0
        %v1656 = vadd.f32 0.0, %v1655
        %v1657 = vpop.f32.mrb[0].mxu0
        %1658 = vdwg.mxu0
        %v1659 = vmax.f32 %v1501, %v1521
        %v1660 = vmax.f32 %v1506, %v1526
        %v1661 = vmax.f32 %v1511, %v1531
        %v1662 = vmax.f32 %v1516, %v1536
        %v1663 = vmax.f32 %v1659, %v1541
        %v1664 = vmax.f32 %v1660, %v1546
        %v1665 = vmax.f32 %v1661, %v1551
        %v1666 = vmax.f32 %v1662, %v1556
        %v1667 = vmax.f32 %v1663, %v1561
        %v1668 = vmax.f32 %v1664, %v1566
        %v1669 = vmax.f32 %v1665, %v1571
        %v1670 = vmax.f32 %v1666, %v1576
        %v1671 = vmax.f32 %v1667, %v1581
        %v1672 = vmax.f32 %v1668, %v1586
        %v1673 = vmax.f32 %v1669, %v1591
        %v1674 = vmax.f32 %v1670, %v1596
        %v1675 = vmax.f32 %v1671, %v1601
        %v1676 = vmax.f32 %v1672, %v1606
        %v1677 = vmax.f32 %v1673, %v1611
        %v1678 = vmax.f32 %v1674, %v1616
        %v1679 = vmax.f32 %v1675, %v1621
        %v1680 = vmax.f32 %v1676, %v1626
        %v1681 = vmax.f32 %v1677, %v1631
        %v1682 = vmax.f32 %v1678, %v1636
        %v1683 = vmax.f32 %v1679, %v1641
        %v1684 = vmax.f32 %v1680, %v1646
        %v1685 = vmax.f32 %v1681, %v1651
        %v1686 = vmax.f32 %v1682, %v1656
        %v1687 = vmax.f32 %v1683, %v1684
        %v1688 = vmax.f32 %v1685, %v1686
        %v1689 = vmax.f32 %v1687, %v1688
        %v1690 = vrot.slane %v1689, 4
        %v1691 = vmax.f32 %v1689, %v1690
        %v1692 = vrot.slane %v1691, 2
        %v1693 = vmax.f32 %v1691, %v1692
        %v1694 = vrot.slane %v1693, 1
        %v1695 = vmax.f32 %v1693, %v1694
        %v1696 = vsub.f32 %v1501, %v1695
        %v1697 = vsub.f32 %v1506, %v1695
        %v1698 = vsub.f32 %v1511, %v1695
        %v1699 = vsub.f32 %v1516, %v1695
        %v1700 = vsub.f32 %v1521, %v1695
        %v1701 = vsub.f32 %v1526, %v1695
        %v1702 = vsub.f32 %v1531, %v1695
        %v1703 = vsub.f32 %v1536, %v1695
        %v1704 = vsub.f32 %v1541, %v1695
        %v1705 = vsub.f32 %v1546, %v1695
        %v1706 = vsub.f32 %v1551, %v1695
        %v1707 = vsub.f32 %v1556, %v1695
        %v1708 = vsub.f32 %v1561, %v1695
        %v1709 = vsub.f32 %v1566, %v1695
        %v1710 = vsub.f32 %v1571, %v1695
        %v1711 = vsub.f32 %v1576, %v1695
        %v1712 = vsub.f32 %v1581, %v1695
        %v1713 = vsub.f32 %v1586, %v1695
        %v1714 = vsub.f32 %v1591, %v1695
        %v1715 = vsub.f32 %v1596, %v1695
        %v1716 = vsub.f32 %v1601, %v1695
        %v1717 = vsub.f32 %v1606, %v1695
        %v1718 = vsub.f32 %v1611, %v1695
        %v1719 = vsub.f32 %v1616, %v1695
        %v1720 = vsub.f32 %v1621, %v1695
        %v1721 = vsub.f32 %v1626, %v1695
        %v1722 = vsub.f32 %v1631, %v1695
        %v1723 = vsub.f32 %v1636, %v1695
        %v1724 = vsub.f32 %v1641, %v1695
        %v1725 = vsub.f32 %v1646, %v1695
        %v1726 = vsub.f32 %v1651, %v1695
        %v1727 = vsub.f32 %v1656, %v1695
        %v1728 = vmul.f32 %v1696, 1.442695
        %v1729 = vpow.pop %v1728
        %v1730 = vmul.f32 %v1697, 1.442695
        %v1731 = vpow.pop %v1730
        %v1732 = vmul.f32 %v1698, 1.442695
        %v1733 = vpow.pop %v1732
        %v1734 = vmul.f32 %v1699, 1.442695
        %v1735 = vpow.pop %v1734
        %v1736 = vmul.f32 %v1700, 1.442695
        %v1737 = vpow.pop %v1736
        %v1738 = vmul.f32 %v1701, 1.442695
        %v1739 = vpow.pop %v1738
        %v1740 = vmul.f32 %v1702, 1.442695
        %v1741 = vpow.pop %v1740
        %v1742 = vmul.f32 %v1703, 1.442695
        %v1743 = vpow.pop %v1742
        %v1744 = vmul.f32 %v1704, 1.442695
        %v1745 = vpow.pop %v1744
        %v1746 = vmul.f32 %v1705, 1.442695
        %v1747 = vpow.pop %v1746
        %v1748 = vmul.f32 %v1706, 1.442695
        %v1749 = vpow.pop %v1748
        %v1750 = vmul.f32 %v1707, 1.442695
        %v1751 = vpow.pop %v1750
        %v1752 = vmul.f32 %v1708, 1.442695
        %v1753 = vpow.pop %v1752
        %v1754 = vmul.f32 %v1709, 1.442695
        %v1755 = vpow.pop %v1754
        %v1756 = vmul.f32 %v1710, 1.442695
        %v1757 = vpow.pop %v1756
        %v1758 = vmul.f32 %v1711, 1.442695
        %v1759 = vpow.pop %v1758
        %v1760 = vmul.f32 %v1712, 1.442695
        %v1761 = vpow.pop %v1760
        %v1762 = vmul.f32 %v1713, 1.442695
        %v1763 = vpow.pop %v1762
        %v1764 = vmul.f32 %v1714, 1.442695
        %v1765 = vpow.pop %v1764
        %v1766 = vmul.f32 %v1715, 1.442695
        %v1767 = vpow.pop %v1766
        %v1768 = vmul.f32 %v1716, 1.442695
        %v1769 = vpow.pop %v1768
        %v1770 = vmul.f32 %v1717, 1.442695
        %v1771 = vpow.pop %v1770
        %v1772 = vmul.f32 %v1718, 1.442695
        %v1773 = vpow.pop %v1772
        %v1774 = vmul.f32 %v1719, 1.442695
        %v1775 = vpow.pop %v1774
        %v1776 = vmul.f32 %v1720, 1.442695
        %v1777 = vpow.pop %v1776
        %v1778 = vmul.f32 %v1721, 1.442695
        %v1779 = vpow.pop %v1778
        %v1780 = vmul.f32 %v1722, 1.442695
        %v1781 = vpow.pop %v1780
        %v1782 = vmul.f32 %v1723, 1.442695
        %v1783 = vpow.pop %v1782
        %v1784 = vmul.f32 %v1724, 1.442695
        %v1785 = vpow.pop %v1784
        %v1786 = vmul.f32 %v1725, 1.442695
        %v1787 = vpow.pop %v1786
        %v1788 = vmul.f32 %v1726, 1.442695
        %v1789 = vpow.pop %v1788
        %v1790 = vmul.f32 %v1727, 1.442695
        %v1791 = vpow.pop %v1790
        %v1792 = vadd.f32 %v1729, %v1731
        %v1793 = vadd.f32 %v1792, %v1733
        %v1794 = vadd.f32 %v1793, %v1735
        %v1795 = vadd.f32 %v1794, %v1737
        %v1796 = vadd.f32 %v1795, %v1739
        %v1797 = vadd.f32 %v1796, %v1741
        %v1798 = vadd.f32 %v1797, %v1743
        %v1799 = vadd.f32 %v1798, %v1745
        %v1800 = vadd.f32 %v1799, %v1747
        %v1801 = vadd.f32 %v1800, %v1749
        %v1802 = vadd.f32 %v1801, %v1751
        %v1803 = vadd.f32 %v1802, %v1753
        %v1804 = vadd.f32 %v1803, %v1755
        %v1805 = vadd.f32 %v1804, %v1757
        %v1806 = vadd.f32 %v1805, %v1759
        %v1807 = vadd.f32 %v1806, %v1761
        %v1808 = vadd.f32 %v1807, %v1763
        %v1809 = vadd.f32 %v1808, %v1765
        %v1810 = vadd.f32 %v1809, %v1767
        %v1811 = vadd.f32 %v1810, %v1769
        %v1812 = vadd.f32 %v1811, %v1771
        %v1813 = vadd.f32 %v1812, %v1773
        %v1814 = vadd.f32 %v1813, %v1775
        %v1815 = vadd.f32 %v1814, %v1777
        %v1816 = vadd.f32 %v1815, %v1779
        %v1817 = vadd.f32 %v1816, %v1781
        %v1818 = vadd.f32 %v1817, %v1783
        %v1819 = vadd.f32 %v1818, %v1785
        %v1820 = vadd.f32 %v1819, %v1787
        %v1821 = vadd.f32 %v1820, %v1789
        %v1822 = vadd.f32 %v1821, %v1791
        %v1823 = vrot.slane %v1822, 4
        %v1824 = vadd.f32 %v1822, %v1823
        %v1825 = vrot.slane %v1824, 2
        %v1826 = vadd.f32 %v1824, %v1825
        %v1827 = vrot.slane %v1826, 1
        %v1828 = vadd.f32 %v1826, %v1827
        %1829 = vmatprep.subr.mxu0 0.0
        %1830 = vmatpush1.msra.mxu0 %v1729
        %1831 = vmatprep.subr.mxu0 0.0
        %1832 = vmatpush1.msra.mxu0 %v1731
        %1833 = vmatprep.subr.mxu0 0.0
        %1834 = vmatpush1.msra.mxu0 %v1733
        %1835 = vmatprep.subr.mxu0 0.0
        %1836 = vmatpush1.msra.mxu0 %v1735
        %1837 = vmatprep.subr.mxu0 0.0
        %1838 = vmatpush1.msra.mxu0 %v1737
        %1839 = vmatprep.subr.mxu0 0.0
        %1840 = vmatpush1.msra.mxu0 %v1739
        %1841 = vmatprep.subr.mxu0 0.0
        %1842 = vmatpush1.msra.mxu0 %v1741
        %1843 = vmatprep.subr.mxu0 0.0
        %1844 = vmatpush1.msra.mxu0 %v1743
        %1845 = vmatprep.subr.mxu0 0.0
        %1846 = vmatpush1.msra.mxu0 %v1745
        %1847 = vmatprep.subr.mxu0 0.0
        %1848 = vmatpush1.msra.mxu0 %v1747
        %1849 = vmatprep.subr.mxu0 0.0
        %1850 = vmatpush1.msra.mxu0 %v1749
        %1851 = vmatprep.subr.mxu0 0.0
        %1852 = vmatpush1.msra.mxu0 %v1751
        %1853 = vmatprep.subr.mxu0 0.0
        %1854 = vmatpush1.msra.mxu0 %v1753
        %1855 = vmatprep.subr.mxu0 0.0
        %1856 = vmatpush1.msra.mxu0 %v1755
        %1857 = vmatprep.subr.mxu0 0.0
        %1858 = vmatpush1.msra.mxu0 %v1757
        %1859 = vmatprep.subr.mxu0 0.0
        %1860 = vmatpush1.msra.mxu0 %v1759
        %1861 = vmatprep.subr.mxu0 0.0
        %1862 = vmatpush1.msra.mxu0 %v1761
        %1863 = vmatprep.subr.mxu0 0.0
        %1864 = vmatpush1.msra.mxu0 %v1763
        %1865 = vmatprep.subr.mxu0 0.0
        %1866 = vmatpush1.msra.mxu0 %v1765
        %1867 = vmatprep.subr.mxu0 0.0
        %1868 = vmatpush1.msra.mxu0 %v1767
        %1869 = vmatprep.subr.mxu0 0.0
        %1870 = vmatpush1.msra.mxu0 %v1769
        %1871 = vmatprep.subr.mxu0 0.0
        %1872 = vmatpush1.msra.mxu0 %v1771
        %1873 = vmatprep.subr.mxu0 0.0
        %1874 = vmatpush1.msra.mxu0 %v1773
        %1875 = vmatprep.subr.mxu0 0.0
        %1876 = vmatpush1.msra.mxu0 %v1775
        %1877 = vmatprep.subr.mxu0 0.0
        %1878 = vmatpush1.msra.mxu0 %v1777
        %1879 = vmatprep.subr.mxu0 0.0
        %1880 = vmatpush1.msra.mxu0 %v1779
        %1881 = vmatprep.subr.mxu0 0.0
        %1882 = vmatpush1.msra.mxu0 %v1781
        %1883 = vmatprep.subr.mxu0 0.0
        %1884 = vmatpush1.msra.mxu0 %v1783
        %1885 = vmatprep.subr.mxu0 0.0
        %1886 = vmatpush1.msra.mxu0 %v1785
        %1887 = vmatprep.subr.mxu0 0.0
        %1888 = vmatpush1.msra.mxu0 %v1787
        %1889 = vmatprep.subr.mxu0 0.0
        %1890 = vmatpush1.msra.mxu0 %v1789
        %1891 = vmatprep.subr.mxu0 0.0
        %1892 = vmatpush1.msra.mxu0 %v1791
        %1893 = vmatprep.mubr.f32.mxu0 %v791
        %1894 = vmatmul.mubr.f32.gmra.mrb[0].mxu0 %v790
        %v1895 = vpop.f32.mrb[0].mxu0
        %v1896 = vadd.f32 0.0, %v1895
        %v1897 = vpop.f32.mrb[0].mxu0
        %1898 = vmatprep.mubr.f32.mxu0 %v793
        %1899 = vmatmul.mubr.f32.gmra.mrb[0].mxu0 %v792
        %v1900 = vpop.f32.mrb[0].mxu0
        %v1901 = vadd.f32 0.0, %v1900
        %v1902 = vpop.f32.mrb[0].mxu0
        %1903 = vdwg.mxu0
        %v1904 = vrcp.pop %v1828
        %v1905 = vmul.f32 %v1896, %v1904
        %v1906 = vmul.f32 %v1901, %v1904
        %1907 = vst [vmem:[#allocation3 + $0x8] sm:$0xff] %v1905
        %1908 = vst [vmem:[#allocation3 + $0x18] sm:$0xff] %v1906
        %v1909 = vld [vmem:[#allocation2 + $0x60] sm:$0xff]
        %v1910 = vld [vmem:[#allocation2 + $0x68] sm:$0xff]
        %v1911 = vld [vmem:[#allocation2 + $0x70] sm:$0xff]
        %v1912 = vld [vmem:[#allocation2 + $0x78] sm:$0xff]
        %v1913 = vld [vmem:[#allocation2 + $0xa0] sm:$0xff]
        %v1914 = vld [vmem:[#allocation2 + $0xa8] sm:$0xff]
        %v1915 = vld [vmem:[#allocation2 + $0xb0] sm:$0xff]
        %v1916 = vld [vmem:[#allocation2 + $0xb8] sm:$0xff]
        %v1917 = vld [vmem:[#allocation2 + $0x20] sm:$0xff]
        %v1918 = vld [vmem:[#allocation2 + $0x30] sm:$0xff]
        %1919 = vxpose.xlu0.b32.start [1/16] %v1909, 128
        %1920 = vxpose.xlu0.b32.cont [2/16] %v1911, 128
        %1921 = vxpose.xlu0.b32.cont [3/16] 0.0, 128
        %1922 = vxpose.xlu0.b32.cont [4/16] 0.0, 128
        %1923 = vxpose.xlu0.b32.cont [5/16] 0.0, 128
        %1924 = vxpose.xlu0.b32.cont [6/16] 0.0, 128
        %1925 = vxpose.xlu0.b32.cont [7/16] 0.0, 128
        %1926 = vxpose.xlu0.b32.cont [8/16] 0.0, 128
        %1927 = vxpose.xlu0.b32.cont [9/16] 0.0, 128
        %1928 = vxpose.xlu0.b32.cont [10/16] 0.0, 128
        %1929 = vxpose.xlu0.b32.cont [11/16] 0.0, 128
        %1930 = vxpose.xlu0.b32.cont [12/16] 0.0, 128
        %1931 = vxpose.xlu0.b32.cont [13/16] 0.0, 128
        %1932 = vxpose.xlu0.b32.cont [14/16] 0.0, 128
        %1933 = vxpose.xlu0.b32.cont [15/16] 0.0, 128
        %1934 = vxpose.xlu0.b32.end [16/16] 0.0, 128
        %v1935 = vpop.trf.xlu0
        %v1936 = vpop.trf.xlu0
        %v1937 = vpop.trf.xlu0
        %v1938 = vpop.trf.xlu0
        %v1939 = vpop.trf.xlu0
        %v1940 = vpop.trf.xlu0
        %v1941 = vpop.trf.xlu0
        %v1942 = vpop.trf.xlu0
        %v1943 = vpop.trf.xlu0
        %v1944 = vpop.trf.xlu0
        %v1945 = vpop.trf.xlu0
        %v1946 = vpop.trf.xlu0
        %v1947 = vpop.trf.xlu0
        %v1948 = vpop.trf.xlu0
        %v1949 = vpop.trf.xlu0
        %v1950 = vpop.trf.xlu0
        %1951 = vxpose.xlu0.b32.start [1/16] %v1910, 128
        %1952 = vxpose.xlu0.b32.cont [2/16] %v1912, 128
        %1953 = vxpose.xlu0.b32.cont [3/16] 0.0, 128
        %1954 = vxpose.xlu0.b32.cont [4/16] 0.0, 128
        %1955 = vxpose.xlu0.b32.cont [5/16] 0.0, 128
        %1956 = vxpose.xlu0.b32.cont [6/16] 0.0, 128
        %1957 = vxpose.xlu0.b32.cont [7/16] 0.0, 128
        %1958 = vxpose.xlu0.b32.cont [8/16] 0.0, 128
        %1959 = vxpose.xlu0.b32.cont [9/16] 0.0, 128
        %1960 = vxpose.xlu0.b32.cont [10/16] 0.0, 128
        %1961 = vxpose.xlu0.b32.cont [11/16] 0.0, 128
        %1962 = vxpose.xlu0.b32.cont [12/16] 0.0, 128
        %1963 = vxpose.xlu0.b32.cont [13/16] 0.0, 128
        %1964 = vxpose.xlu0.b32.cont [14/16] 0.0, 128
        %1965 = vxpose.xlu0.b32.cont [15/16] 0.0, 128
        %1966 = vxpose.xlu0.b32.end [16/16] 0.0, 128
        %v1967 = vpop.trf.xlu0
        %v1968 = vpop.trf.xlu0
        %v1969 = vpop.trf.xlu0
        %v1970 = vpop.trf.xlu0
        %v1971 = vpop.trf.xlu0
        %v1972 = vpop.trf.xlu0
        %v1973 = vpop.trf.xlu0
        %v1974 = vpop.trf.xlu0
        %v1975 = vpop.trf.xlu0
        %v1976 = vpop.trf.xlu0
        %v1977 = vpop.trf.xlu0
        %v1978 = vpop.trf.xlu0
        %v1979 = vpop.trf.xlu0
        %v1980 = vpop.trf.xlu0
        %v1981 = vpop.trf.xlu0
        %v1982 = vpop.trf.xlu0
        %v1984 = vsel %vm860, %v1935, 0
        %v1987 = vsel %vm860, %v1936, 0
        %v1990 = vsel %vm860, %v1937, 0
        %v1993 = vsel %vm860, %v1938, 0
        %v1996 = vsel %vm860, %v1939, 0
        %v1999 = vsel %vm860, %v1940, 0
        %v2002 = vsel %vm860, %v1941, 0
        %v2005 = vsel %vm860, %v1942, 0
        %v2008 = vsel %vm860, %v1943, 0
        %v2011 = vsel %vm860, %v1944, 0
        %v2014 = vsel %vm860, %v1945, 0
        %v2017 = vsel %vm860, %v1946, 0
        %v2020 = vsel %vm860, %v1947, 0
        %v2023 = vsel %vm860, %v1948, 0
        %v2026 = vsel %vm860, %v1949, 0
        %v2029 = vsel %vm860, %v1950, 0
        %v2032 = vsel %vm860, %v1967, 0
        %v2035 = vsel %vm860, %v1968, 0
        %v2038 = vsel %vm860, %v1969, 0
        %v2041 = vsel %vm860, %v1970, 0
        %v2044 = vsel %vm860, %v1971, 0
        %v2047 = vsel %vm860, %v1972, 0
        %v2050 = vsel %vm860, %v1973, 0
        %v2053 = vsel %vm860, %v1974, 0
        %v2056 = vsel %vm860, %v1975, 0
        %v2059 = vsel %vm860, %v1976, 0
        %v2062 = vsel %vm860, %v1977, 0
        %v2065 = vsel %vm860, %v1978, 0
        %v2068 = vsel %vm860, %v1979, 0
        %v2071 = vsel %vm860, %v1980, 0
        %v2074 = vsel %vm860, %v1981, 0
        %v2077 = vsel %vm860, %v1982, 0
        %2079 = vmatprep.subr.mxu0 0.0
        %2080 = vmatpush1.msra.mxu0 %v1917
        %2081 = vmatprep.subr.mxu0 0.0
        %2082 = vmatpush1.msra.mxu0 %v1918
        %2083 = vmatprep.subr.mxu0 0.0
        %2084 = vmatpush1.msra.mxu0 0.0
        %2085 = vmatprep.subr.mxu0 0.0
        %2086 = vmatpush1.msra.mxu0 0.0
        %2087 = vmatprep.subr.mxu0 0.0
        %2088 = vmatpush1.msra.mxu0 0.0
        %2089 = vmatprep.subr.mxu0 0.0
        %2090 = vmatpush1.msra.mxu0 0.0
        %2091 = vmatprep.subr.mxu0 0.0
        %2092 = vmatpush1.msra.mxu0 0.0
        %2093 = vmatprep.subr.mxu0 0.0
        %2094 = vmatpush1.msra.mxu0 0.0
        %2095 = vmatprep.subr.mxu0 0.0
        %2096 = vmatpush1.msra.mxu0 0.0
        %2097 = vmatprep.subr.mxu0 0.0
        %2098 = vmatpush1.msra.mxu0 0.0
        %2099 = vmatprep.subr.mxu0 0.0
        %2100 = vmatpush1.msra.mxu0 0.0
        %2101 = vmatprep.subr.mxu0 0.0
        %2102 = vmatpush1.msra.mxu0 0.0
        %2103 = vmatprep.subr.mxu0 0.0
        %2104 = vmatpush1.msra.mxu0 0.0
        %2105 = vmatprep.subr.mxu0 0.0
        %2106 = vmatpush1.msra.mxu0 0.0
        %2107 = vmatprep.subr.mxu0 0.0
        %2108 = vmatpush1.msra.mxu0 0.0
        %2109 = vmatprep.subr.mxu0 0.0
        %2110 = vmatpush1.msra.mxu0 0.0
        %2111 = vmatprep.subr.mxu0 0.0
        %2112 = vmatpush1.msra.mxu0 0.0
        %2113 = vmatprep.subr.mxu0 0.0
        %2114 = vmatpush1.msra.mxu0 0.0
        %2115 = vmatprep.subr.mxu0 0.0
        %2116 = vmatpush1.msra.mxu0 0.0
        %2117 = vmatprep.subr.mxu0 0.0
        %2118 = vmatpush1.msra.mxu0 0.0
        %2119 = vmatprep.subr.mxu0 0.0
        %2120 = vmatpush1.msra.mxu0 0.0
        %2121 = vmatprep.subr.mxu0 0.0
        %2122 = vmatpush1.msra.mxu0 0.0
        %2123 = vmatprep.subr.mxu0 0.0
        %2124 = vmatpush1.msra.mxu0 0.0
        %2125 = vmatprep.subr.mxu0 0.0
        %2126 = vmatpush1.msra.mxu0 0.0
        %2127 = vmatprep.subr.mxu0 0.0
        %2128 = vmatpush1.msra.mxu0 0.0
        %2129 = vmatprep.subr.mxu0 0.0
        %2130 = vmatpush1.msra.mxu0 0.0
        %2131 = vmatprep.subr.mxu0 0.0
        %2132 = vmatpush1.msra.mxu0 0.0
        %2133 = vmatprep.subr.mxu0 0.0
        %2134 = vmatpush1.msra.mxu0 0.0
        %2135 = vmatprep.subr.mxu0 0.0
        %2136 = vmatpush1.msra.mxu0 0.0
        %2137 = vmatprep.subr.mxu0 0.0
        %2138 = vmatpush1.msra.mxu0 0.0
        %2139 = vmatprep.subr.mxu0 0.0
        %2140 = vmatpush1.msra.mxu0 0.0
        %2141 = vmatprep.subr.mxu0 0.0
        %2142 = vmatpush1.msra.mxu0 0.0
        %2143 = vmatprep.mubr.f32.mxu0 0.0
        %2144 = vmatmul.mubr.f32.gmra.mrb[0].mxu0 %v1984
        %v2145 = vpop.f32.mrb[0].mxu0
        %v2146 = vadd.f32 0.0, %v2145
        %v2147 = vpop.f32.mrb[0].mxu0
        %2148 = vmatprep.mubr.f32.mxu0 0.0
        %2149 = vmatmul.mubr.f32.gmra.mrb[0].mxu0 %v1987
        %v2150 = vpop.f32.mrb[0].mxu0
        %v2151 = vadd.f32 0.0, %v2150
        %v2152 = vpop.f32.mrb[0].mxu0
        %2153 = vmatprep.mubr.f32.mxu0 0.0
        %2154 = vmatmul.mubr.f32.gmra.mrb[0].mxu0 %v1990
        %v2155 = vpop.f32.mrb[0].mxu0
        %v2156 = vadd.f32 0.0, %v2155
        %v2157 = vpop.f32.mrb[0].mxu0
        %2158 = vmatprep.mubr.f32.mxu0 0.0
        %2159 = vmatmul.mubr.f32.gmra.mrb[0].mxu0 %v1993
        %v2160 = vpop.f32.mrb[0].mxu0
        %v2161 = vadd.f32 0.0, %v2160
        %v2162 = vpop.f32.mrb[0].mxu0
        %2163 = vmatprep.mubr.f32.mxu0 0.0
        %2164 = vmatmul.mubr.f32.gmra.mrb[0].mxu0 %v1996
        %v2165 = vpop.f32.mrb[0].mxu0
        %v2166 = vadd.f32 0.0, %v2165
        %v2167 = vpop.f32.mrb[0].mxu0
        %2168 = vmatprep.mubr.f32.mxu0 0.0
        %2169 = vmatmul.mubr.f32.gmra.mrb[0].mxu0 %v1999
        %v2170 = vpop.f32.mrb[0].mxu0
        %v2171 = vadd.f32 0.0, %v2170
        %v2172 = vpop.f32.mrb[0].mxu0
        %2173 = vmatprep.mubr.f32.mxu0 0.0
        %2174 = vmatmul.mubr.f32.gmra.mrb[0].mxu0 %v2002
        %v2175 = vpop.f32.mrb[0].mxu0
        %v2176 = vadd.f32 0.0, %v2175
        %v2177 = vpop.f32.mrb[0].mxu0
        %2178 = vmatprep.mubr.f32.mxu0 0.0
        %2179 = vmatmul.mubr.f32.gmra.mrb[0].mxu0 %v2005
        %v2180 = vpop.f32.mrb[0].mxu0
        %v2181 = vadd.f32 0.0, %v2180
        %v2182 = vpop.f32.mrb[0].mxu0
        %2183 = vmatprep.mubr.f32.mxu0 0.0
        %2184 = vmatmul.mubr.f32.gmra.mrb[0].mxu0 %v2008
        %v2185 = vpop.f32.mrb[0].mxu0
        %v2186 = vadd.f32 0.0, %v2185
        %v2187 = vpop.f32.mrb[0].mxu0
        %2188 = vmatprep.mubr.f32.mxu0 0.0
        %2189 = vmatmul.mubr.f32.gmra.mrb[0].mxu0 %v2011
        %v2190 = vpop.f32.mrb[0].mxu0
        %v2191 = vadd.f32 0.0, %v2190
        %v2192 = vpop.f32.mrb[0].mxu0
        %2193 = vmatprep.mubr.f32.mxu0 0.0
        %2194 = vmatmul.mubr.f32.gmra.mrb[0].mxu0 %v2014
        %v2195 = vpop.f32.mrb[0].mxu0
        %v2196 = vadd.f32 0.0, %v2195
        %v2197 = vpop.f32.mrb[0].mxu0
        %2198 = vmatprep.mubr.f32.mxu0 0.0
        %2199 = vmatmul.mubr.f32.gmra.mrb[0].mxu0 %v2017
        %v2200 = vpop.f32.mrb[0].mxu0
        %v2201 = vadd.f32 0.0, %v2200
        %v2202 = vpop.f32.mrb[0].mxu0
        %2203 = vmatprep.mubr.f32.mxu0 0.0
        %2204 = vmatmul.mubr.f32.gmra.mrb[0].mxu0 %v2020
        %v2205 = vpop.f32.mrb[0].mxu0
        %v2206 = vadd.f32 0.0, %v2205
        %v2207 = vpop.f32.mrb[0].mxu0
        %2208 = vmatprep.mubr.f32.mxu0 0.0
        %2209 = vmatmul.mubr.f32.gmra.mrb[0].mxu0 %v2023
        %v2210 = vpop.f32.mrb[0].mxu0
        %v2211 = vadd.f32 0.0, %v2210
        %v2212 = vpop.f32.mrb[0].mxu0
        %2213 = vmatprep.mubr.f32.mxu0 0.0
        %2214 = vmatmul.mubr.f32.gmra.mrb[0].mxu0 %v2026
        %v2215 = vpop.f32.mrb[0].mxu0
        %v2216 = vadd.f32 0.0, %v2215
        %v2217 = vpop.f32.mrb[0].mxu0
        %2218 = vmatprep.mubr.f32.mxu0 0.0
        %2219 = vmatmul.mubr.f32.gmra.mrb[0].mxu0 %v2029
        %v2220 = vpop.f32.mrb[0].mxu0
        %v2221 = vadd.f32 0.0, %v2220
        %v2222 = vpop.f32.mrb[0].mxu0
        %2223 = vmatprep.mubr.f32.mxu0 0.0
        %2224 = vmatmul.mubr.f32.gmra.mrb[0].mxu0 %v2032
        %v2225 = vpop.f32.mrb[0].mxu0
        %v2226 = vadd.f32 0.0, %v2225
        %v2227 = vpop.f32.mrb[0].mxu0
        %2228 = vmatprep.mubr.f32.mxu0 0.0
        %2229 = vmatmul.mubr.f32.gmra.mrb[0].mxu0 %v2035
        %v2230 = vpop.f32.mrb[0].mxu0
        %v2231 = vadd.f32 0.0, %v2230
        %v2232 = vpop.f32.mrb[0].mxu0
        %2233 = vmatprep.mubr.f32.mxu0 0.0
        %2234 = vmatmul.mubr.f32.gmra.mrb[0].mxu0 %v2038
        %v2235 = vpop.f32.mrb[0].mxu0
        %v2236 = vadd.f32 0.0, %v2235
        %v2237 = vpop.f32.mrb[0].mxu0
        %2238 = vmatprep.mubr.f32.mxu0 0.0
        %2239 = vmatmul.mubr.f32.gmra.mrb[0].mxu0 %v2041
        %v2240 = vpop.f32.mrb[0].mxu0
        %v2241 = vadd.f32 0.0, %v2240
        %v2242 = vpop.f32.mrb[0].mxu0
        %2243 = vmatprep.mubr.f32.mxu0 0.0
        %2244 = vmatmul.mubr.f32.gmra.mrb[0].mxu0 %v2044
        %v2245 = vpop.f32.mrb[0].mxu0
        %v2246 = vadd.f32 0.0, %v2245
        %v2247 = vpop.f32.mrb[0].mxu0
        %2248 = vmatprep.mubr.f32.mxu0 0.0
        %2249 = vmatmul.mubr.f32.gmra.mrb[0].mxu0 %v2047
        %v2250 = vpop.f32.mrb[0].mxu0
        %v2251 = vadd.f32 0.0, %v2250
        %v2252 = vpop.f32.mrb[0].mxu0
        %2253 = vmatprep.mubr.f32.mxu0 0.0
        %2254 = vmatmul.mubr.f32.gmra.mrb[0].mxu0 %v2050
        %v2255 = vpop.f32.mrb[0].mxu0
        %v2256 = vadd.f32 0.0, %v2255
        %v2257 = vpop.f32.mrb[0].mxu0
        %2258 = vmatprep.mubr.f32.mxu0 0.0
        %2259 = vmatmul.mubr.f32.gmra.mrb[0].mxu0 %v2053
        %v2260 = vpop.f32.mrb[0].mxu0
        %v2261 = vadd.f32 0.0, %v2260
        %v2262 = vpop.f32.mrb[0].mxu0
        %2263 = vmatprep.mubr.f32.mxu0 0.0
        %2264 = vmatmul.mubr.f32.gmra.mrb[0].mxu0 %v2056
        %v2265 = vpop.f32.mrb[0].mxu0
        %v2266 = vadd.f32 0.0, %v2265
        %v2267 = vpop.f32.mrb[0].mxu0
        %2268 = vmatprep.mubr.f32.mxu0 0.0
        %2269 = vmatmul.mubr.f32.gmra.mrb[0].mxu0 %v2059
        %v2270 = vpop.f32.mrb[0].mxu0
        %v2271 = vadd.f32 0.0, %v2270
        %v2272 = vpop.f32.mrb[0].mxu0
        %2273 = vmatprep.mubr.f32.mxu0 0.0
        %2274 = vmatmul.mubr.f32.gmra.mrb[0].mxu0 %v2062
        %v2275 = vpop.f32.mrb[0].mxu0
        %v2276 = vadd.f32 0.0, %v2275
        %v2277 = vpop.f32.mrb[0].mxu0
        %2278 = vmatprep.mubr.f32.mxu0 0.0
        %2279 = vmatmul.mubr.f32.gmra.mrb[0].mxu0 %v2065
        %v2280 = vpop.f32.mrb[0].mxu0
        %v2281 = vadd.f32 0.0, %v2280
        %v2282 = vpop.f32.mrb[0].mxu0
        %2283 = vmatprep.mubr.f32.mxu0 0.0
        %2284 = vmatmul.mubr.f32.gmra.mrb[0].mxu0 %v2068
        %v2285 = vpop.f32.mrb[0].mxu0
        %v2286 = vadd.f32 0.0, %v2285
        %v2287 = vpop.f32.mrb[0].mxu0
        %2288 = vmatprep.mubr.f32.mxu0 0.0
        %2289 = vmatmul.mubr.f32.gmra.mrb[0].mxu0 %v2071
        %v2290 = vpop.f32.mrb[0].mxu0
        %v2291 = vadd.f32 0.0, %v2290
        %v2292 = vpop.f32.mrb[0].mxu0
        %2293 = vmatprep.mubr.f32.mxu0 0.0
        %2294 = vmatmul.mubr.f32.gmra.mrb[0].mxu0 %v2074
        %v2295 = vpop.f32.mrb[0].mxu0
        %v2296 = vadd.f32 0.0, %v2295
        %v2297 = vpop.f32.mrb[0].mxu0
        %2298 = vmatprep.mubr.f32.mxu0 0.0
        %2299 = vmatmul.mubr.f32.gmra.mrb[0].mxu0 %v2077
        %v2300 = vpop.f32.mrb[0].mxu0
        %v2301 = vadd.f32 0.0, %v2300
        %v2302 = vpop.f32.mrb[0].mxu0
        %2303 = vdwg.mxu0
        %v2304 = vmax.f32 %v2146, %v2166
        %v2305 = vmax.f32 %v2151, %v2171
        %v2306 = vmax.f32 %v2156, %v2176
        %v2307 = vmax.f32 %v2161, %v2181
        %v2308 = vmax.f32 %v2304, %v2186
        %v2309 = vmax.f32 %v2305, %v2191
        %v2310 = vmax.f32 %v2306, %v2196
        %v2311 = vmax.f32 %v2307, %v2201
        %v2312 = vmax.f32 %v2308, %v2206
        %v2313 = vmax.f32 %v2309, %v2211
        %v2314 = vmax.f32 %v2310, %v2216
        %v2315 = vmax.f32 %v2311, %v2221
        %v2316 = vmax.f32 %v2312, %v2226
        %v2317 = vmax.f32 %v2313, %v2231
        %v2318 = vmax.f32 %v2314, %v2236
        %v2319 = vmax.f32 %v2315, %v2241
        %v2320 = vmax.f32 %v2316, %v2246
        %v2321 = vmax.f32 %v2317, %v2251
        %v2322 = vmax.f32 %v2318, %v2256
        %v2323 = vmax.f32 %v2319, %v2261
        %v2324 = vmax.f32 %v2320, %v2266
        %v2325 = vmax.f32 %v2321, %v2271
        %v2326 = vmax.f32 %v2322, %v2276
        %v2327 = vmax.f32 %v2323, %v2281
        %v2328 = vmax.f32 %v2324, %v2286
        %v2329 = vmax.f32 %v2325, %v2291
        %v2330 = vmax.f32 %v2326, %v2296
        %v2331 = vmax.f32 %v2327, %v2301
        %v2332 = vmax.f32 %v2328, %v2329
        %v2333 = vmax.f32 %v2330, %v2331
        %v2334 = vmax.f32 %v2332, %v2333
        %v2335 = vrot.slane %v2334, 4
        %v2336 = vmax.f32 %v2334, %v2335
        %v2337 = vrot.slane %v2336, 2
        %v2338 = vmax.f32 %v2336, %v2337
        %v2339 = vrot.slane %v2338, 1
        %v2340 = vmax.f32 %v2338, %v2339
        %v2341 = vsub.f32 %v2146, %v2340
        %v2342 = vsub.f32 %v2151, %v2340
        %v2343 = vsub.f32 %v2156, %v2340
        %v2344 = vsub.f32 %v2161, %v2340
        %v2345 = vsub.f32 %v2166, %v2340
        %v2346 = vsub.f32 %v2171, %v2340
        %v2347 = vsub.f32 %v2176, %v2340
        %v2348 = vsub.f32 %v2181, %v2340
        %v2349 = vsub.f32 %v2186, %v2340
        %v2350 = vsub.f32 %v2191, %v2340
        %v2351 = vsub.f32 %v2196, %v2340
        %v2352 = vsub.f32 %v2201, %v2340
        %v2353 = vsub.f32 %v2206, %v2340
        %v2354 = vsub.f32 %v2211, %v2340
        %v2355 = vsub.f32 %v2216, %v2340
        %v2356 = vsub.f32 %v2221, %v2340
        %v2357 = vsub.f32 %v2226, %v2340
        %v2358 = vsub.f32 %v2231, %v2340
        %v2359 = vsub.f32 %v2236, %v2340
        %v2360 = vsub.f32 %v2241, %v2340
        %v2361 = vsub.f32 %v2246, %v2340
        %v2362 = vsub.f32 %v2251, %v2340
        %v2363 = vsub.f32 %v2256, %v2340
        %v2364 = vsub.f32 %v2261, %v2340
        %v2365 = vsub.f32 %v2266, %v2340
        %v2366 = vsub.f32 %v2271, %v2340
        %v2367 = vsub.f32 %v2276, %v2340
        %v2368 = vsub.f32 %v2281, %v2340
        %v2369 = vsub.f32 %v2286, %v2340
        %v2370 = vsub.f32 %v2291, %v2340
        %v2371 = vsub.f32 %v2296, %v2340
        %v2372 = vsub.f32 %v2301, %v2340
        %v2373 = vmul.f32 %v2341, 1.442695
        %v2374 = vpow.pop %v2373
        %v2375 = vmul.f32 %v2342, 1.442695
        %v2376 = vpow.pop %v2375
        %v2377 = vmul.f32 %v2343, 1.442695
        %v2378 = vpow.pop %v2377
        %v2379 = vmul.f32 %v2344, 1.442695
        %v2380 = vpow.pop %v2379
        %v2381 = vmul.f32 %v2345, 1.442695
        %v2382 = vpow.pop %v2381
        %v2383 = vmul.f32 %v2346, 1.442695
        %v2384 = vpow.pop %v2383
        %v2385 = vmul.f32 %v2347, 1.442695
        %v2386 = vpow.pop %v2385
        %v2387 = vmul.f32 %v2348, 1.442695
        %v2388 = vpow.pop %v2387
        %v2389 = vmul.f32 %v2349, 1.442695
        %v2390 = vpow.pop %v2389
        %v2391 = vmul.f32 %v2350, 1.442695
        %v2392 = vpow.pop %v2391
        %v2393 = vmul.f32 %v2351, 1.442695
        %v2394 = vpow.pop %v2393
        %v2395 = vmul.f32 %v2352, 1.442695
        %v2396 = vpow.pop %v2395
        %v2397 = vmul.f32 %v2353, 1.442695
        %v2398 = vpow.pop %v2397
        %v2399 = vmul.f32 %v2354, 1.442695
        %v2400 = vpow.pop %v2399
        %v2401 = vmul.f32 %v2355, 1.442695
        %v2402 = vpow.pop %v2401
        %v2403 = vmul.f32 %v2356, 1.442695
        %v2404 = vpow.pop %v2403
        %v2405 = vmul.f32 %v2357, 1.442695
        %v2406 = vpow.pop %v2405
        %v2407 = vmul.f32 %v2358, 1.442695
        %v2408 = vpow.pop %v2407
        %v2409 = vmul.f32 %v2359, 1.442695
        %v2410 = vpow.pop %v2409
        %v2411 = vmul.f32 %v2360, 1.442695
        %v2412 = vpow.pop %v2411
        %v2413 = vmul.f32 %v2361, 1.442695
        %v2414 = vpow.pop %v2413
        %v2415 = vmul.f32 %v2362, 1.442695
        %v2416 = vpow.pop %v2415
        %v2417 = vmul.f32 %v2363, 1.442695
        %v2418 = vpow.pop %v2417
        %v2419 = vmul.f32 %v2364, 1.442695
        %v2420 = vpow.pop %v2419
        %v2421 = vmul.f32 %v2365, 1.442695
        %v2422 = vpow.pop %v2421
        %v2423 = vmul.f32 %v2366, 1.442695
        %v2424 = vpow.pop %v2423
        %v2425 = vmul.f32 %v2367, 1.442695
        %v2426 = vpow.pop %v2425
        %v2427 = vmul.f32 %v2368, 1.442695
        %v2428 = vpow.pop %v2427
        %v2429 = vmul.f32 %v2369, 1.442695
        %v2430 = vpow.pop %v2429
        %v2431 = vmul.f32 %v2370, 1.442695
        %v2432 = vpow.pop %v2431
        %v2433 = vmul.f32 %v2371, 1.442695
        %v2434 = vpow.pop %v2433
        %v2435 = vmul.f32 %v2372, 1.442695
        %v2436 = vpow.pop %v2435
        %v2437 = vadd.f32 %v2374, %v2376
        %v2438 = vadd.f32 %v2437, %v2378
        %v2439 = vadd.f32 %v2438, %v2380
        %v2440 = vadd.f32 %v2439, %v2382
        %v2441 = vadd.f32 %v2440, %v2384
        %v2442 = vadd.f32 %v2441, %v2386
        %v2443 = vadd.f32 %v2442, %v2388
        %v2444 = vadd.f32 %v2443, %v2390
        %v2445 = vadd.f32 %v2444, %v2392
        %v2446 = vadd.f32 %v2445, %v2394
        %v2447 = vadd.f32 %v2446, %v2396
        %v2448 = vadd.f32 %v2447, %v2398
        %v2449 = vadd.f32 %v2448, %v2400
        %v2450 = vadd.f32 %v2449, %v2402
        %v2451 = vadd.f32 %v2450, %v2404
        %v2452 = vadd.f32 %v2451, %v2406
        %v2453 = vadd.f32 %v2452, %v2408
        %v2454 = vadd.f32 %v2453, %v2410
        %v2455 = vadd.f32 %v2454, %v2412
        %v2456 = vadd.f32 %v2455, %v2414
        %v2457 = vadd.f32 %v2456, %v2416
        %v2458 = vadd.f32 %v2457, %v2418
        %v2459 = vadd.f32 %v2458, %v2420
        %v2460 = vadd.f32 %v2459, %v2422
        %v2461 = vadd.f32 %v2460, %v2424
        %v2462 = vadd.f32 %v2461, %v2426
        %v2463 = vadd.f32 %v2462, %v2428
        %v2464 = vadd.f32 %v2463, %v2430
        %v2465 = vadd.f32 %v2464, %v2432
        %v2466 = vadd.f32 %v2465, %v2434
        %v2467 = vadd.f32 %v2466, %v2436
        %v2468 = vrot.slane %v2467, 4
        %v2469 = vadd.f32 %v2467, %v2468
        %v2470 = vrot.slane %v2469, 2
        %v2471 = vadd.f32 %v2469, %v2470
        %v2472 = vrot.slane %v2471, 1
        %v2473 = vadd.f32 %v2471, %v2472
        %2474 = vmatprep.subr.mxu0 0.0
        %2475 = vmatpush1.msra.mxu0 %v2374
        %2476 = vmatprep.subr.mxu0 0.0
        %2477 = vmatpush1.msra.mxu0 %v2376
        %2478 = vmatprep.subr.mxu0 0.0
        %2479 = vmatpush1.msra.mxu0 %v2378
        %2480 = vmatprep.subr.mxu0 0.0
        %2481 = vmatpush1.msra.mxu0 %v2380
        %2482 = vmatprep.subr.mxu0 0.0
        %2483 = vmatpush1.msra.mxu0 %v2382
        %2484 = vmatprep.subr.mxu0 0.0
        %2485 = vmatpush1.msra.mxu0 %v2384
        %2486 = vmatprep.subr.mxu0 0.0
        %2487 = vmatpush1.msra.mxu0 %v2386
        %2488 = vmatprep.subr.mxu0 0.0
        %2489 = vmatpush1.msra.mxu0 %v2388
        %2490 = vmatprep.subr.mxu0 0.0
        %2491 = vmatpush1.msra.mxu0 %v2390
        %2492 = vmatprep.subr.mxu0 0.0
        %2493 = vmatpush1.msra.mxu0 %v2392
        %2494 = vmatprep.subr.mxu0 0.0
        %2495 = vmatpush1.msra.mxu0 %v2394
        %2496 = vmatprep.subr.mxu0 0.0
        %2497 = vmatpush1.msra.mxu0 %v2396
        %2498 = vmatprep.subr.mxu0 0.0
        %2499 = vmatpush1.msra.mxu0 %v2398
        %2500 = vmatprep.subr.mxu0 0.0
        %2501 = vmatpush1.msra.mxu0 %v2400
        %2502 = vmatprep.subr.mxu0 0.0
        %2503 = vmatpush1.msra.mxu0 %v2402
        %2504 = vmatprep.subr.mxu0 0.0
        %2505 = vmatpush1.msra.mxu0 %v2404
        %2506 = vmatprep.subr.mxu0 0.0
        %2507 = vmatpush1.msra.mxu0 %v2406
        %2508 = vmatprep.subr.mxu0 0.0
        %2509 = vmatpush1.msra.mxu0 %v2408
        %2510 = vmatprep.subr.mxu0 0.0
        %2511 = vmatpush1.msra.mxu0 %v2410
        %2512 = vmatprep.subr.mxu0 0.0
        %2513 = vmatpush1.msra.mxu0 %v2412
        %2514 = vmatprep.subr.mxu0 0.0
        %2515 = vmatpush1.msra.mxu0 %v2414
        %2516 = vmatprep.subr.mxu0 0.0
        %2517 = vmatpush1.msra.mxu0 %v2416
        %2518 = vmatprep.subr.mxu0 0.0
        %2519 = vmatpush1.msra.mxu0 %v2418
        %2520 = vmatprep.subr.mxu0 0.0
        %2521 = vmatpush1.msra.mxu0 %v2420
        %2522 = vmatprep.subr.mxu0 0.0
        %2523 = vmatpush1.msra.mxu0 %v2422
        %2524 = vmatprep.subr.mxu0 0.0
        %2525 = vmatpush1.msra.mxu0 %v2424
        %2526 = vmatprep.subr.mxu0 0.0
        %2527 = vmatpush1.msra.mxu0 %v2426
        %2528 = vmatprep.subr.mxu0 0.0
        %2529 = vmatpush1.msra.mxu0 %v2428
        %2530 = vmatprep.subr.mxu0 0.0
        %2531 = vmatpush1.msra.mxu0 %v2430
        %2532 = vmatprep.subr.mxu0 0.0
        %2533 = vmatpush1.msra.mxu0 %v2432
        %2534 = vmatprep.subr.mxu0 0.0
        %2535 = vmatpush1.msra.mxu0 %v2434
        %2536 = vmatprep.subr.mxu0 0.0
        %2537 = vmatpush1.msra.mxu0 %v2436
        %2538 = vmatprep.mubr.f32.mxu0 %v1914
        %2539 = vmatmul.mubr.f32.gmra.mrb[0].mxu0 %v1913
        %v2540 = vpop.f32.mrb[0].mxu0
        %v2541 = vadd.f32 0.0, %v2540
        %v2542 = vpop.f32.mrb[0].mxu0
        %2543 = vmatprep.mubr.f32.mxu0 %v1916
        %2544 = vmatmul.mubr.f32.gmra.mrb[0].mxu0 %v1915
        %v2545 = vpop.f32.mrb[0].mxu0
        %v2546 = vadd.f32 0.0, %v2545
        %v2547 = vpop.f32.mrb[0].mxu0
        %2548 = vdwg.mxu0
        %v2549 = vrcp.pop %v2473
        %v2550 = vmul.f32 %v2541, %v2549
        %v2551 = vmul.f32 %v2546, %v2549
        %2552 = vst [vmem:[#allocation3 + $0x20] sm:$0xff] %v2550
        %2553 = vst [vmem:[#allocation3 + $0x30] sm:$0xff] %v2551
        %v2554 = vld [vmem:[#allocation2 + $0x28] sm:$0xff]
        %v2555 = vld [vmem:[#allocation2 + $0x38] sm:$0xff]
        %2556 = vmatprep.subr.mxu0 0.0
        %2557 = vmatpush1.msra.mxu0 %v2554
        %2558 = vmatprep.subr.mxu0 0.0
        %2559 = vmatpush1.msra.mxu0 %v2555
        %2560 = vmatprep.subr.mxu0 0.0
        %2561 = vmatpush1.msra.mxu0 0.0
        %2562 = vmatprep.subr.mxu0 0.0
        %2563 = vmatpush1.msra.mxu0 0.0
        %2564 = vmatprep.subr.mxu0 0.0
        %2565 = vmatpush1.msra.mxu0 0.0
        %2566 = vmatprep.subr.mxu0 0.0
        %2567 = vmatpush1.msra.mxu0 0.0
        %2568 = vmatprep.subr.mxu0 0.0
        %2569 = vmatpush1.msra.mxu0 0.0
        %2570 = vmatprep.subr.mxu0 0.0
        %2571 = vmatpush1.msra.mxu0 0.0
        %2572 = vmatprep.subr.mxu0 0.0
        %2573 = vmatpush1.msra.mxu0 0.0
        %2574 = vmatprep.subr.mxu0 0.0
        %2575 = vmatpush1.msra.mxu0 0.0
        %2576 = vmatprep.subr.mxu0 0.0
        %2577 = vmatpush1.msra.mxu0 0.0
        %2578 = vmatprep.subr.mxu0 0.0
        %2579 = vmatpush1.msra.mxu0 0.0
        %2580 = vmatprep.subr.mxu0 0.0
        %2581 = vmatpush1.msra.mxu0 0.0
        %2582 = vmatprep.subr.mxu0 0.0
        %2583 = vmatpush1.msra.mxu0 0.0
        %2584 = vmatprep.subr.mxu0 0.0
        %2585 = vmatpush1.msra.mxu0 0.0
        %2586 = vmatprep.subr.mxu0 0.0
        %2587 = vmatpush1.msra.mxu0 0.0
        %2588 = vmatprep.subr.mxu0 0.0
        %2589 = vmatpush1.msra.mxu0 0.0
        %2590 = vmatprep.subr.mxu0 0.0
        %2591 = vmatpush1.msra.mxu0 0.0
        %2592 = vmatprep.subr.mxu0 0.0
        %2593 = vmatpush1.msra.mxu0 0.0
        %2594 = vmatprep.subr.mxu0 0.0
        %2595 = vmatpush1.msra.mxu0 0.0
        %2596 = vmatprep.subr.mxu0 0.0
        %2597 = vmatpush1.msra.mxu0 0.0
        %2598 = vmatprep.subr.mxu0 0.0
        %2599 = vmatpush1.msra.mxu0 0.0
        %2600 = vmatprep.subr.mxu0 0.0
        %2601 = vmatpush1.msra.mxu0 0.0
        %2602 = vmatprep.subr.mxu0 0.0
        %2603 = vmatpush1.msra.mxu0 0.0
        %2604 = vmatprep.subr.mxu0 0.0
        %2605 = vmatpush1.msra.mxu0 0.0
        %2606 = vmatprep.subr.mxu0 0.0
        %2607 = vmatpush1.msra.mxu0 0.0
        %2608 = vmatprep.subr.mxu0 0.0
        %2609 = vmatpush1.msra.mxu0 0.0
        %2610 = vmatprep.subr.mxu0 0.0
        %2611 = vmatpush1.msra.mxu0 0.0
        %2612 = vmatprep.subr.mxu0 0.0
        %2613 = vmatpush1.msra.mxu0 0.0
        %2614 = vmatprep.subr.mxu0 0.0
        %2615 = vmatpush1.msra.mxu0 0.0
        %2616 = vmatprep.subr.mxu0 0.0
        %2617 = vmatpush1.msra.mxu0 0.0
        %2618 = vmatprep.subr.mxu0 0.0
        %2619 = vmatpush1.msra.mxu0 0.0
        %2620 = vmatprep.mubr.f32.mxu0 0.0
        %2621 = vmatmul.mubr.f32.gmra.mrb[0].mxu0 %v1984
        %v2622 = vpop.f32.mrb[0].mxu0
        %v2623 = vadd.f32 0.0, %v2622
        %v2624 = vpop.f32.mrb[0].mxu0
        %2625 = vmatprep.mubr.f32.mxu0 0.0
        %2626 = vmatmul.mubr.f32.gmra.mrb[0].mxu0 %v1987
        %v2627 = vpop.f32.mrb[0].mxu0
        %v2628 = vadd.f32 0.0, %v2627
        %v2629 = vpop.f32.mrb[0].mxu0
        %2630 = vmatprep.mubr.f32.mxu0 0.0
        %2631 = vmatmul.mubr.f32.gmra.mrb[0].mxu0 %v1990
        %v2632 = vpop.f32.mrb[0].mxu0
        %v2633 = vadd.f32 0.0, %v2632
        %v2634 = vpop.f32.mrb[0].mxu0
        %2635 = vmatprep.mubr.f32.mxu0 0.0
        %2636 = vmatmul.mubr.f32.gmra.mrb[0].mxu0 %v1993
        %v2637 = vpop.f32.mrb[0].mxu0
        %v2638 = vadd.f32 0.0, %v2637
        %v2639 = vpop.f32.mrb[0].mxu0
        %2640 = vmatprep.mubr.f32.mxu0 0.0
        %2641 = vmatmul.mubr.f32.gmra.mrb[0].mxu0 %v1996
        %v2642 = vpop.f32.mrb[0].mxu0
        %v2643 = vadd.f32 0.0, %v2642
        %v2644 = vpop.f32.mrb[0].mxu0
        %2645 = vmatprep.mubr.f32.mxu0 0.0
        %2646 = vmatmul.mubr.f32.gmra.mrb[0].mxu0 %v1999
        %v2647 = vpop.f32.mrb[0].mxu0
        %v2648 = vadd.f32 0.0, %v2647
        %v2649 = vpop.f32.mrb[0].mxu0
        %2650 = vmatprep.mubr.f32.mxu0 0.0
        %2651 = vmatmul.mubr.f32.gmra.mrb[0].mxu0 %v2002
        %v2652 = vpop.f32.mrb[0].mxu0
        %v2653 = vadd.f32 0.0, %v2652
        %v2654 = vpop.f32.mrb[0].mxu0
        %2655 = vmatprep.mubr.f32.mxu0 0.0
        %2656 = vmatmul.mubr.f32.gmra.mrb[0].mxu0 %v2005
        %v2657 = vpop.f32.mrb[0].mxu0
        %v2658 = vadd.f32 0.0, %v2657
        %v2659 = vpop.f32.mrb[0].mxu0
        %2660 = vmatprep.mubr.f32.mxu0 0.0
        %2661 = vmatmul.mubr.f32.gmra.mrb[0].mxu0 %v2008
        %v2662 = vpop.f32.mrb[0].mxu0
        %v2663 = vadd.f32 0.0, %v2662
        %v2664 = vpop.f32.mrb[0].mxu0
        %2665 = vmatprep.mubr.f32.mxu0 0.0
        %2666 = vmatmul.mubr.f32.gmra.mrb[0].mxu0 %v2011
        %v2667 = vpop.f32.mrb[0].mxu0
        %v2668 = vadd.f32 0.0, %v2667
        %v2669 = vpop.f32.mrb[0].mxu0
        %2670 = vmatprep.mubr.f32.mxu0 0.0
        %2671 = vmatmul.mubr.f32.gmra.mrb[0].mxu0 %v2014
        %v2672 = vpop.f32.mrb[0].mxu0
        %v2673 = vadd.f32 0.0, %v2672
        %v2674 = vpop.f32.mrb[0].mxu0
        %2675 = vmatprep.mubr.f32.mxu0 0.0
        %2676 = vmatmul.mubr.f32.gmra.mrb[0].mxu0 %v2017
        %v2677 = vpop.f32.mrb[0].mxu0
        %v2678 = vadd.f32 0.0, %v2677
        %v2679 = vpop.f32.mrb[0].mxu0
        %2680 = vmatprep.mubr.f32.mxu0 0.0
        %2681 = vmatmul.mubr.f32.gmra.mrb[0].mxu0 %v2020
        %v2682 = vpop.f32.mrb[0].mxu0
        %v2683 = vadd.f32 0.0, %v2682
        %v2684 = vpop.f32.mrb[0].mxu0
        %2685 = vmatprep.mubr.f32.mxu0 0.0
        %2686 = vmatmul.mubr.f32.gmra.mrb[0].mxu0 %v2023
        %v2687 = vpop.f32.mrb[0].mxu0
        %v2688 = vadd.f32 0.0, %v2687
        %v2689 = vpop.f32.mrb[0].mxu0
        %2690 = vmatprep.mubr.f32.mxu0 0.0
        %2691 = vmatmul.mubr.f32.gmra.mrb[0].mxu0 %v2026
        %v2692 = vpop.f32.mrb[0].mxu0
        %v2693 = vadd.f32 0.0, %v2692
        %v2694 = vpop.f32.mrb[0].mxu0
        %2695 = vmatprep.mubr.f32.mxu0 0.0
        %2696 = vmatmul.mubr.f32.gmra.mrb[0].mxu0 %v2029
        %v2697 = vpop.f32.mrb[0].mxu0
        %v2698 = vadd.f32 0.0, %v2697
        %v2699 = vpop.f32.mrb[0].mxu0
        %2700 = vmatprep.mubr.f32.mxu0 0.0
        %2701 = vmatmul.mubr.f32.gmra.mrb[0].mxu0 %v2032
        %v2702 = vpop.f32.mrb[0].mxu0
        %v2703 = vadd.f32 0.0, %v2702
        %v2704 = vpop.f32.mrb[0].mxu0
        %2705 = vmatprep.mubr.f32.mxu0 0.0
        %2706 = vmatmul.mubr.f32.gmra.mrb[0].mxu0 %v2035
        %v2707 = vpop.f32.mrb[0].mxu0
        %v2708 = vadd.f32 0.0, %v2707
        %v2709 = vpop.f32.mrb[0].mxu0
        %2710 = vmatprep.mubr.f32.mxu0 0.0
        %2711 = vmatmul.mubr.f32.gmra.mrb[0].mxu0 %v2038
        %v2712 = vpop.f32.mrb[0].mxu0
        %v2713 = vadd.f32 0.0, %v2712
        %v2714 = vpop.f32.mrb[0].mxu0
        %2715 = vmatprep.mubr.f32.mxu0 0.0
        %2716 = vmatmul.mubr.f32.gmra.mrb[0].mxu0 %v2041
        %v2717 = vpop.f32.mrb[0].mxu0
        %v2718 = vadd.f32 0.0, %v2717
        %v2719 = vpop.f32.mrb[0].mxu0
        %2720 = vmatprep.mubr.f32.mxu0 0.0
        %2721 = vmatmul.mubr.f32.gmra.mrb[0].mxu0 %v2044
        %v2722 = vpop.f32.mrb[0].mxu0
        %v2723 = vadd.f32 0.0, %v2722
        %v2724 = vpop.f32.mrb[0].mxu0
        %2725 = vmatprep.mubr.f32.mxu0 0.0
        %2726 = vmatmul.mubr.f32.gmra.mrb[0].mxu0 %v2047
        %v2727 = vpop.f32.mrb[0].mxu0
        %v2728 = vadd.f32 0.0, %v2727
        %v2729 = vpop.f32.mrb[0].mxu0
        %2730 = vmatprep.mubr.f32.mxu0 0.0
        %2731 = vmatmul.mubr.f32.gmra.mrb[0].mxu0 %v2050
        %v2732 = vpop.f32.mrb[0].mxu0
        %v2733 = vadd.f32 0.0, %v2732
        %v2734 = vpop.f32.mrb[0].mxu0
        %2735 = vmatprep.mubr.f32.mxu0 0.0
        %2736 = vmatmul.mubr.f32.gmra.mrb[0].mxu0 %v2053
        %v2737 = vpop.f32.mrb[0].mxu0
        %v2738 = vadd.f32 0.0, %v2737
        %v2739 = vpop.f32.mrb[0].mxu0
        %2740 = vmatprep.mubr.f32.mxu0 0.0
        %2741 = vmatmul.mubr.f32.gmra.mrb[0].mxu0 %v2056
        %v2742 = vpop.f32.mrb[0].mxu0
        %v2743 = vadd.f32 0.0, %v2742
        %v2744 = vpop.f32.mrb[0].mxu0
        %2745 = vmatprep.mubr.f32.mxu0 0.0
        %2746 = vmatmul.mubr.f32.gmra.mrb[0].mxu0 %v2059
        %v2747 = vpop.f32.mrb[0].mxu0
        %v2748 = vadd.f32 0.0, %v2747
        %v2749 = vpop.f32.mrb[0].mxu0
        %2750 = vmatprep.mubr.f32.mxu0 0.0
        %2751 = vmatmul.mubr.f32.gmra.mrb[0].mxu0 %v2062
        %v2752 = vpop.f32.mrb[0].mxu0
        %v2753 = vadd.f32 0.0, %v2752
        %v2754 = vpop.f32.mrb[0].mxu0
        %2755 = vmatprep.mubr.f32.mxu0 0.0
        %2756 = vmatmul.mubr.f32.gmra.mrb[0].mxu0 %v2065
        %v2757 = vpop.f32.mrb[0].mxu0
        %v2758 = vadd.f32 0.0, %v2757
        %v2759 = vpop.f32.mrb[0].mxu0
        %2760 = vmatprep.mubr.f32.mxu0 0.0
        %2761 = vmatmul.mubr.f32.gmra.mrb[0].mxu0 %v2068
        %v2762 = vpop.f32.mrb[0].mxu0
        %v2763 = vadd.f32 0.0, %v2762
        %v2764 = vpop.f32.mrb[0].mxu0
        %2765 = vmatprep.mubr.f32.mxu0 0.0
        %2766 = vmatmul.mubr.f32.gmra.mrb[0].mxu0 %v2071
        %v2767 = vpop.f32.mrb[0].mxu0
        %v2768 = vadd.f32 0.0, %v2767
        %v2769 = vpop.f32.mrb[0].mxu0
        %2770 = vmatprep.mubr.f32.mxu0 0.0
        %2771 = vmatmul.mubr.f32.gmra.mrb[0].mxu0 %v2074
        %v2772 = vpop.f32.mrb[0].mxu0
        %v2773 = vadd.f32 0.0, %v2772
        %v2774 = vpop.f32.mrb[0].mxu0
        %2775 = vmatprep.mubr.f32.mxu0 0.0
        %2776 = vmatmul.mubr.f32.gmra.mrb[0].mxu0 %v2077
        %v2777 = vpop.f32.mrb[0].mxu0
        %v2778 = vadd.f32 0.0, %v2777
        %v2779 = vpop.f32.mrb[0].mxu0
        %2780 = vdwg.mxu0
        %v2781 = vmax.f32 %v2623, %v2643
        %v2782 = vmax.f32 %v2628, %v2648
        %v2783 = vmax.f32 %v2633, %v2653
        %v2784 = vmax.f32 %v2638, %v2658
        %v2785 = vmax.f32 %v2781, %v2663
        %v2786 = vmax.f32 %v2782, %v2668
        %v2787 = vmax.f32 %v2783, %v2673
        %v2788 = vmax.f32 %v2784, %v2678
        %v2789 = vmax.f32 %v2785, %v2683
        %v2790 = vmax.f32 %v2786, %v2688
        %v2791 = vmax.f32 %v2787, %v2693
        %v2792 = vmax.f32 %v2788, %v2698
        %v2793 = vmax.f32 %v2789, %v2703
        %v2794 = vmax.f32 %v2790, %v2708
        %v2795 = vmax.f32 %v2791, %v2713
        %v2796 = vmax.f32 %v2792, %v2718
        %v2797 = vmax.f32 %v2793, %v2723
        %v2798 = vmax.f32 %v2794, %v2728
        %v2799 = vmax.f32 %v2795, %v2733
        %v2800 = vmax.f32 %v2796, %v2738
        %v2801 = vmax.f32 %v2797, %v2743
        %v2802 = vmax.f32 %v2798, %v2748
        %v2803 = vmax.f32 %v2799, %v2753
        %v2804 = vmax.f32 %v2800, %v2758
        %v2805 = vmax.f32 %v2801, %v2763
        %v2806 = vmax.f32 %v2802, %v2768
        %v2807 = vmax.f32 %v2803, %v2773
        %v2808 = vmax.f32 %v2804, %v2778
        %v2809 = vmax.f32 %v2805, %v2806
        %v2810 = vmax.f32 %v2807, %v2808
        %v2811 = vmax.f32 %v2809, %v2810
        %v2812 = vrot.slane %v2811, 4
        %v2813 = vmax.f32 %v2811, %v2812
        %v2814 = vrot.slane %v2813, 2
        %v2815 = vmax.f32 %v2813, %v2814
        %v2816 = vrot.slane %v2815, 1
        %v2817 = vmax.f32 %v2815, %v2816
        %v2818 = vsub.f32 %v2623, %v2817
        %v2819 = vsub.f32 %v2628, %v2817
        %v2820 = vsub.f32 %v2633, %v2817
        %v2821 = vsub.f32 %v2638, %v2817
        %v2822 = vsub.f32 %v2643, %v2817
        %v2823 = vsub.f32 %v2648, %v2817
        %v2824 = vsub.f32 %v2653, %v2817
        %v2825 = vsub.f32 %v2658, %v2817
        %v2826 = vsub.f32 %v2663, %v2817
        %v2827 = vsub.f32 %v2668, %v2817
        %v2828 = vsub.f32 %v2673, %v2817
        %v2829 = vsub.f32 %v2678, %v2817
        %v2830 = vsub.f32 %v2683, %v2817
        %v2831 = vsub.f32 %v2688, %v2817
        %v2832 = vsub.f32 %v2693, %v2817
        %v2833 = vsub.f32 %v2698, %v2817
        %v2834 = vsub.f32 %v2703, %v2817
        %v2835 = vsub.f32 %v2708, %v2817
        %v2836 = vsub.f32 %v2713, %v2817
        %v2837 = vsub.f32 %v2718, %v2817
        %v2838 = vsub.f32 %v2723, %v2817
        %v2839 = vsub.f32 %v2728, %v2817
        %v2840 = vsub.f32 %v2733, %v2817
        %v2841 = vsub.f32 %v2738, %v2817
        %v2842 = vsub.f32 %v2743, %v2817
        %v2843 = vsub.f32 %v2748, %v2817
        %v2844 = vsub.f32 %v2753, %v2817
        %v2845 = vsub.f32 %v2758, %v2817
        %v2846 = vsub.f32 %v2763, %v2817
        %v2847 = vsub.f32 %v2768, %v2817
        %v2848 = vsub.f32 %v2773, %v2817
        %v2849 = vsub.f32 %v2778, %v2817
        %v2850 = vmul.f32 %v2818, 1.442695
        %v2851 = vpow.pop %v2850
        %v2852 = vmul.f32 %v2819, 1.442695
        %v2853 = vpow.pop %v2852
        %v2854 = vmul.f32 %v2820, 1.442695
        %v2855 = vpow.pop %v2854
        %v2856 = vmul.f32 %v2821, 1.442695
        %v2857 = vpow.pop %v2856
        %v2858 = vmul.f32 %v2822, 1.442695
        %v2859 = vpow.pop %v2858
        %v2860 = vmul.f32 %v2823, 1.442695
        %v2861 = vpow.pop %v2860
        %v2862 = vmul.f32 %v2824, 1.442695
        %v2863 = vpow.pop %v2862
        %v2864 = vmul.f32 %v2825, 1.442695
        %v2865 = vpow.pop %v2864
        %v2866 = vmul.f32 %v2826, 1.442695
        %v2867 = vpow.pop %v2866
        %v2868 = vmul.f32 %v2827, 1.442695
        %v2869 = vpow.pop %v2868
        %v2870 = vmul.f32 %v2828, 1.442695
        %v2871 = vpow.pop %v2870
        %v2872 = vmul.f32 %v2829, 1.442695
        %v2873 = vpow.pop %v2872
        %v2874 = vmul.f32 %v2830, 1.442695
        %v2875 = vpow.pop %v2874
        %v2876 = vmul.f32 %v2831, 1.442695
        %v2877 = vpow.pop %v2876
        %v2878 = vmul.f32 %v2832, 1.442695
        %v2879 = vpow.pop %v2878
        %v2880 = vmul.f32 %v2833, 1.442695
        %v2881 = vpow.pop %v2880
        %v2882 = vmul.f32 %v2834, 1.442695
        %v2883 = vpow.pop %v2882
        %v2884 = vmul.f32 %v2835, 1.442695
        %v2885 = vpow.pop %v2884
        %v2886 = vmul.f32 %v2836, 1.442695
        %v2887 = vpow.pop %v2886
        %v2888 = vmul.f32 %v2837, 1.442695
        %v2889 = vpow.pop %v2888
        %v2890 = vmul.f32 %v2838, 1.442695
        %v2891 = vpow.pop %v2890
        %v2892 = vmul.f32 %v2839, 1.442695
        %v2893 = vpow.pop %v2892
        %v2894 = vmul.f32 %v2840, 1.442695
        %v2895 = vpow.pop %v2894
        %v2896 = vmul.f32 %v2841, 1.442695
        %v2897 = vpow.pop %v2896
        %v2898 = vmul.f32 %v2842, 1.442695
        %v2899 = vpow.pop %v2898
        %v2900 = vmul.f32 %v2843, 1.442695
        %v2901 = vpow.pop %v2900
        %v2902 = vmul.f32 %v2844, 1.442695
        %v2903 = vpow.pop %v2902
        %v2904 = vmul.f32 %v2845, 1.442695
        %v2905 = vpow.pop %v2904
        %v2906 = vmul.f32 %v2846, 1.442695
        %v2907 = vpow.pop %v2906
        %v2908 = vmul.f32 %v2847, 1.442695
        %v2909 = vpow.pop %v2908
        %v2910 = vmul.f32 %v2848, 1.442695
        %v2911 = vpow.pop %v2910
        %v2912 = vmul.f32 %v2849, 1.442695
        %v2913 = vpow.pop %v2912
        %v2914 = vadd.f32 %v2851, %v2853
        %v2915 = vadd.f32 %v2914, %v2855
        %v2916 = vadd.f32 %v2915, %v2857
        %v2917 = vadd.f32 %v2916, %v2859
        %v2918 = vadd.f32 %v2917, %v2861
        %v2919 = vadd.f32 %v2918, %v2863
        %v2920 = vadd.f32 %v2919, %v2865
        %v2921 = vadd.f32 %v2920, %v2867
        %v2922 = vadd.f32 %v2921, %v2869
        %v2923 = vadd.f32 %v2922, %v2871
        %v2924 = vadd.f32 %v2923, %v2873
        %v2925 = vadd.f32 %v2924, %v2875
        %v2926 = vadd.f32 %v2925, %v2877
        %v2927 = vadd.f32 %v2926, %v2879
        %v2928 = vadd.f32 %v2927, %v2881
        %v2929 = vadd.f32 %v2928, %v2883
        %v2930 = vadd.f32 %v2929, %v2885
        %v2931 = vadd.f32 %v2930, %v2887
        %v2932 = vadd.f32 %v2931, %v2889
        %v2933 = vadd.f32 %v2932, %v2891
        %v2934 = vadd.f32 %v2933, %v2893
        %v2935 = vadd.f32 %v2934, %v2895
        %v2936 = vadd.f32 %v2935, %v2897
        %v2937 = vadd.f32 %v2936, %v2899
        %v2938 = vadd.f32 %v2937, %v2901
        %v2939 = vadd.f32 %v2938, %v2903
        %v2940 = vadd.f32 %v2939, %v2905
        %v2941 = vadd.f32 %v2940, %v2907
        %v2942 = vadd.f32 %v2941, %v2909
        %v2943 = vadd.f32 %v2942, %v2911
        %v2944 = vadd.f32 %v2943, %v2913
        %v2945 = vrot.slane %v2944, 4
        %v2946 = vadd.f32 %v2944, %v2945
        %v2947 = vrot.slane %v2946, 2
        %v2948 = vadd.f32 %v2946, %v2947
        %v2949 = vrot.slane %v2948, 1
        %v2950 = vadd.f32 %v2948, %v2949
        %2951 = vmatprep.subr.mxu0 0.0
        %2952 = vmatpush1.msra.mxu0 %v2851
        %2953 = vmatprep.subr.mxu0 0.0
        %2954 = vmatpush1.msra.mxu0 %v2853
        %2955 = vmatprep.subr.mxu0 0.0
        %2956 = vmatpush1.msra.mxu0 %v2855
        %2957 = vmatprep.subr.mxu0 0.0
        %2958 = vmatpush1.msra.mxu0 %v2857
        %2959 = vmatprep.subr.mxu0 0.0
        %2960 = vmatpush1.msra.mxu0 %v2859
        %2961 = vmatprep.subr.mxu0 0.0
        %2962 = vmatpush1.msra.mxu0 %v2861
        %2963 = vmatprep.subr.mxu0 0.0
        %2964 = vmatpush1.msra.mxu0 %v2863
        %2965 = vmatprep.subr.mxu0 0.0
        %2966 = vmatpush1.msra.mxu0 %v2865
        %2967 = vmatprep.subr.mxu0 0.0
        %2968 = vmatpush1.msra.mxu0 %v2867
        %2969 = vmatprep.subr.mxu0 0.0
        %2970 = vmatpush1.msra.mxu0 %v2869
        %2971 = vmatprep.subr.mxu0 0.0
        %2972 = vmatpush1.msra.mxu0 %v2871
        %2973 = vmatprep.subr.mxu0 0.0
        %2974 = vmatpush1.msra.mxu0 %v2873
        %2975 = vmatprep.subr.mxu0 0.0
        %2976 = vmatpush1.msra.mxu0 %v2875
        %2977 = vmatprep.subr.mxu0 0.0
        %2978 = vmatpush1.msra.mxu0 %v2877
        %2979 = vmatprep.subr.mxu0 0.0
        %2980 = vmatpush1.msra.mxu0 %v2879
        %2981 = vmatprep.subr.mxu0 0.0
        %2982 = vmatpush1.msra.mxu0 %v2881
        %2983 = vmatprep.subr.mxu0 0.0
        %2984 = vmatpush1.msra.mxu0 %v2883
        %2985 = vmatprep.subr.mxu0 0.0
        %2986 = vmatpush1.msra.mxu0 %v2885
        %2987 = vmatprep.subr.mxu0 0.0
        %2988 = vmatpush1.msra.mxu0 %v2887
        %2989 = vmatprep.subr.mxu0 0.0
        %2990 = vmatpush1.msra.mxu0 %v2889
        %2991 = vmatprep.subr.mxu0 0.0
        %2992 = vmatpush1.msra.mxu0 %v2891
        %2993 = vmatprep.subr.mxu0 0.0
        %2994 = vmatpush1.msra.mxu0 %v2893
        %2995 = vmatprep.subr.mxu0 0.0
        %2996 = vmatpush1.msra.mxu0 %v2895
        %2997 = vmatprep.subr.mxu0 0.0
        %2998 = vmatpush1.msra.mxu0 %v2897
        %2999 = vmatprep.subr.mxu0 0.0
        %3000 = vmatpush1.msra.mxu0 %v2899
        %3001 = vmatprep.subr.mxu0 0.0
        %3002 = vmatpush1.msra.mxu0 %v2901
        %3003 = vmatprep.subr.mxu0 0.0
        %3004 = vmatpush1.msra.mxu0 %v2903
        %3005 = vmatprep.subr.mxu0 0.0
        %3006 = vmatpush1.msra.mxu0 %v2905
        %3007 = vmatprep.subr.mxu0 0.0
        %3008 = vmatpush1.msra.mxu0 %v2907
        %3009 = vmatprep.subr.mxu0 0.0
        %3010 = vmatpush1.msra.mxu0 %v2909
        %3011 = vmatprep.subr.mxu0 0.0
        %3012 = vmatpush1.msra.mxu0 %v2911
        %3013 = vmatprep.subr.mxu0 0.0
        %3014 = vmatpush1.msra.mxu0 %v2913
        %3015 = vmatprep.mubr.f32.mxu0 %v1914
        %3016 = vmatmul.mubr.f32.gmra.mrb[0].mxu0 %v1913
        %v3017 = vpop.f32.mrb[0].mxu0
        %v3018 = vadd.f32 0.0, %v3017
        %v3019 = vpop.f32.mrb[0].mxu0
        %3020 = vmatprep.mubr.f32.mxu0 %v1916
        %3021 = vmatmul.mubr.f32.gmra.mrb[0].mxu0 %v1915
        %v3022 = vpop.f32.mrb[0].mxu0
        %v3023 = vadd.f32 0.0, %v3022
        %v3024 = vpop.f32.mrb[0].mxu0
        %3025 = vdwg.mxu0
        %v3026 = vrcp.pop %v2950
        %v3027 = vmul.f32 %v3018, %v3026
        %v3028 = vmul.f32 %v3023, %v3026
        %3029 = vst [vmem:[#allocation3 + $0x28] sm:$0xff] %v3027
        %3030 = vst [vmem:[#allocation3 + $0x38] sm:$0xff] %v3028
        %v3031 = vld [vmem:[%s4] sm:$0xff]
        %v3032 = vld [vmem:[%s4 + $0x8] sm:$0xff]
        %v3033 = vld [vmem:[%s4 + $0x10] sm:$0xff]
        %v3034 = vld [vmem:[%s4 + $0x18] sm:$0xff]
        %v3035 = vld [vmem:[#allocation3] sm:$0xff]
        %v3036 = vld [vmem:[#allocation3 + $0x8] sm:$0xff]
        %v3037 = vld [vmem:[#allocation3 + $0x10] sm:$0xff]
        %v3038 = vld [vmem:[#allocation3 + $0x18] sm:$0xff]
        %v3039 = vld [vmem:[#allocation3 + $0x20] sm:$0xff]
        %v3040 = vld [vmem:[#allocation3 + $0x28] sm:$0xff]
        %v3041 = vld [vmem:[#allocation3 + $0x30] sm:$0xff]
        %v3042 = vld [vmem:[#allocation3 + $0x38] sm:$0xff]
        %v3043 = vld [vmem:[%s5] sm:$0xff]
        %v3044 = vld [vmem:[%s5 + $0x8] sm:$0xff]
        %v3045 = vld [vmem:[%s5 + $0x10] sm:$0xff]
        %v3046 = vld [vmem:[%s5 + $0x18] sm:$0xff]
        %3048 = vset.pattern.permute.xlu0 0
        %3049 = vperm.xlu0 %3048, %v3043
        %v3050 = vpop.permute.xlu0 %3049
        %3053 = vset.pattern.permute.xlu0 0
        %3054 = vperm.xlu0 %3053, %v3044
        %v3055 = vpop.permute.xlu0 %3054
        %3058 = vset.pattern.permute.xlu0 0
        %3059 = vperm.xlu0 %3058, %v3045
        %v3060 = vpop.permute.xlu0 %3059
        %3063 = vset.pattern.permute.xlu0 0
        %3064 = vperm.xlu0 %3063, %v3046
        %v3065 = vpop.permute.xlu0 %3064
        %v3068 = vsel %vm299, %v3031, 0
        %v3071 = vsel %vm299, %v3032, 0
        %v3074 = vsel %vm299, %v3033, 0
        %v3077 = vsel %vm299, %v3034, 0
        %3079 = vmatprep.subr.mxu0 %v3036
        %3080 = vmatpush1.msra.mxu0 %v3035
        %3081 = vmatprep.subr.mxu0 %v3038
        %3082 = vmatpush1.msra.mxu0 %v3037
        %3083 = vmatprep.subr.mxu0 %v3040
        %3084 = vmatpush1.msra.mxu0 %v3039
        %3085 = vmatprep.subr.mxu0 %v3042
        %3086 = vmatpush1.msra.mxu0 %v3041
        %3087 = vmatprep.subr.mxu0 0.0
        %3088 = vmatpush1.msra.mxu0 0.0
        %3089 = vmatprep.subr.mxu0 0.0
        %3090 = vmatpush1.msra.mxu0 0.0
        %3091 = vmatprep.subr.mxu0 0.0
        %3092 = vmatpush1.msra.mxu0 0.0
        %3093 = vmatprep.subr.mxu0 0.0
        %3094 = vmatpush1.msra.mxu0 0.0
        %3095 = vmatprep.subr.mxu0 0.0
        %3096 = vmatpush1.msra.mxu0 0.0
        %3097 = vmatprep.subr.mxu0 0.0
        %3098 = vmatpush1.msra.mxu0 0.0
        %3099 = vmatprep.subr.mxu0 0.0
        %3100 = vmatpush1.msra.mxu0 0.0
        %3101 = vmatprep.subr.mxu0 0.0
        %3102 = vmatpush1.msra.mxu0 0.0
        %3103 = vmatprep.subr.mxu0 0.0
        %3104 = vmatpush1.msra.mxu0 0.0
        %3105 = vmatprep.subr.mxu0 0.0
        %3106 = vmatpush1.msra.mxu0 0.0
        %3107 = vmatprep.subr.mxu0 0.0
        %3108 = vmatpush1.msra.mxu0 0.0
        %3109 = vmatprep.subr.mxu0 0.0
        %3110 = vmatpush1.msra.mxu0 0.0
        %3111 = vmatprep.subr.mxu0 0.0
        %3112 = vmatpush1.msra.mxu0 0.0
        %3113 = vmatprep.subr.mxu0 0.0
        %3114 = vmatpush1.msra.mxu0 0.0
        %3115 = vmatprep.subr.mxu0 0.0
        %3116 = vmatpush1.msra.mxu0 0.0
        %3117 = vmatprep.subr.mxu0 0.0
        %3118 = vmatpush1.msra.mxu0 0.0
        %3119 = vmatprep.subr.mxu0 0.0
        %3120 = vmatpush1.msra.mxu0 0.0
        %3121 = vmatprep.subr.mxu0 0.0
        %3122 = vmatpush1.msra.mxu0 0.0
        %3123 = vmatprep.subr.mxu0 0.0
        %3124 = vmatpush1.msra.mxu0 0.0
        %3125 = vmatprep.subr.mxu0 0.0
        %3126 = vmatpush1.msra.mxu0 0.0
        %3127 = vmatprep.subr.mxu0 0.0
        %3128 = vmatpush1.msra.mxu0 0.0
        %3129 = vmatprep.subr.mxu0 0.0
        %3130 = vmatpush1.msra.mxu0 0.0
        %3131 = vmatprep.subr.mxu0 0.0
        %3132 = vmatpush1.msra.mxu0 0.0
        %3133 = vmatprep.subr.mxu0 0.0
        %3134 = vmatpush1.msra.mxu0 0.0
        %3135 = vmatprep.subr.mxu0 0.0
        %3136 = vmatpush1.msra.mxu0 0.0
        %3137 = vmatprep.subr.mxu0 0.0
        %3138 = vmatpush1.msra.mxu0 0.0
        %3139 = vmatprep.subr.mxu0 0.0
        %3140 = vmatpush1.msra.mxu0 0.0
        %3141 = vmatprep.subr.mxu0 0.0
        %3142 = vmatpush1.msra.mxu0 0.0
        %3143 = vmatprep.mubr.f32.mxu0 0.0
        %3144 = vmatmul.mubr.f32.gmra.mrb[0].mxu0 %v3068
        %v3145 = vpop.f32.mrb[0].mxu0
        %v3146 = vadd.f32 %v3050, %v3145
        %v3147 = vpop.f32.mrb[0].mxu0
        %v3148 = vadd.f32 %v3050, %v3147
        %3149 = vmatprep.mubr.f32.mxu0 0.0
        %3150 = vmatmul.mubr.f32.gmra.mrb[0].mxu0 %v3071
        %v3151 = vpop.f32.mrb[0].mxu0
        %v3152 = vadd.f32 %v3055, %v3151
        %v3153 = vpop.f32.mrb[0].mxu0
        %v3154 = vadd.f32 %v3055, %v3153
        %3155 = vmatprep.mubr.f32.mxu0 0.0
        %3156 = vmatmul.mubr.f32.gmra.mrb[0].mxu0 %v3074
        %v3157 = vpop.f32.mrb[0].mxu0
        %v3158 = vadd.f32 %v3060, %v3157
        %v3159 = vpop.f32.mrb[0].mxu0
        %v3160 = vadd.f32 %v3060, %v3159
        %3161 = vmatprep.mubr.f32.mxu0 0.0
        %3162 = vmatmul.mubr.f32.gmra.mrb[0].mxu0 %v3077
        %v3163 = vpop.f32.mrb[0].mxu0
        %v3164 = vadd.f32 %v3065, %v3163
        %v3165 = vpop.f32.mrb[0].mxu0
        %v3166 = vadd.f32 %v3065, %v3165
        %3167 = vdwg.mxu0
        %v3168 = vld [vmem:[%s249] sm:$0xff]
        %v3169 = vld [vmem:[%s249 + $0x8] sm:$0xff]
        %v3170 = vld [vmem:[%s249 + $0x10] sm:$0xff]
        %v3171 = vld [vmem:[%s249 + $0x18] sm:$0xff]
        %v3172 = vld [vmem:[%s249 + $0x20] sm:$0xff]
        %v3173 = vld [vmem:[%s249 + $0x28] sm:$0xff]
        %v3174 = vld [vmem:[%s249 + $0x30] sm:$0xff]
        %v3175 = vld [vmem:[%s249 + $0x38] sm:$0xff]
        %v3176 = vadd.f32 %v3168, %v3146
        %v3177 = vadd.f32 %v3169, %v3148
        %v3178 = vadd.f32 %v3170, %v3152
        %v3179 = vadd.f32 %v3171, %v3154
        %v3180 = vadd.f32 %v3172, %v3158
        %v3181 = vadd.f32 %v3173, %v3160
        %v3182 = vadd.f32 %v3174, %v3164
        %v3183 = vadd.f32 %v3175, %v3166
        %3184 = vst [vmem:[%s244] sm:$0xff] %v3176
        %3185 = vst [vmem:[%s244 + $0x8] sm:$0xff] %v3177
        %3186 = vst [vmem:[%s244 + $0x10] sm:$0xff] %v3178
        %3187 = vst [vmem:[%s244 + $0x18] sm:$0xff] %v3179
        %3188 = vst [vmem:[%s244 + $0x20] sm:$0xff] %v3180
        %3189 = vst [vmem:[%s244 + $0x28] sm:$0xff] %v3181
        %3190 = vst [vmem:[%s244 + $0x30] sm:$0xff] %v3182
        %3191 = vst [vmem:[%s244 + $0x38] sm:$0xff] %v3183
        %s3192 = sand.u32 %s159, 1
        %s3193 = scalar_lea.sflag [#allocation5], %s3192
        %s3194 = sand.u32 %s159, 1
        %s3195 = smul.addr %s3194, 64
        %s3196 = scalar_lea.vmem [#allocation4], %s3195
        // Predicated region
        $region45: #{tpu_custom_call.1} parent=43 // pred_check
          %p3197 = pneg %p169
        $region46: #{tpu_custom_call.1} parent=43 // pred_check_branch
          %3199 = sbr.rel (%p3197) target = $region48
        $region47: #{tpu_custom_call.1} parent=43 // pred_region
          %s3201 = ssub.s32 1024, 1024
          %3202 = vsyncadd %s3193, %s3201
          %s3203 = smul.addr %s20, 8
          %s3204 = smul.addr %s3203, 128
          %s3205 = scalar_lea.hbm %s6, %s3204
          %s3206 = sshll.u32 %s3196, 4
          %s3207 = int_to_ptr.vmem [resolvable:$true] %s3206
          %3212 = dma.vmem_to_hbm [thread:$0]  %s3207, 1024, %s3205, %s3193, 256, 256, 16
        $region48: #{tpu_custom_call.1} parent=43 // pred_fallthru
          _
      $region44: #{tpu_custom_call.1} parent=5 // pred_fallthru
        _
      %p3213 = scmp.le.s32.totalorder 2, %s15
      // Predicated region
      $region49: #{tpu_custom_call.1} parent=5 // pred_check
        %p3214 = pneg %p3213
      $region50: #{tpu_custom_call.1} parent=5 // pred_check_branch
        %3216 = sbr.rel (%p3214) target = $region52
      $region51: #{tpu_custom_call.1} parent=5 // pred_region
        %s3217 = ssub.s32 %s15, 2
        // Predicated region
        $region53: #{tpu_custom_call.1} parent=51 // pred_check
          %p3218 = pneg %p175
        $region54: #{tpu_custom_call.1} parent=51 // pred_check_branch
          %3220 = sbr.rel (%p3218) target = $region56
        $region55: #{tpu_custom_call.1} parent=51 // pred_region
          %s3221 = sand.u32 %s160, 1
          %s3222 = scalar_lea.sflag [#allocation5], %s3221
          %s3223 = sand.u32 %s160, 1
          %s3224 = smul.addr %s3223, 64
          %s3225 = scalar_lea.vmem [#allocation4], %s3224
          %3226 = dma.done %s3222, 1024
        $region56: #{tpu_custom_call.1} parent=51 // pred_fallthru
          _
      $region52: #{tpu_custom_call.1} parent=5 // pred_fallthru
        _
    $region6: #{tpu_custom_call.1} parent=1 // loop_footer
      %s19 = sadd.s32 1, %s15
    $region7: #{tpu_custom_call.1} parent=1 // loop_footer_branch
      %14 = sbr.rel target = $region3
    $region8: #{tpu_custom_call.1} parent=1 // loop_exit
      _
    %3227 = vsyncpa [#allocation5], 1
    %s3228 = scalar_lea.sflag [#allocation5], 1
    %3229 = vsyncpa %s3228, 1

</llo_original>
